<compile_context>
chip_gen: v6e
topology: v6e:2x2x1
jax: 0.10.0
libtpu: 0.0.40
codegen_flags: <defaults>
</compile_context>

<pallas_src>
import functools

import jax
import jax.numpy as jnp
from jax import lax
from jax.experimental import pallas as pl
from jax.experimental.pallas import tpu as pltpu


def _round_up(x, m):
    return (x + m - 1) // m * m


# ----------------------------- Pallas kernels ------------------------------ #
def conv_bn_relu_kernel(p_ref, w_ref, b_ref, o_ref):
    # p: [TM, Kp] bf16 patches, w: [Kp, Cp] bf16 (BN scale already folded in),
    # b: [1, Cp] f32 folded BN bias.  MXU matmul with f32 accumulation.
    acc = jnp.dot(p_ref[...], w_ref[...], preferred_element_type=jnp.float32)
    o_ref[...] = jnp.maximum(acc + b_ref[...], 0.0)


def adv_classifier_kernel(f_ref, w1_ref, b1_ref, w2_ref, b2_ref, w3_ref, b3_ref,
                          ylabel_ref, ydomain_ref, *, classes):
    # Linear(F,1024) + ReLU  (bf16 operands, f32 accumulate, f32 epilogue)
    h = jnp.dot(f_ref[...], w1_ref[...], preferred_element_type=jnp.float32) + b1_ref[...]
    h = jnp.maximum(h, 0.0).astype(jnp.bfloat16)
    # Dropout(0.5) is identity at inference time.
    # Linear(1024,1024) + ReLU
    h = jnp.dot(h, w2_ref[...], preferred_element_type=jnp.float32) + b2_ref[...]
    h = jnp.maximum(h, 0.0).astype(jnp.bfloat16)
    # Linear(1024, 2*classes) padded to 128 lanes; padded bias columns are
    # -1e30 so those lanes contribute exactly 0 to the softmax.
    logits = jnp.dot(h, w3_ref[...], preferred_element_type=jnp.float32) + b3_ref[...]
    m = jnp.max(logits, axis=-1, keepdims=True)
    e = jnp.exp(logits - m)
    p = e / jnp.sum(e, axis=-1, keepdims=True)          # (B, 128), cols >= 2C are 0
    # y = p.view(B, 2, classes); y_domain = y.sum(-1); y_label = y.sum(-2)
    p0 = p[:, :classes]
    p1 = p[:, classes:2 * classes]
    ylabel_ref[...] = p0 + p1                            # (B, classes)
    ydomain_ref[:, 0:1] = jnp.sum(p0, axis=-1, keepdims=True)
    ydomain_ref[:, 1:2] = jnp.sum(p1, axis=-1, keepdims=True)


# ------------------------------- JAX glue ---------------------------------- #
def im2col_nchw(x, kh, kw, stride, pad):
    """x: (B, C, H, W) -> patches (B*Ho*Wo, C*kh*kw), column order (C, kh, kw)."""
    # TODO(synk): at real 224x224 sizes, fuse patch extraction into the kernel
    # (or use XLA's native conv) instead of materializing im2col in HBM.
    B, C, H, W = x.shape
    xp = jnp.pad(x, ((0, 0), (0, 0), (pad, pad), (pad, pad)))
    Ho = (H + 2 * pad - kh) // stride + 1
    Wo = (W + 2 * pad - kw) // stride + 1
    cols = []
    for i in range(kh):
        for j in range(kw):
            cols.append(xp[:, :, i:i + stride * Ho:stride, j:j + stride * Wo:stride])
    patches = jnp.stack(cols, axis=0).reshape(kh, kw, B, C, Ho, Wo)
    patches = patches.transpose(2, 4, 5, 3, 0, 1)        # (B, Ho, Wo, C, kh, kw)
    return patches.reshape(B * Ho * Wo, C * kh * kw), Ho, Wo


def net_forward(x, params, classes):
    B = x.shape[0]
    stem_c = params["conv_w"].shape[0]
    hidden = params["w1"].shape[1]

    # --- ResNet50Fc-style feature extractor (stem) ---
    mean = jnp.array([0.485, 0.456, 0.406], jnp.float32).reshape(1, 3, 1, 1)
    std = jnp.array([0.229, 0.224, 0.225], jnp.float32).reshape(1, 3, 1, 1)
    x = (x - mean) / std

    patches, Ho, Wo = im2col_nchw(x, 7, 7, stride=2, pad=3)
    P, K = patches.shape

    # Pad K to a 128 multiple (MXU-friendly, esp. v5e) and Cout 64 -> 128 so
    # the output stores are lane-dense.
    K_pad = _round_up(K, 128)
    C_pad = _round_up(stem_c, 128)
    # M tile: big enough to pipeline, small enough for v7x's 64 MiB VMEM.
    TM = min(512, _round_up(P, 8))
    P_pad = _round_up(P, TM)

    patches = jnp.pad(patches, ((0, P_pad - P), (0, K_pad - K))).astype(jnp.bfloat16)

    # Fold BN (inference) into the weight matrix / bias.
    scale = params["bn_gamma"] / jnp.sqrt(params["bn_var"] + 1e-5)      # (Cout,)
    bias = params["bn_beta"] - params["bn_mean"] * scale                # (Cout,)
    w_mat = params["conv_w"].reshape(stem_c, -1).T * scale[None, :]     # (K, Cout)
    w_mat = jnp.pad(w_mat, ((0, K_pad - K), (0, C_pad - stem_c))).astype(jnp.bfloat16)
    bias = jnp.pad(bias, (0, C_pad - stem_c)).reshape(1, C_pad).astype(jnp.float32)

    h = pl.pallas_call(
        conv_bn_relu_kernel,
        out_shape=jax.ShapeDtypeStruct((P_pad, C_pad), jnp.float32),
        grid=(P_pad // TM,),
        in_specs=[
            pl.BlockSpec((TM, K_pad), lambda i: (i, 0)),       # streamed patches
            pl.BlockSpec((K_pad, C_pad), lambda i: (0, 0)),    # resident weight
            pl.BlockSpec((1, C_pad), lambda i: (0, 0)),        # resident bias
        ],
        out_specs=pl.BlockSpec((TM, C_pad), lambda i: (i, 0)),
        compiler_params=pltpu.CompilerParams(
            dimension_semantics=("parallel",)),
    )(patches, w_mat, bias)

    # Stay NHWC downstream (channel = lane axis); padded channels are all zero.
    h = h[:P].reshape(B, Ho, Wo, C_pad)
    # maxpool 3x3, stride 2, pad 1 (NHWC)
    h = lax.reduce_window(h, -jnp.inf, lax.max,
                          (1, 3, 3, 1), (1, 2, 2, 1),
                          [(0, 0), (1, 1), (1, 1), (0, 0)])
    # TODO(synk): ResNet-50 layer1..layer4 bottleneck stacks (pretrained) omitted;
    # feature dim here is the (padded) stem channel count instead of 2048.
    f = jnp.mean(h, axis=(1, 2)).astype(jnp.bfloat16)            # (B, C_pad)

    # --- AdversarialClassifier + final view/sum reductions (fused kernel) ---
    n_out = 2 * classes
    N_pad = 128
    w1 = jnp.pad(params["w1"], ((0, C_pad - stem_c), (0, 0))).astype(jnp.bfloat16)
    w2 = params["w2"].astype(jnp.bfloat16)
    w3 = jnp.pad(params["w3"], ((0, 0), (0, N_pad - n_out))).astype(jnp.bfloat16)
    b1 = params["b1"].astype(jnp.float32)
    b2 = params["b2"].astype(jnp.float32)
    b3 = jnp.pad(params["b3"], ((0, 0), (0, N_pad - n_out)),
                 constant_values=-1e30).astype(jnp.float32)

    vmem = pl.BlockSpec(memory_space=pltpu.MemorySpace.VMEM)
    # TODO(synk): for large deployment batches, grid this call over B tiles with
    # the (bf16) weights resident and the batch axis marked "parallel".
    y_label, y_domain = pl.pallas_call(
        functools.partial(adv_classifier_kernel, classes=classes),
        out_shape=(jax.ShapeDtypeStruct((B, classes), jnp.float32),
                   jax.ShapeDtypeStruct((B, 2), jnp.float32)),
        in_specs=[vmem] * 7,
        out_specs=(vmem, vmem),
    )(f, w1, b1, w2, b2, w3, b3)
    return y_label, y_domain


# --------------------------------- main ------------------------------------ #
if __name__ == "__main__":
    key = jax.random.PRNGKey(0)
    B, Cin, H, W = 2, 3, 16, 16
    classes = 5
    n_output = classes * 2
    stem_c = 64
    hidden = 1024

    ks = jax.random.split(key, 16)
    x = jax.random.uniform(ks[0], (B, Cin, H, W), jnp.float32)   # images in [0, 1]

    params = {
        "conv_w": jax.random.normal(ks[1], (stem_c, Cin, 7, 7), jnp.float32) * 0.05,
        "bn_gamma": 1.0 + 0.1 * jax.random.normal(ks[2], (stem_c,), jnp.float32),
        "bn_beta": 0.1 * jax.random.normal(ks[3], (stem_c,), jnp.float32),
        "bn_mean": 0.1 * jax.random.normal(ks[4], (stem_c,), jnp.float32),
        "bn_var": jnp.abs(jax.random.normal(ks[5], (stem_c,), jnp.float32)) + 0.5,
        "w1": jax.random.normal(ks[6], (stem_c, hidden), jnp.float32) * 0.05,
        "b1": 0.01 * jax.random.normal(ks[7], (1, hidden), jnp.float32),
        "w2": jax.random.normal(ks[8], (hidden, hidden), jnp.float32) * 0.02,
        "b2": 0.01 * jax.random.normal(ks[9], (1, hidden), jnp.float32),
        "w3": jax.random.normal(ks[10], (hidden, n_output), jnp.float32) * 0.02,
        "b3": 0.01 * jax.random.normal(ks[11], (1, n_output), jnp.float32),
    }

    fwd = jax.jit(functools.partial(net_forward, classes=classes))
    y_label, y_domain = fwd(x, params)
    (y_label, y_domain) = jax.block_until_ready((y_label, y_domain))

    assert y_label.shape == (B, classes) and y_domain.shape == (B, 2)
    # softmax rows sum to 1, so both marginal sums must be ~1 per row
    assert jnp.all(jnp.abs(jnp.sum(y_label, axis=-1) - 1.0) < 1e-3)
    assert jnp.all(jnp.abs(jnp.sum(y_domain, axis=-1) - 1.0) < 1e-3)
    print("KERNEL_OK")
</pallas_src>

<mosaic_0001>
module attributes {stable_mosaic.version = 11 : i64} {
  func.func @conv_bn_relu_kernel(%arg0: i32, %arg1: memref<128x256xbf16, #tpu.memory_space<vmem>>, %arg2: memref<256x128xbf16, #tpu.memory_space<vmem>>, %arg3: memref<1x128xf32, #tpu.memory_space<vmem>>, %arg4: memref<128x128xf32, #tpu.memory_space<vmem>>) attributes {dimension_semantics = [#tpu.dimension_semantics<parallel>], iteration_bounds = array<i64: 1>, scalar_prefetch = 0 : i64, scratch_operands = 0 : i64, tpu.core_type = #tpu.core_type<tc>, window_params = [{transform_indices = @transform_0, window_bounds = array<i64: 128, 256>}, {pipeline_mode = #tpu.pipeline_mode<synchronous>, transform_indices = @transform_1, window_bounds = array<i64: 256, 128>}, {pipeline_mode = #tpu.pipeline_mode<synchronous>, transform_indices = @transform_2, window_bounds = array<i64: 1, 128>}, {transform_indices = @transform_3, window_bounds = array<i64: 128, 128>}]} {
    %c0 = arith.constant 0 : index
    %c0_0 = arith.constant 0 : index
    %0 = vector.load %arg1[%c0, %c0_0] : memref<128x256xbf16, #tpu.memory_space<vmem>>, vector<128x256xbf16>
    %c0_1 = arith.constant 0 : index
    %c0_2 = arith.constant 0 : index
    %1 = vector.load %arg2[%c0_1, %c0_2] : memref<256x128xbf16, #tpu.memory_space<vmem>>, vector<256x128xbf16>
    %cst = arith.constant dense<0.000000e+00> : vector<128x128xf32>
    %2 = tpu.matmul %0, %1, %cst {dimension_numbers = #tpu.dot_dimension_numbers<[1], [0], [0], [1], [0, 0, 1, 1], [], []>} : vector<128x256xbf16>, vector<256x128xbf16>, vector<128x128xf32> -> vector<128x128xf32>
    %c0_3 = arith.constant 0 : index
    %c0_4 = arith.constant 0 : index
    %3 = vector.load %arg3[%c0_3, %c0_4] : memref<1x128xf32, #tpu.memory_space<vmem>>, vector<1x128xf32>
    %4 = vector.broadcast %3 : vector<1x128xf32> to vector<128x128xf32>
    %5 = arith.addf %2, %4 : vector<128x128xf32>
    %cst_5 = arith.constant 0.000000e+00 : f32
    %6 = vector.broadcast %cst_5 : f32 to vector<128x128xf32>
    %7 = arith.maximumf %5, %6 : vector<128x128xf32>
    %c0_6 = arith.constant 0 : index
    %c0_7 = arith.constant 0 : index
    %8 = vector.load %arg4[%c0_6, %c0_7] : memref<128x128xf32, #tpu.memory_space<vmem>>, vector<128x128xf32>
    tpu.vector_store %arg4[%c0_6, %c0_7], %7 {strides = array<i32>} : memref<128x128xf32, #tpu.memory_space<vmem>>, vector<128x128xf32>,
    return
  }
  func.func @transform_0(%arg0: i32) -> (i32, i32) {
    %c0_i32 = arith.constant 0 : i32
    %c0_i32_0 = arith.constant 0 : i32
    return %arg0, %c0_i32 : i32, i32
  }
  func.func @transform_1(%arg0: i32) -> (i32, i32) {
    %c0_i32 = arith.constant 0 : i32
    %c0_i32_0 = arith.constant 0 : i32
    %c0_i32_1 = arith.constant 0 : i32
    return %c0_i32, %c0_i32_0 : i32, i32
  }
  func.func @transform_2(%arg0: i32) -> (i32, i32) {
    %c0_i32 = arith.constant 0 : i32
    %c0_i32_0 = arith.constant 0 : i32
    %c0_i32_1 = arith.constant 0 : i32
    return %c0_i32, %c0_i32_0 : i32, i32
  }
  func.func @transform_3(%arg0: i32) -> (i32, i32) {
    %c0_i32 = arith.constant 0 : i32
    %c0_i32_0 = arith.constant 0 : i32
    return %arg0, %c0_i32 : i32, i32
  }
}

module attributes {stable_mosaic.version = 11 : i64} {
  func.func @adv_classifier_kernel(%arg0: memref<2x128xbf16, #tpu.memory_space<vmem>>, %arg1: memref<128x1024xbf16, #tpu.memory_space<vmem>>, %arg2: memref<1x1024xf32, #tpu.memory_space<vmem>>, %arg3: memref<1024x1024xbf16, #tpu.memory_space<vmem>>, %arg4: memref<1x1024xf32, #tpu.memory_space<vmem>>, %arg5: memref<1024x128xbf16, #tpu.memory_space<vmem>>, %arg6: memref<1x128xf32, #tpu.memory_space<vmem>>, %arg7: memref<2x5xf32, #tpu.memory_space<vmem>>, %arg8: memref<2x2xf32, #tpu.memory_space<vmem>>) attributes {dimension_semantics = [], scalar_prefetch = 0 : i64, scratch_operands = 0 : i64, tpu.core_type = #tpu.core_type<tc>} {
    %c0 = arith.constant 0 : index
    %c0_0 = arith.constant 0 : index
    %0 = vector.load %arg0[%c0, %c0_0] : memref<2x128xbf16, #tpu.memory_space<vmem>>, vector<2x128xbf16>
    %c0_1 = arith.constant 0 : index
    %c0_2 = arith.constant 0 : index
    %1 = vector.load %arg1[%c0_1, %c0_2] : memref<128x1024xbf16, #tpu.memory_space<vmem>>, vector<128x1024xbf16>
    %cst = arith.constant dense<0.000000e+00> : vector<2x1024xf32>
    %2 = tpu.matmul %0, %1, %cst {dimension_numbers = #tpu.dot_dimension_numbers<[1], [0], [0], [1], [0, 0, 1, 1], [], []>} : vector<2x128xbf16>, vector<128x1024xbf16>, vector<2x1024xf32> -> vector<2x1024xf32>
    %c0_3 = arith.constant 0 : index
    %c0_4 = arith.constant 0 : index
    %3 = vector.load %arg2[%c0_3, %c0_4] : memref<1x1024xf32, #tpu.memory_space<vmem>>, vector<1x1024xf32>
    %4 = vector.broadcast %3 : vector<1x1024xf32> to vector<2x1024xf32>
    %5 = arith.addf %2, %4 : vector<2x1024xf32>
    %cst_5 = arith.constant 0.000000e+00 : f32
    %6 = vector.broadcast %cst_5 : f32 to vector<2x1024xf32>
    %7 = arith.maximumf %5, %6 : vector<2x1024xf32>
    %8 = arith.truncf %7 : vector<2x1024xf32> to vector<2x1024xbf16>
    %c0_6 = arith.constant 0 : index
    %c0_7 = arith.constant 0 : index
    %9 = vector.load %arg3[%c0_6, %c0_7] : memref<1024x1024xbf16, #tpu.memory_space<vmem>>, vector<1024x1024xbf16>
    %cst_8 = arith.constant dense<0.000000e+00> : vector<2x1024xf32>
    %10 = tpu.matmul %8, %9, %cst_8 {dimension_numbers = #tpu.dot_dimension_numbers<[1], [0], [0], [1], [0, 0, 1, 1], [], []>} : vector<2x1024xbf16>, vector<1024x1024xbf16>, vector<2x1024xf32> -> vector<2x1024xf32>
    %c0_9 = arith.constant 0 : index
    %c0_10 = arith.constant 0 : index
    %11 = vector.load %arg4[%c0_9, %c0_10] : memref<1x1024xf32, #tpu.memory_space<vmem>>, vector<1x1024xf32>
    %12 = vector.broadcast %11 : vector<1x1024xf32> to vector<2x1024xf32>
    %13 = arith.addf %10, %12 : vector<2x1024xf32>
    %cst_11 = arith.constant 0.000000e+00 : f32
    %14 = vector.broadcast %cst_11 : f32 to vector<2x1024xf32>
    %15 = arith.maximumf %13, %14 : vector<2x1024xf32>
    %16 = arith.truncf %15 : vector<2x1024xf32> to vector<2x1024xbf16>
    %c0_12 = arith.constant 0 : index
    %c0_13 = arith.constant 0 : index
    %17 = vector.load %arg5[%c0_12, %c0_13] : memref<1024x128xbf16, #tpu.memory_space<vmem>>, vector<1024x128xbf16>
    %cst_14 = arith.constant dense<0.000000e+00> : vector<2x128xf32>
    %18 = tpu.matmul %16, %17, %cst_14 {dimension_numbers = #tpu.dot_dimension_numbers<[1], [0], [0], [1], [0, 0, 1, 1], [], []>} : vector<2x1024xbf16>, vector<1024x128xbf16>, vector<2x128xf32> -> vector<2x128xf32>
    %c0_15 = arith.constant 0 : index
    %c0_16 = arith.constant 0 : index
    %19 = vector.load %arg6[%c0_15, %c0_16] : memref<1x128xf32, #tpu.memory_space<vmem>>, vector<1x128xf32>
    %20 = vector.broadcast %19 : vector<1x128xf32> to vector<2x128xf32>
    %21 = arith.addf %18, %20 : vector<2x128xf32>
    %cst_17 = arith.constant dense<0xFF800000> : vector<2xf32>
    %22 = vector.multi_reduction <maximumf>, %21, %cst_17 [1] : vector<2x128xf32> to vector<2xf32>
    %23 = vector.shape_cast %22 : vector<2xf32> to vector<2x1xf32>
    %24 = vector.broadcast %23 : vector<2x1xf32> to vector<2x128xf32>
    %25 = arith.subf %21, %24 : vector<2x128xf32>
    %26 = math.exp %25 : vector<2x128xf32>
    %cst_18 = arith.constant dense<0.000000e+00> : vector<2xf32>
    %27 = vector.multi_reduction <add>, %26, %cst_18 [1] : vector<2x128xf32> to vector<2xf32>
    %28 = vector.shape_cast %27 : vector<2xf32> to vector<2x1xf32>
    %29 = vector.broadcast %28 : vector<2x1xf32> to vector<2x128xf32>
    %30 = arith.divf %26, %29 : vector<2x128xf32>
    %31 = vector.extract_strided_slice %30 {offsets = [0, 0], sizes = [2, 5], strides = [1, 1]} : vector<2x128xf32> to vector<2x5xf32>
    %32 = vector.extract_strided_slice %30 {offsets = [0, 5], sizes = [2, 5], strides = [1, 1]} : vector<2x128xf32> to vector<2x5xf32>
    %33 = arith.addf %31, %32 : vector<2x5xf32>
    %c0_19 = arith.constant 0 : index
    %c0_20 = arith.constant 0 : index
    %34 = vector.load %arg7[%c0_19, %c0_20] : memref<2x5xf32, #tpu.memory_space<vmem>>, vector<2x5xf32>
    tpu.vector_store %arg7[%c0_19, %c0_20], %33 {strides = array<i32>} : memref<2x5xf32, #tpu.memory_space<vmem>>, vector<2x5xf32>,
    %cst_21 = arith.constant dense<0.000000e+00> : vector<2xf32>
    %35 = vector.multi_reduction <add>, %31, %cst_21 [1] : vector<2x5xf32> to vector<2xf32>
    %36 = vector.shape_cast %35 : vector<2xf32> to vector<2x1xf32>
    %c0_22 = arith.constant 0 : index
    %c0_23 = arith.constant 0 : index
    %37 = vector.load %arg8[%c0_22, %c0_23] : memref<2x2xf32, #tpu.memory_space<vmem>>, vector<2x1xf32>
    tpu.vector_store %arg8[%c0_22, %c0_23], %36 {strides = array<i32>} : memref<2x2xf32, #tpu.memory_space<vmem>>, vector<2x1xf32>,
    %cst_24 = arith.constant dense<0.000000e+00> : vector<2xf32>
    %38 = vector.multi_reduction <add>, %32, %cst_24 [1] : vector<2x5xf32> to vector<2xf32>
    %39 = vector.shape_cast %38 : vector<2xf32> to vector<2x1xf32>
    %c0_25 = arith.constant 0 : index
    %c1 = arith.constant 1 : index
    %40 = vector.load %arg8[%c0_25, %c1] : memref<2x2xf32, #tpu.memory_space<vmem>>, vector<2x1xf32>
    tpu.vector_store %arg8[%c0_25, %c1], %39 {strides = array<i32>} : memref<2x2xf32, #tpu.memory_space<vmem>>, vector<2x1xf32>,
    return
  }
}

</mosaic_0001>

<llo_original>
// kernel: net_forward.2
$region0: #{net_forward.2}
  #allocation0 [shape = 'u32[]', space=smem, size = 0x4, offset = 0x4, fixed_abs, tag = 'smem constant byte address 0x4 - core index']
  #allocation1 [shape = 'u32[144,128]{1,0:T(1,128)}', space=vmem, size = 0x12000, scoped, tag = 'internal scratch']
  %s0 = inlined_call_operand.vmem [shape: bf16[128,256], index: 0, kind: input, shape index: {}]
  %s1 = inlined_call_operand.vmem [shape: bf16[256,128], index: 1, kind: input, shape index: {}]
  %s2 = inlined_call_operand.vmem [shape: f32[1,128], index: 2, kind: input, shape index: {}]
  %s3 = inlined_call_operand.vmem [shape: f32[128,128], index: 3, kind: output, shape index: {}]
  %s4 = sld [smem:[#allocation0]]
  $region22: #{net_forward.2} parent=0
    _
  %s6 = ssub.s32 1, %s4
  %s7 = scalar_select 0, %s6, %s4
  // Predicated region
  $region2: #{net_forward.2} parent=0 // pred_check
    _
  $region3: #{net_forward.2} parent=0 // pred_check_branch
    %9 = sbr.rel (0) target = $region5
  $region4: #{net_forward.2} parent=0 // pred_region
    _
  $region5: #{net_forward.2} parent=0 // pred_fallthru
    _
  // Predicated region
  $region6: #{net_forward.2} parent=0 // pred_check
    _
  $region7: #{net_forward.2} parent=0 // pred_check_branch
    %11 = sbr.rel (0) target = $region9
  $region8: #{net_forward.2} parent=0 // pred_region
    _
  $region9: #{net_forward.2} parent=0 // pred_fallthru
    _
  // Predicated region
  $region10: #{net_forward.2} parent=0 // pred_check
    _
  $region11: #{net_forward.2} parent=0 // pred_check_branch
    %13 = sbr.rel (0) target = $region13
  $region12: #{net_forward.2} parent=0 // pred_region
    _
  $region13: #{net_forward.2} parent=0 // pred_fallthru
    _
  %v15 = vld [vmem:[%s0] sm:$0xff]
  %v16 = vld [vmem:[%s0 + $0x8] sm:$0xff]
  %v17 = vld [vmem:[%s0 + $0x10] sm:$0xff]
  %v18 = vld [vmem:[%s0 + $0x18] sm:$0xff]
  %v19 = vld [vmem:[%s0 + $0x20] sm:$0xff]
  %v20 = vld [vmem:[%s0 + $0x28] sm:$0xff]
  %v21 = vld [vmem:[%s0 + $0x30] sm:$0xff]
  %v22 = vld [vmem:[%s0 + $0x38] sm:$0xff]
  %v23 = vld [vmem:[%s0 + $0x40] sm:$0xff]
  %v24 = vld [vmem:[%s0 + $0x48] sm:$0xff]
  %v25 = vld [vmem:[%s0 + $0x50] sm:$0xff]
  %v26 = vld [vmem:[%s0 + $0x58] sm:$0xff]
  %v27 = vld [vmem:[%s0 + $0x60] sm:$0xff]
  %v28 = vld [vmem:[%s0 + $0x68] sm:$0xff]
  %v29 = vld [vmem:[%s0 + $0x70] sm:$0xff]
  %v30 = vld [vmem:[%s0 + $0x78] sm:$0xff]
  %v31 = vld [vmem:[%s1] sm:$0xf]
  %v32 = vld [vmem:[%s1 + $0x4] sm:$0xf]
  %v33 = vld [vmem:[%s1 + $0x8] sm:$0xf]
  %v34 = vld [vmem:[%s1 + $0xc] sm:$0xf]
  %v35 = vld [vmem:[%s1 + $0x10] sm:$0xf]
  %v36 = vld [vmem:[%s1 + $0x14] sm:$0xf]
  %v37 = vld [vmem:[%s1 + $0x18] sm:$0xf]
  %v38 = vld [vmem:[%s1 + $0x1c] sm:$0xf]
  %v39 = vld [vmem:[%s1 + $0x20] sm:$0xf]
  %v40 = vld [vmem:[%s1 + $0x24] sm:$0xf]
  %v41 = vld [vmem:[%s1 + $0x28] sm:$0xf]
  %v42 = vld [vmem:[%s1 + $0x2c] sm:$0xf]
  %v43 = vld [vmem:[%s1 + $0x30] sm:$0xf]
  %v44 = vld [vmem:[%s1 + $0x34] sm:$0xf]
  %v45 = vld [vmem:[%s1 + $0x38] sm:$0xf]
  %v46 = vld [vmem:[%s1 + $0x3c] sm:$0xf]
  %v47 = vld [vmem:[%s1 + $0x40] sm:$0xf]
  %v48 = vld [vmem:[%s1 + $0x44] sm:$0xf]
  %v49 = vld [vmem:[%s1 + $0x48] sm:$0xf]
  %v50 = vld [vmem:[%s1 + $0x4c] sm:$0xf]
  %v51 = vld [vmem:[%s1 + $0x50] sm:$0xf]
  %v52 = vld [vmem:[%s1 + $0x54] sm:$0xf]
  %v53 = vld [vmem:[%s1 + $0x58] sm:$0xf]
  %v54 = vld [vmem:[%s1 + $0x5c] sm:$0xf]
  %v55 = vld [vmem:[%s1 + $0x60] sm:$0xf]
  %v56 = vld [vmem:[%s1 + $0x64] sm:$0xf]
  %v57 = vld [vmem:[%s1 + $0x68] sm:$0xf]
  %v58 = vld [vmem:[%s1 + $0x6c] sm:$0xf]
  %v59 = vld [vmem:[%s1 + $0x70] sm:$0xf]
  %v60 = vld [vmem:[%s1 + $0x74] sm:$0xf]
  %v61 = vld [vmem:[%s1 + $0x78] sm:$0xf]
  %v62 = vld [vmem:[%s1 + $0x7c] sm:$0xf]
  %v63 = vld [vmem:[%s2] sm:$0x1]
  %v65 = vlaneseq
  %v66 = vshrl.u32 %v65, 7
  %v67 = vsub.s32 0, %v66
  %v68 = vrot.slane %v63, %v67
  %v86 = vunpack.c.l.b16 %v15
  %v87 = vunpack.c.h.b16 %v15
  %v88 = vunpack.c.l.b16 %v16
  %v89 = vunpack.c.h.b16 %v16
  %v90 = vunpack.c.l.b16 %v17
  %v91 = vunpack.c.h.b16 %v17
  %v92 = vunpack.c.l.b16 %v18
  %v93 = vunpack.c.h.b16 %v18
  %v94 = vunpack.c.l.b16 %v19
  %v95 = vunpack.c.h.b16 %v19
  %v96 = vunpack.c.l.b16 %v20
  %v97 = vunpack.c.h.b16 %v20
  %v98 = vunpack.c.l.b16 %v21
  %v99 = vunpack.c.h.b16 %v21
  %v100 = vunpack.c.l.b16 %v22
  %v101 = vunpack.c.h.b16 %v22
  %v102 = vunpack.c.l.b16 %v23
  %v103 = vunpack.c.h.b16 %v23
  %v104 = vunpack.c.l.b16 %v24
  %v105 = vunpack.c.h.b16 %v24
  %v106 = vunpack.c.l.b16 %v25
  %v107 = vunpack.c.h.b16 %v25
  %v108 = vunpack.c.l.b16 %v26
  %v109 = vunpack.c.h.b16 %v26
  %v110 = vunpack.c.l.b16 %v27
  %v111 = vunpack.c.h.b16 %v27
  %v112 = vunpack.c.l.b16 %v28
  %v113 = vunpack.c.h.b16 %v28
  %v114 = vunpack.c.l.b16 %v29
  %v115 = vunpack.c.h.b16 %v29
  %v116 = vunpack.c.l.b16 %v30
  %v117 = vunpack.c.h.b16 %v30
  %v118 = vpack.c.b16 %v88, %v86
  %v119 = vpack.c.b16 %v89, %v87
  %v120 = vpack.c.b16 %v92, %v90
  %v121 = vpack.c.b16 %v93, %v91
  %v122 = vpack.c.b16 %v96, %v94
  %v123 = vpack.c.b16 %v97, %v95
  %v124 = vpack.c.b16 %v100, %v98
  %v125 = vpack.c.b16 %v101, %v99
  %v126 = vpack.c.b16 %v104, %v102
  %v127 = vpack.c.b16 %v105, %v103
  %v128 = vpack.c.b16 %v108, %v106
  %v129 = vpack.c.b16 %v109, %v107
  %v130 = vpack.c.b16 %v112, %v110
  %v131 = vpack.c.b16 %v113, %v111
  %v132 = vpack.c.b16 %v116, %v114
  %v133 = vpack.c.b16 %v117, %v115
  %v182 = vunpack.c.l.b16 %v31
  %v183 = vunpack.c.l.b16 %v32
  %v184 = vunpack.c.l.b16 %v33
  %v185 = vunpack.c.l.b16 %v34
  %v186 = vunpack.c.l.b16 %v35
  %v187 = vunpack.c.l.b16 %v36
  %v188 = vunpack.c.l.b16 %v37
  %v189 = vunpack.c.l.b16 %v38
  %v190 = vunpack.c.l.b16 %v39
  %v191 = vunpack.c.l.b16 %v40
  %v192 = vunpack.c.l.b16 %v41
  %v193 = vunpack.c.l.b16 %v42
  %v194 = vunpack.c.l.b16 %v43
  %v195 = vunpack.c.l.b16 %v44
  %v196 = vunpack.c.l.b16 %v45
  %v197 = vunpack.c.l.b16 %v46
  %v198 = vunpack.c.l.b16 %v47
  %v199 = vunpack.c.l.b16 %v48
  %v200 = vunpack.c.l.b16 %v49
  %v201 = vunpack.c.l.b16 %v50
  %v202 = vunpack.c.l.b16 %v51
  %v203 = vunpack.c.l.b16 %v52
  %v204 = vunpack.c.l.b16 %v53
  %v205 = vunpack.c.l.b16 %v54
  %v206 = vunpack.c.l.b16 %v55
  %v207 = vunpack.c.l.b16 %v56
  %v208 = vunpack.c.l.b16 %v57
  %v209 = vunpack.c.l.b16 %v58
  %v210 = vunpack.c.l.b16 %v59
  %v211 = vunpack.c.l.b16 %v60
  %v212 = vunpack.c.l.b16 %v61
  %v213 = vunpack.c.l.b16 %v62
  %v214 = vpack.c.b16 %v183, %v182
  %v215 = vpack.c.b16 %v185, %v184
  %v216 = vpack.c.b16 %v187, %v186
  %v217 = vpack.c.b16 %v189, %v188
  %v218 = vpack.c.b16 %v191, %v190
  %v219 = vpack.c.b16 %v193, %v192
  %v220 = vpack.c.b16 %v195, %v194
  %v221 = vpack.c.b16 %v197, %v196
  %v222 = vpack.c.b16 %v199, %v198
  %v223 = vpack.c.b16 %v201, %v200
  %v224 = vpack.c.b16 %v203, %v202
  %v225 = vpack.c.b16 %v205, %v204
  %v226 = vpack.c.b16 %v207, %v206
  %v227 = vpack.c.b16 %v209, %v208
  %v228 = vpack.c.b16 %v211, %v210
  %v229 = vpack.c.b16 %v213, %v212
  %246 = vmatprep.subr.bf16.mxu0 0
  %247 = vmatpush1.bf16.msra.mxu0 %v221
  %248 = vmatprep.subr.bf16.mxu0 0
  %249 = vmatpush1.bf16.msra.mxu0 %v220
  %250 = vmatprep.subr.bf16.mxu0 0
  %251 = vmatpush1.bf16.msra.mxu0 %v219
  %252 = vmatprep.subr.bf16.mxu0 0
  %253 = vmatpush1.bf16.msra.mxu0 %v218
  %254 = vmatprep.subr.bf16.mxu0 0
  %255 = vmatpush1.bf16.msra.mxu0 %v217
  %256 = vmatprep.subr.bf16.mxu0 0
  %257 = vmatpush1.bf16.msra.mxu0 %v216
  %258 = vmatprep.subr.bf16.mxu0 0
  %259 = vmatpush1.bf16.msra.mxu0 %v215
  %260 = vmatprep.subr.bf16.mxu0 0
  %261 = vmatpush1.bf16.msra.mxu0 %v214
  %262 = vmatprep.subr.bf16.mxu0 0
  %263 = vmatpush2.bf16.msra.mxu0 %v229
  %264 = vmatprep.subr.bf16.mxu0 0
  %265 = vmatpush2.bf16.msra.mxu0 %v228
  %266 = vmatprep.subr.bf16.mxu0 0
  %267 = vmatpush2.bf16.msra.mxu0 %v227
  %268 = vmatprep.subr.bf16.mxu0 0
  %269 = vmatpush2.bf16.msra.mxu0 %v226
  %270 = vmatprep.subr.bf16.mxu0 0
  %271 = vmatpush2.bf16.msra.mxu0 %v225
  %272 = vmatprep.subr.bf16.mxu0 0
  %273 = vmatpush2.bf16.msra.mxu0 %v224
  %274 = vmatprep.subr.bf16.mxu0 0
  %275 = vmatpush2.bf16.msra.mxu0 %v223
  %276 = vmatprep.subr.bf16.mxu0 0
  %277 = vmatpush2.bf16.msra.mxu0 %v222
  %278 = vmatprep.mubr.bf16.mxu0 %v119
  %279 = vmatmul.mubr.bf16.gmra.mxu0 %v118
  %v280 = vpop.f32.mrf.mxu0
  %v281 = vadd.f32 %v68, %v280
  %v282 = vpop.f32.mrf.mxu0
  %v283 = vpop.f32.mrf.mxu0
  %v284 = vadd.f32 %v68, %v283
  %v285 = vpop.f32.mrf.mxu0
  %286 = vmatprep.mubr.bf16.mxu0 %v121
  %287 = vmatmul.mubr.bf16.gmra.mxu0 %v120
  %v288 = vpop.f32.mrf.mxu0
  %v289 = vadd.f32 %v68, %v288
  %v290 = vpop.f32.mrf.mxu0
  %v291 = vpop.f32.mrf.mxu0
  %v292 = vadd.f32 %v68, %v291
  %v293 = vpop.f32.mrf.mxu0
  %294 = vmatprep.mubr.bf16.mxu0 %v123
  %295 = vmatmul.mubr.bf16.gmra.mxu0 %v122
  %v296 = vpop.f32.mrf.mxu0
  %v297 = vadd.f32 %v68, %v296
  %v298 = vpop.f32.mrf.mxu0
  %v299 = vpop.f32.mrf.mxu0
  %v300 = vadd.f32 %v68, %v299
  %v301 = vpop.f32.mrf.mxu0
  %302 = vmatprep.mubr.bf16.mxu0 %v125
  %303 = vmatmul.mubr.bf16.gmra.mxu0 %v124
  %v304 = vpop.f32.mrf.mxu0
  %v305 = vadd.f32 %v68, %v304
  %v306 = vpop.f32.mrf.mxu0
  %v307 = vpop.f32.mrf.mxu0
  %v308 = vadd.f32 %v68, %v307
  %v309 = vpop.f32.mrf.mxu0
  %310 = vmatprep.mubr.bf16.mxu0 %v127
  %311 = vmatmul.mubr.bf16.gmra.mxu0 %v126
  %v312 = vpop.f32.mrf.mxu0
  %v313 = vadd.f32 %v68, %v312
  %v314 = vpop.f32.mrf.mxu0
  %v315 = vpop.f32.mrf.mxu0
  %v316 = vadd.f32 %v68, %v315
  %v317 = vpop.f32.mrf.mxu0
  %318 = vmatprep.mubr.bf16.mxu0 %v129
  %319 = vmatmul.mubr.bf16.gmra.mxu0 %v128
  %v320 = vpop.f32.mrf.mxu0
  %v321 = vadd.f32 %v68, %v320
  %v322 = vpop.f32.mrf.mxu0
  %v323 = vpop.f32.mrf.mxu0
  %v324 = vadd.f32 %v68, %v323
  %v325 = vpop.f32.mrf.mxu0
  %326 = vmatprep.mubr.bf16.mxu0 %v131
  %327 = vmatmul.mubr.bf16.gmra.mxu0 %v130
  %v328 = vpop.f32.mrf.mxu0
  %v329 = vadd.f32 %v68, %v328
  %v330 = vpop.f32.mrf.mxu0
  %v331 = vpop.f32.mrf.mxu0
  %v332 = vadd.f32 %v68, %v331
  %v333 = vpop.f32.mrf.mxu0
  %334 = vmatprep.mubr.bf16.mxu0 %v133
  %335 = vmatmul.mubr.bf16.gmra.mxu0 %v132
  %v336 = vpop.f32.mrf.mxu0
  %v337 = vadd.f32 %v68, %v336
  %v338 = vpop.f32.mrf.mxu0
  %v339 = vpop.f32.mrf.mxu0
  %v340 = vadd.f32 %v68, %v339
  %v341 = vpop.f32.mrf.mxu0
  %342 = vdwg.mxu0
  %v343 = vmax.f32 %v281, 0.0
  %v344 = vmax.f32 %v284, 0.0
  %v345 = vmax.f32 %v289, 0.0
  %v346 = vmax.f32 %v292, 0.0
  %v347 = vmax.f32 %v297, 0.0
  %v348 = vmax.f32 %v300, 0.0
  %v349 = vmax.f32 %v305, 0.0
  %v350 = vmax.f32 %v308, 0.0
  %v351 = vmax.f32 %v313, 0.0
  %v352 = vmax.f32 %v316, 0.0
  %v353 = vmax.f32 %v321, 0.0
  %v354 = vmax.f32 %v324, 0.0
  %v355 = vmax.f32 %v329, 0.0
  %v356 = vmax.f32 %v332, 0.0
  %v357 = vmax.f32 %v337, 0.0
  %v358 = vmax.f32 %v340, 0.0
  %359 = vst [vmem:[%s3] sm:$0xff] %v343
  %360 = vst [vmem:[%s3 + $0x8] sm:$0xff] %v344
  %361 = vst [vmem:[%s3 + $0x10] sm:$0xff] %v345
  %362 = vst [vmem:[%s3 + $0x18] sm:$0xff] %v346
  %363 = vst [vmem:[%s3 + $0x20] sm:$0xff] %v347
  %364 = vst [vmem:[%s3 + $0x28] sm:$0xff] %v348
  %365 = vst [vmem:[%s3 + $0x30] sm:$0xff] %v349
  %366 = vst [vmem:[%s3 + $0x38] sm:$0xff] %v350
  %367 = vst [vmem:[%s3 + $0x40] sm:$0xff] %v351
  %368 = vst [vmem:[%s3 + $0x48] sm:$0xff] %v352
  %369 = vst [vmem:[%s3 + $0x50] sm:$0xff] %v353
  %370 = vst [vmem:[%s3 + $0x58] sm:$0xff] %v354
  %371 = vst [vmem:[%s3 + $0x60] sm:$0xff] %v355
  %372 = vst [vmem:[%s3 + $0x68] sm:$0xff] %v356
  %373 = vst [vmem:[%s3 + $0x70] sm:$0xff] %v357
  %374 = vst [vmem:[%s3 + $0x78] sm:$0xff] %v358
  // Predicated region
  $region14: #{net_forward.2} parent=0 // pred_check
    _
  $region15: #{net_forward.2} parent=0 // pred_check_branch
    %376 = sbr.rel (0) target = $region17
  $region16: #{net_forward.2} parent=0 // pred_region
    _
  $region17: #{net_forward.2} parent=0 // pred_fallthru
    _
  // Predicated region
  $region18: #{net_forward.2} parent=0 // pred_check
    _
  $region19: #{net_forward.2} parent=0 // pred_check_branch
    %378 = sbr.rel (0) target = $region21
  $region20: #{net_forward.2} parent=0 // pred_region
    _
  $region21: #{net_forward.2} parent=0 // pred_fallthru
    _

// kernel: net_forward.3
$region0: #{net_forward.3}
  #allocation0 [shape = 'u32[]', space=smem, size = 0x4, offset = 0x4, fixed_abs, tag = 'smem constant byte address 0x4 - core index']
  #allocation1 [shape = 'u32[144,128]{1,0:T(1,128)}', space=vmem, size = 0x12000, scoped, tag = 'internal scratch']
  %s0 = inlined_call_operand.vmem [shape: bf16[2,128], index: 0, kind: input, shape index: {}]
  %s1 = inlined_call_operand.vmem [shape: bf16[128,1024], index: 1, kind: input, shape index: {}]
  %s2 = inlined_call_operand.vmem [shape: f32[1,1024], index: 2, kind: input, shape index: {}]
  %s3 = inlined_call_operand.vmem [shape: bf16[1024,1024], index: 3, kind: input, shape index: {}]
  %s4 = inlined_call_operand.vmem [shape: f32[1,1024], index: 4, kind: input, shape index: {}]
  %s5 = inlined_call_operand.vmem [shape: bf16[1024,128], index: 5, kind: input, shape index: {}]
  %s6 = inlined_call_operand.vmem [shape: f32[1,128], index: 6, kind: input, shape index: {}]
  %s7 = inlined_call_operand.hbm [shape: f32[2,5], index: 7, kind: output, shape index: {0}]
  %s8 = inlined_call_operand.hbm [shape: f32[2,2], index: 8, kind: output, shape index: {1}]
  %9 = xla_tuple %s7, %s8
  %s10 = sld [smem:[#allocation0]]
  $region46: #{net_forward.3} parent=0
    _
  %s12 = ssub.s32 1, %s10
  %s13 = scalar_select 0, %s12, %s10
  $region1: #{net_forward.3} parent=0
    #allocation2 [shape = 'u8[1024]{0}', space=vmem, size = 0x400, scoped, tag = 'output window, operand 0, single buffered']
    #allocation3 [shape = 's32[1]{0}', space=sflag, size = 0x4, scoped, tag = 'scoped memory for net_forward.3']
    #allocation4 [shape = 'u8[1024]{0}', space=vmem, size = 0x400, scoped, tag = 'output window, operand 1, single buffered']
    #allocation5 [shape = 's32[1]{0}', space=sflag, size = 0x4, scoped, tag = 'scoped memory for net_forward.3']
    %14 = vsyncpa [#allocation3], 0
    %15 = vsyncpa [#allocation5], 0
    // Predicated region
    $region2: #{net_forward.3} parent=1 // pred_check
      _
    $region3: #{net_forward.3} parent=1 // pred_check_branch
      %17 = sbr.rel (0) target = $region5
    $region4: #{net_forward.3} parent=1 // pred_region
      _
    $region5: #{net_forward.3} parent=1 // pred_fallthru
      _
    // Predicated region
    $region6: #{net_forward.3} parent=1 // pred_check
      _
    $region7: #{net_forward.3} parent=1 // pred_check_branch
      %19 = sbr.rel (0) target = $region9
    $region8: #{net_forward.3} parent=1 // pred_region
      _
    $region9: #{net_forward.3} parent=1 // pred_fallthru
      _
    // Predicated region
    $region10: #{net_forward.3} parent=1 // pred_check
      _
    $region11: #{net_forward.3} parent=1 // pred_check_branch
      %21 = sbr.rel (0) target = $region13
    $region12: #{net_forward.3} parent=1 // pred_region
      _
    $region13: #{net_forward.3} parent=1 // pred_fallthru
      _
    // Predicated region
    $region14: #{net_forward.3} parent=1 // pred_check
      _
    $region15: #{net_forward.3} parent=1 // pred_check_branch
      %23 = sbr.rel (0) target = $region17
    $region16: #{net_forward.3} parent=1 // pred_region
      _
    $region17: #{net_forward.3} parent=1 // pred_fallthru
      _
    // Predicated region
    $region18: #{net_forward.3} parent=1 // pred_check
      _
    $region19: #{net_forward.3} parent=1 // pred_check_branch
      %25 = sbr.rel (0) target = $region21
    $region20: #{net_forward.3} parent=1 // pred_region
      _
    $region21: #{net_forward.3} parent=1 // pred_fallthru
      _
    // Predicated region
    $region22: #{net_forward.3} parent=1 // pred_check
      _
    $region23: #{net_forward.3} parent=1 // pred_check_branch
      %27 = sbr.rel (0) target = $region25
    $region24: #{net_forward.3} parent=1 // pred_region
      _
    $region25: #{net_forward.3} parent=1 // pred_fallthru
      _
    // Predicated region
    $region26: #{net_forward.3} parent=1 // pred_check
      _
    $region27: #{net_forward.3} parent=1 // pred_check_branch
      %29 = sbr.rel (0) target = $region29
    $region28: #{net_forward.3} parent=1 // pred_region
      _
    $region29: #{net_forward.3} parent=1 // pred_fallthru
      _
    %v31 = vld [vmem:[%s0] sm:$0x1]
    %v32 = vld [vmem:[%s1] sm:$0xff]
    %v33 = vld [vmem:[%s1 + $0x8] sm:$0xff]
    %v34 = vld [vmem:[%s1 + $0x10] sm:$0xff]
    %v35 = vld [vmem:[%s1 + $0x18] sm:$0xff]
    %v36 = vld [vmem:[%s1 + $0x20] sm:$0xff]
    %v37 = vld [vmem:[%s1 + $0x28] sm:$0xff]
    %v38 = vld [vmem:[%s1 + $0x30] sm:$0xff]
    %v39 = vld [vmem:[%s1 + $0x38] sm:$0xff]
    %v40 = vld [vmem:[%s1 + $0x40] sm:$0xff]
    %v41 = vld [vmem:[%s1 + $0x48] sm:$0xff]
    %v42 = vld [vmem:[%s1 + $0x50] sm:$0xff]
    %v43 = vld [vmem:[%s1 + $0x58] sm:$0xff]
    %v44 = vld [vmem:[%s1 + $0x60] sm:$0xff]
    %v45 = vld [vmem:[%s1 + $0x68] sm:$0xff]
    %v46 = vld [vmem:[%s1 + $0x70] sm:$0xff]
    %v47 = vld [vmem:[%s1 + $0x78] sm:$0xff]
    %v48 = vld [vmem:[%s1 + $0x80] sm:$0xff]
    %v49 = vld [vmem:[%s1 + $0x88] sm:$0xff]
    %v50 = vld [vmem:[%s1 + $0x90] sm:$0xff]
    %v51 = vld [vmem:[%s1 + $0x98] sm:$0xff]
    %v52 = vld [vmem:[%s1 + $0xa0] sm:$0xff]
    %v53 = vld [vmem:[%s1 + $0xa8] sm:$0xff]
    %v54 = vld [vmem:[%s1 + $0xb0] sm:$0xff]
    %v55 = vld [vmem:[%s1 + $0xb8] sm:$0xff]
    %v56 = vld [vmem:[%s1 + $0xc0] sm:$0xff]
    %v57 = vld [vmem:[%s1 + $0xc8] sm:$0xff]
    %v58 = vld [vmem:[%s1 + $0xd0] sm:$0xff]
    %v59 = vld [vmem:[%s1 + $0xd8] sm:$0xff]
    %v60 = vld [vmem:[%s1 + $0xe0] sm:$0xff]
    %v61 = vld [vmem:[%s1 + $0xe8] sm:$0xff]
    %v62 = vld [vmem:[%s1 + $0xf0] sm:$0xff]
    %v63 = vld [vmem:[%s1 + $0xf8] sm:$0xff]
    %v64 = vld [vmem:[%s1 + $0x100] sm:$0xff]
    %v65 = vld [vmem:[%s1 + $0x108] sm:$0xff]
    %v66 = vld [vmem:[%s1 + $0x110] sm:$0xff]
    %v67 = vld [vmem:[%s1 + $0x118] sm:$0xff]
    %v68 = vld [vmem:[%s1 + $0x120] sm:$0xff]
    %v69 = vld [vmem:[%s1 + $0x128] sm:$0xff]
    %v70 = vld [vmem:[%s1 + $0x130] sm:$0xff]
    %v71 = vld [vmem:[%s1 + $0x138] sm:$0xff]
    %v72 = vld [vmem:[%s1 + $0x140] sm:$0xff]
    %v73 = vld [vmem:[%s1 + $0x148] sm:$0xff]
    %v74 = vld [vmem:[%s1 + $0x150] sm:$0xff]
    %v75 = vld [vmem:[%s1 + $0x158] sm:$0xff]
    %v76 = vld [vmem:[%s1 + $0x160] sm:$0xff]
    %v77 = vld [vmem:[%s1 + $0x168] sm:$0xff]
    %v78 = vld [vmem:[%s1 + $0x170] sm:$0xff]
    %v79 = vld [vmem:[%s1 + $0x178] sm:$0xff]
    %v80 = vld [vmem:[%s1 + $0x180] sm:$0xff]
    %v81 = vld [vmem:[%s1 + $0x188] sm:$0xff]
    %v82 = vld [vmem:[%s1 + $0x190] sm:$0xff]
    %v83 = vld [vmem:[%s1 + $0x198] sm:$0xff]
    %v84 = vld [vmem:[%s1 + $0x1a0] sm:$0xff]
    %v85 = vld [vmem:[%s1 + $0x1a8] sm:$0xff]
    %v86 = vld [vmem:[%s1 + $0x1b0] sm:$0xff]
    %v87 = vld [vmem:[%s1 + $0x1b8] sm:$0xff]
    %v88 = vld [vmem:[%s1 + $0x1c0] sm:$0xff]
    %v89 = vld [vmem:[%s1 + $0x1c8] sm:$0xff]
    %v90 = vld [vmem:[%s1 + $0x1d0] sm:$0xff]
    %v91 = vld [vmem:[%s1 + $0x1d8] sm:$0xff]
    %v92 = vld [vmem:[%s1 + $0x1e0] sm:$0xff]
    %v93 = vld [vmem:[%s1 + $0x1e8] sm:$0xff]
    %v94 = vld [vmem:[%s1 + $0x1f0] sm:$0xff]
    %v95 = vld [vmem:[%s1 + $0x1f8] sm:$0xff]
    %v96 = vld [vmem:[%s2] sm:$0xff]
    %v98 = vlaneseq
    %v99 = vshrl.u32 %v98, 7
    %v100 = vsub.s32 0, %v99
    %v101 = vrot.slane %v96, %v100
    %v102 = vlaneseq
    %v103 = vshrl.u32 %v102, 7
    %v104 = vsub.s32 1, %v103
    %v105 = vrot.slane %v96, %v104
    %v106 = vlaneseq
    %v107 = vshrl.u32 %v106, 7
    %v108 = vsub.s32 2, %v107
    %v109 = vrot.slane %v96, %v108
    %v110 = vlaneseq
    %v111 = vshrl.u32 %v110, 7
    %v112 = vsub.s32 3, %v111
    %v113 = vrot.slane %v96, %v112
    %v114 = vlaneseq
    %v115 = vshrl.u32 %v114, 7
    %v116 = vsub.s32 4, %v115
    %v117 = vrot.slane %v96, %v116
    %v118 = vlaneseq
    %v119 = vshrl.u32 %v118, 7
    %v120 = vsub.s32 5, %v119
    %v121 = vrot.slane %v96, %v120
    %v122 = vlaneseq
    %v123 = vshrl.u32 %v122, 7
    %v124 = vsub.s32 6, %v123
    %v125 = vrot.slane %v96, %v124
    %v126 = vlaneseq
    %v127 = vshrl.u32 %v126, 7
    %v128 = vsub.s32 7, %v127
    %v129 = vrot.slane %v96, %v128
    %v202 = vunpack.c.l.b16 %v32
    %v203 = vunpack.c.h.b16 %v32
    %v204 = vunpack.c.l.b16 %v33
    %v205 = vunpack.c.h.b16 %v33
    %v206 = vunpack.c.l.b16 %v34
    %v207 = vunpack.c.h.b16 %v34
    %v208 = vunpack.c.l.b16 %v35
    %v209 = vunpack.c.h.b16 %v35
    %v210 = vunpack.c.l.b16 %v36
    %v211 = vunpack.c.h.b16 %v36
    %v212 = vunpack.c.l.b16 %v37
    %v213 = vunpack.c.h.b16 %v37
    %v214 = vunpack.c.l.b16 %v38
    %v215 = vunpack.c.h.b16 %v38
    %v216 = vunpack.c.l.b16 %v39
    %v217 = vunpack.c.h.b16 %v39
    %v218 = vunpack.c.l.b16 %v40
    %v219 = vunpack.c.h.b16 %v40
    %v220 = vunpack.c.l.b16 %v41
    %v221 = vunpack.c.h.b16 %v41
    %v222 = vunpack.c.l.b16 %v42
    %v223 = vunpack.c.h.b16 %v42
    %v224 = vunpack.c.l.b16 %v43
    %v225 = vunpack.c.h.b16 %v43
    %v226 = vunpack.c.l.b16 %v44
    %v227 = vunpack.c.h.b16 %v44
    %v228 = vunpack.c.l.b16 %v45
    %v229 = vunpack.c.h.b16 %v45
    %v230 = vunpack.c.l.b16 %v46
    %v231 = vunpack.c.h.b16 %v46
    %v232 = vunpack.c.l.b16 %v47
    %v233 = vunpack.c.h.b16 %v47
    %v234 = vunpack.c.l.b16 %v48
    %v235 = vunpack.c.h.b16 %v48
    %v236 = vunpack.c.l.b16 %v49
    %v237 = vunpack.c.h.b16 %v49
    %v238 = vunpack.c.l.b16 %v50
    %v239 = vunpack.c.h.b16 %v50
    %v240 = vunpack.c.l.b16 %v51
    %v241 = vunpack.c.h.b16 %v51
    %v242 = vunpack.c.l.b16 %v52
    %v243 = vunpack.c.h.b16 %v52
    %v244 = vunpack.c.l.b16 %v53
    %v245 = vunpack.c.h.b16 %v53
    %v246 = vunpack.c.l.b16 %v54
    %v247 = vunpack.c.h.b16 %v54
    %v248 = vunpack.c.l.b16 %v55
    %v249 = vunpack.c.h.b16 %v55
    %v250 = vunpack.c.l.b16 %v56
    %v251 = vunpack.c.h.b16 %v56
    %v252 = vunpack.c.l.b16 %v57
    %v253 = vunpack.c.h.b16 %v57
    %v254 = vunpack.c.l.b16 %v58
    %v255 = vunpack.c.h.b16 %v58
    %v256 = vunpack.c.l.b16 %v59
    %v257 = vunpack.c.h.b16 %v59
    %v258 = vunpack.c.l.b16 %v60
    %v259 = vunpack.c.h.b16 %v60
    %v260 = vunpack.c.l.b16 %v61
    %v261 = vunpack.c.h.b16 %v61
    %v262 = vunpack.c.l.b16 %v62
    %v263 = vunpack.c.h.b16 %v62
    %v264 = vunpack.c.l.b16 %v63
    %v265 = vunpack.c.h.b16 %v63
    %v266 = vunpack.c.l.b16 %v64
    %v267 = vunpack.c.h.b16 %v64
    %v268 = vunpack.c.l.b16 %v65
    %v269 = vunpack.c.h.b16 %v65
    %v270 = vunpack.c.l.b16 %v66
    %v271 = vunpack.c.h.b16 %v66
    %v272 = vunpack.c.l.b16 %v67
    %v273 = vunpack.c.h.b16 %v67
    %v274 = vunpack.c.l.b16 %v68
    %v275 = vunpack.c.h.b16 %v68
    %v276 = vunpack.c.l.b16 %v69
    %v277 = vunpack.c.h.b16 %v69
    %v278 = vunpack.c.l.b16 %v70
    %v279 = vunpack.c.h.b16 %v70
    %v280 = vunpack.c.l.b16 %v71
    %v281 = vunpack.c.h.b16 %v71
    %v282 = vunpack.c.l.b16 %v72
    %v283 = vunpack.c.h.b16 %v72
    %v284 = vunpack.c.l.b16 %v73
    %v285 = vunpack.c.h.b16 %v73
    %v286 = vunpack.c.l.b16 %v74
    %v287 = vunpack.c.h.b16 %v74
    %v288 = vunpack.c.l.b16 %v75
    %v289 = vunpack.c.h.b16 %v75
    %v290 = vunpack.c.l.b16 %v76
    %v291 = vunpack.c.h.b16 %v76
    %v292 = vunpack.c.l.b16 %v77
    %v293 = vunpack.c.h.b16 %v77
    %v294 = vunpack.c.l.b16 %v78
    %v295 = vunpack.c.h.b16 %v78
    %v296 = vunpack.c.l.b16 %v79
    %v297 = vunpack.c.h.b16 %v79
    %v298 = vunpack.c.l.b16 %v80
    %v299 = vunpack.c.h.b16 %v80
    %v300 = vunpack.c.l.b16 %v81
    %v301 = vunpack.c.h.b16 %v81
    %v302 = vunpack.c.l.b16 %v82
    %v303 = vunpack.c.h.b16 %v82
    %v304 = vunpack.c.l.b16 %v83
    %v305 = vunpack.c.h.b16 %v83
    %v306 = vunpack.c.l.b16 %v84
    %v307 = vunpack.c.h.b16 %v84
    %v308 = vunpack.c.l.b16 %v85
    %v309 = vunpack.c.h.b16 %v85
    %v310 = vunpack.c.l.b16 %v86
    %v311 = vunpack.c.h.b16 %v86
    %v312 = vunpack.c.l.b16 %v87
    %v313 = vunpack.c.h.b16 %v87
    %v314 = vunpack.c.l.b16 %v88
    %v315 = vunpack.c.h.b16 %v88
    %v316 = vunpack.c.l.b16 %v89
    %v317 = vunpack.c.h.b16 %v89
    %v318 = vunpack.c.l.b16 %v90
    %v319 = vunpack.c.h.b16 %v90
    %v320 = vunpack.c.l.b16 %v91
    %v321 = vunpack.c.h.b16 %v91
    %v322 = vunpack.c.l.b16 %v92
    %v323 = vunpack.c.h.b16 %v92
    %v324 = vunpack.c.l.b16 %v93
    %v325 = vunpack.c.h.b16 %v93
    %v326 = vunpack.c.l.b16 %v94
    %v327 = vunpack.c.h.b16 %v94
    %v328 = vunpack.c.l.b16 %v95
    %v329 = vunpack.c.h.b16 %v95
    %v330 = vpack.c.b16 %v210, %v202
    %v331 = vpack.c.b16 %v211, %v203
    %v332 = vpack.c.b16 %v212, %v204
    %v333 = vpack.c.b16 %v213, %v205
    %v334 = vpack.c.b16 %v214, %v206
    %v335 = vpack.c.b16 %v215, %v207
    %v336 = vpack.c.b16 %v216, %v208
    %v337 = vpack.c.b16 %v217, %v209
    %v338 = vpack.c.b16 %v226, %v218
    %v339 = vpack.c.b16 %v227, %v219
    %v340 = vpack.c.b16 %v228, %v220
    %v341 = vpack.c.b16 %v229, %v221
    %v342 = vpack.c.b16 %v230, %v222
    %v343 = vpack.c.b16 %v231, %v223
    %v344 = vpack.c.b16 %v232, %v224
    %v345 = vpack.c.b16 %v233, %v225
    %v346 = vpack.c.b16 %v242, %v234
    %v347 = vpack.c.b16 %v243, %v235
    %v348 = vpack.c.b16 %v244, %v236
    %v349 = vpack.c.b16 %v245, %v237
    %v350 = vpack.c.b16 %v246, %v238
    %v351 = vpack.c.b16 %v247, %v239
    %v352 = vpack.c.b16 %v248, %v240
    %v353 = vpack.c.b16 %v249, %v241
    %v354 = vpack.c.b16 %v258, %v250
    %v355 = vpack.c.b16 %v259, %v251
    %v356 = vpack.c.b16 %v260, %v252
    %v357 = vpack.c.b16 %v261, %v253
    %v358 = vpack.c.b16 %v262, %v254
    %v359 = vpack.c.b16 %v263, %v255
    %v360 = vpack.c.b16 %v264, %v256
    %v361 = vpack.c.b16 %v265, %v257
    %v362 = vpack.c.b16 %v274, %v266
    %v363 = vpack.c.b16 %v275, %v267
    %v364 = vpack.c.b16 %v276, %v268
    %v365 = vpack.c.b16 %v277, %v269
    %v366 = vpack.c.b16 %v278, %v270
    %v367 = vpack.c.b16 %v279, %v271
    %v368 = vpack.c.b16 %v280, %v272
    %v369 = vpack.c.b16 %v281, %v273
    %v370 = vpack.c.b16 %v290, %v282
    %v371 = vpack.c.b16 %v291, %v283
    %v372 = vpack.c.b16 %v292, %v284
    %v373 = vpack.c.b16 %v293, %v285
    %v374 = vpack.c.b16 %v294, %v286
    %v375 = vpack.c.b16 %v295, %v287
    %v376 = vpack.c.b16 %v296, %v288
    %v377 = vpack.c.b16 %v297, %v289
    %v378 = vpack.c.b16 %v306, %v298
    %v379 = vpack.c.b16 %v307, %v299
    %v380 = vpack.c.b16 %v308, %v300
    %v381 = vpack.c.b16 %v309, %v301
    %v382 = vpack.c.b16 %v310, %v302
    %v383 = vpack.c.b16 %v311, %v303
    %v384 = vpack.c.b16 %v312, %v304
    %v385 = vpack.c.b16 %v313, %v305
    %v386 = vpack.c.b16 %v322, %v314
    %v387 = vpack.c.b16 %v323, %v315
    %v388 = vpack.c.b16 %v324, %v316
    %v389 = vpack.c.b16 %v325, %v317
    %v390 = vpack.c.b16 %v326, %v318
    %v391 = vpack.c.b16 %v327, %v319
    %v392 = vpack.c.b16 %v328, %v320
    %v393 = vpack.c.b16 %v329, %v321
    %458 = vmatprep.subr.bf16.mxu0 %v387
    %459 = vmatpush1.bf16.msra.mxu0 %v386
    %460 = vmatprep.subr.bf16.mxu0 %v379
    %461 = vmatpush1.bf16.msra.mxu0 %v378
    %462 = vmatprep.subr.bf16.mxu0 %v371
    %463 = vmatpush1.bf16.msra.mxu0 %v370
    %464 = vmatprep.subr.bf16.mxu0 %v363
    %465 = vmatpush1.bf16.msra.mxu0 %v362
    %466 = vmatprep.subr.bf16.mxu0 %v355
    %467 = vmatpush1.bf16.msra.mxu0 %v354
    %468 = vmatprep.subr.bf16.mxu0 %v347
    %469 = vmatpush1.bf16.msra.mxu0 %v346
    %470 = vmatprep.subr.bf16.mxu0 %v339
    %471 = vmatpush1.bf16.msra.mxu0 %v338
    %472 = vmatprep.subr.bf16.mxu0 %v331
    %473 = vmatpush1.bf16.msra.mxu0 %v330
    %474 = vmatprep.subr.bf16.mxu0 0
    %475 = vmatpush2.bf16.msra.mxu0 0
    %476 = vmatprep.subr.bf16.mxu0 0
    %477 = vmatpush2.bf16.msra.mxu0 0
    %478 = vmatprep.subr.bf16.mxu0 0
    %479 = vmatpush2.bf16.msra.mxu0 0
    %480 = vmatprep.subr.bf16.mxu0 0
    %481 = vmatpush2.bf16.msra.mxu0 0
    %482 = vmatprep.subr.bf16.mxu0 0
    %483 = vmatpush2.bf16.msra.mxu0 0
    %484 = vmatprep.subr.bf16.mxu0 0
    %485 = vmatpush2.bf16.msra.mxu0 0
    %486 = vmatprep.subr.bf16.mxu0 0
    %487 = vmatpush2.bf16.msra.mxu0 0
    %488 = vmatprep.subr.bf16.mxu0 0
    %489 = vmatpush2.bf16.msra.mxu0 0
    %490 = vmatprep.mubr.bf16.mxu0 0
    %491 = vmatmul.mubr.bf16.gmra.mxu0 %v31
    %v492 = vpop.f32.mrf.mxu0
    %v493 = vadd.f32 %v101, %v492
    %v494 = vpop.f32.mrf.mxu0
    %v495 = vadd.f32 %v105, %v494
    %v496 = vpop.f32.mrf.mxu0
    %v497 = vpop.f32.mrf.mxu0
    %498 = vdwg.mxu0
    %499 = vmatprep.subr.bf16.mxu0 %v389
    %500 = vmatpush1.bf16.msra.mxu0 %v388
    %501 = vmatprep.subr.bf16.mxu0 %v381
    %502 = vmatpush1.bf16.msra.mxu0 %v380
    %503 = vmatprep.subr.bf16.mxu0 %v373
    %504 = vmatpush1.bf16.msra.mxu0 %v372
    %505 = vmatprep.subr.bf16.mxu0 %v365
    %506 = vmatpush1.bf16.msra.mxu0 %v364
    %507 = vmatprep.subr.bf16.mxu0 %v357
    %508 = vmatpush1.bf16.msra.mxu0 %v356
    %509 = vmatprep.subr.bf16.mxu0 %v349
    %510 = vmatpush1.bf16.msra.mxu0 %v348
    %511 = vmatprep.subr.bf16.mxu0 %v341
    %512 = vmatpush1.bf16.msra.mxu0 %v340
    %513 = vmatprep.subr.bf16.mxu0 %v333
    %514 = vmatpush1.bf16.msra.mxu0 %v332
    %515 = vmatprep.subr.bf16.mxu0 0
    %516 = vmatpush2.bf16.msra.mxu0 0
    %517 = vmatprep.subr.bf16.mxu0 0
    %518 = vmatpush2.bf16.msra.mxu0 0
    %519 = vmatprep.subr.bf16.mxu0 0
    %520 = vmatpush2.bf16.msra.mxu0 0
    %521 = vmatprep.subr.bf16.mxu0 0
    %522 = vmatpush2.bf16.msra.mxu0 0
    %523 = vmatprep.subr.bf16.mxu0 0
    %524 = vmatpush2.bf16.msra.mxu0 0
    %525 = vmatprep.subr.bf16.mxu0 0
    %526 = vmatpush2.bf16.msra.mxu0 0
    %527 = vmatprep.subr.bf16.mxu0 0
    %528 = vmatpush2.bf16.msra.mxu0 0
    %529 = vmatprep.subr.bf16.mxu0 0
    %530 = vmatpush2.bf16.msra.mxu0 0
    %531 = vmatprep.mubr.bf16.mxu0 0
    %532 = vmatmul.mubr.bf16.gmra.mxu0 %v31
    %v533 = vpop.f32.mrf.mxu0
    %v534 = vadd.f32 %v109, %v533
    %v535 = vpop.f32.mrf.mxu0
    %v536 = vadd.f32 %v113, %v535
    %v537 = vpop.f32.mrf.mxu0
    %v538 = vpop.f32.mrf.mxu0
    %539 = vdwg.mxu0
    %540 = vmatprep.subr.bf16.mxu0 %v391
    %541 = vmatpush1.bf16.msra.mxu0 %v390
    %542 = vmatprep.subr.bf16.mxu0 %v383
    %543 = vmatpush1.bf16.msra.mxu0 %v382
    %544 = vmatprep.subr.bf16.mxu0 %v375
    %545 = vmatpush1.bf16.msra.mxu0 %v374
    %546 = vmatprep.subr.bf16.mxu0 %v367
    %547 = vmatpush1.bf16.msra.mxu0 %v366
    %548 = vmatprep.subr.bf16.mxu0 %v359
    %549 = vmatpush1.bf16.msra.mxu0 %v358
    %550 = vmatprep.subr.bf16.mxu0 %v351
    %551 = vmatpush1.bf16.msra.mxu0 %v350
    %552 = vmatprep.subr.bf16.mxu0 %v343
    %553 = vmatpush1.bf16.msra.mxu0 %v342
    %554 = vmatprep.subr.bf16.mxu0 %v335
    %555 = vmatpush1.bf16.msra.mxu0 %v334
    %556 = vmatprep.subr.bf16.mxu0 0
    %557 = vmatpush2.bf16.msra.mxu0 0
    %558 = vmatprep.subr.bf16.mxu0 0
    %559 = vmatpush2.bf16.msra.mxu0 0
    %560 = vmatprep.subr.bf16.mxu0 0
    %561 = vmatpush2.bf16.msra.mxu0 0
    %562 = vmatprep.subr.bf16.mxu0 0
    %563 = vmatpush2.bf16.msra.mxu0 0
    %564 = vmatprep.subr.bf16.mxu0 0
    %565 = vmatpush2.bf16.msra.mxu0 0
    %566 = vmatprep.subr.bf16.mxu0 0
    %567 = vmatpush2.bf16.msra.mxu0 0
    %568 = vmatprep.subr.bf16.mxu0 0
    %569 = vmatpush2.bf16.msra.mxu0 0
    %570 = vmatprep.subr.bf16.mxu0 0
    %571 = vmatpush2.bf16.msra.mxu0 0
    %572 = vmatprep.mubr.bf16.mxu0 0
    %573 = vmatmul.mubr.bf16.gmra.mxu0 %v31
    %v574 = vpop.f32.mrf.mxu0
    %v575 = vadd.f32 %v117, %v574
    %v576 = vpop.f32.mrf.mxu0
    %v577 = vadd.f32 %v121, %v576
    %v578 = vpop.f32.mrf.mxu0
    %v579 = vpop.f32.mrf.mxu0
    %580 = vdwg.mxu0
    %581 = vmatprep.subr.bf16.mxu0 %v393
    %582 = vmatpush1.bf16.msra.mxu0 %v392
    %583 = vmatprep.subr.bf16.mxu0 %v385
    %584 = vmatpush1.bf16.msra.mxu0 %v384
    %585 = vmatprep.subr.bf16.mxu0 %v377
    %586 = vmatpush1.bf16.msra.mxu0 %v376
    %587 = vmatprep.subr.bf16.mxu0 %v369
    %588 = vmatpush1.bf16.msra.mxu0 %v368
    %589 = vmatprep.subr.bf16.mxu0 %v361
    %590 = vmatpush1.bf16.msra.mxu0 %v360
    %591 = vmatprep.subr.bf16.mxu0 %v353
    %592 = vmatpush1.bf16.msra.mxu0 %v352
    %593 = vmatprep.subr.bf16.mxu0 %v345
    %594 = vmatpush1.bf16.msra.mxu0 %v344
    %595 = vmatprep.subr.bf16.mxu0 %v337
    %596 = vmatpush1.bf16.msra.mxu0 %v336
    %597 = vmatprep.subr.bf16.mxu0 0
    %598 = vmatpush2.bf16.msra.mxu0 0
    %599 = vmatprep.subr.bf16.mxu0 0
    %600 = vmatpush2.bf16.msra.mxu0 0
    %601 = vmatprep.subr.bf16.mxu0 0
    %602 = vmatpush2.bf16.msra.mxu0 0
    %603 = vmatprep.subr.bf16.mxu0 0
    %604 = vmatpush2.bf16.msra.mxu0 0
    %605 = vmatprep.subr.bf16.mxu0 0
    %606 = vmatpush2.bf16.msra.mxu0 0
    %607 = vmatprep.subr.bf16.mxu0 0
    %608 = vmatpush2.bf16.msra.mxu0 0
    %609 = vmatprep.subr.bf16.mxu0 0
    %610 = vmatpush2.bf16.msra.mxu0 0
    %611 = vmatprep.subr.bf16.mxu0 0
    %612 = vmatpush2.bf16.msra.mxu0 0
    %613 = vmatprep.mubr.bf16.mxu0 0
    %614 = vmatmul.mubr.bf16.gmra.mxu0 %v31
    %v615 = vpop.f32.mrf.mxu0
    %v616 = vadd.f32 %v125, %v615
    %v617 = vpop.f32.mrf.mxu0
    %v618 = vadd.f32 %v129, %v617
    %v619 = vpop.f32.mrf.mxu0
    %v620 = vpop.f32.mrf.mxu0
    %621 = vdwg.mxu0
    %v622 = vmax.f32 %v493, 0.0
    %v623 = vmax.f32 %v495, 0.0
    %v624 = vmax.f32 %v534, 0.0
    %v625 = vmax.f32 %v536, 0.0
    %v626 = vmax.f32 %v575, 0.0
    %v627 = vmax.f32 %v577, 0.0
    %v628 = vmax.f32 %v616, 0.0
    %v629 = vmax.f32 %v618, 0.0
    %v630 = vpack.c.bf16 %v622, %v622
    %v631 = vpack.c.bf16 %v623, %v623
    %v632 = vpack.c.bf16 %v624, %v624
    %v633 = vpack.c.bf16 %v625, %v625
    %v634 = vpack.c.bf16 %v626, %v626
    %v635 = vpack.c.bf16 %v627, %v627
    %v636 = vpack.c.bf16 %v628, %v628
    %v637 = vpack.c.bf16 %v629, %v629
    %v638 = vld [vmem:[%s3] sm:$0xff]
    %v639 = vld [vmem:[%s3 + $0x8] sm:$0xff]
    %v640 = vld [vmem:[%s3 + $0x10] sm:$0xff]
    %v641 = vld [vmem:[%s3 + $0x18] sm:$0xff]
    %v642 = vld [vmem:[%s3 + $0x20] sm:$0xff]
    %v643 = vld [vmem:[%s3 + $0x28] sm:$0xff]
    %v644 = vld [vmem:[%s3 + $0x30] sm:$0xff]
    %v645 = vld [vmem:[%s3 + $0x38] sm:$0xff]
    %v646 = vld [vmem:[%s3 + $0x40] sm:$0xff]
    %v647 = vld [vmem:[%s3 + $0x48] sm:$0xff]
    %v648 = vld [vmem:[%s3 + $0x50] sm:$0xff]
    %v649 = vld [vmem:[%s3 + $0x58] sm:$0xff]
    %v650 = vld [vmem:[%s3 + $0x60] sm:$0xff]
    %v651 = vld [vmem:[%s3 + $0x68] sm:$0xff]
    %v652 = vld [vmem:[%s3 + $0x70] sm:$0xff]
    %v653 = vld [vmem:[%s3 + $0x78] sm:$0xff]
    %v654 = vld [vmem:[%s3 + $0x80] sm:$0xff]
    %v655 = vld [vmem:[%s3 + $0x88] sm:$0xff]
    %v656 = vld [vmem:[%s3 + $0x90] sm:$0xff]
    %v657 = vld [vmem:[%s3 + $0x98] sm:$0xff]
    %v658 = vld [vmem:[%s3 + $0xa0] sm:$0xff]
    %v659 = vld [vmem:[%s3 + $0xa8] sm:$0xff]
    %v660 = vld [vmem:[%s3 + $0xb0] sm:$0xff]
    %v661 = vld [vmem:[%s3 + $0xb8] sm:$0xff]
    %v662 = vld [vmem:[%s3 + $0xc0] sm:$0xff]
    %v663 = vld [vmem:[%s3 + $0xc8] sm:$0xff]
    %v664 = vld [vmem:[%s3 + $0xd0] sm:$0xff]
    %v665 = vld [vmem:[%s3 + $0xd8] sm:$0xff]
    %v666 = vld [vmem:[%s3 + $0xe0] sm:$0xff]
    %v667 = vld [vmem:[%s3 + $0xe8] sm:$0xff]
    %v668 = vld [vmem:[%s3 + $0xf0] sm:$0xff]
    %v669 = vld [vmem:[%s3 + $0xf8] sm:$0xff]
    %v670 = vld [vmem:[%s3 + $0x100] sm:$0xff]
    %v671 = vld [vmem:[%s3 + $0x108] sm:$0xff]
    %v672 = vld [vmem:[%s3 + $0x110] sm:$0xff]
    %v673 = vld [vmem:[%s3 + $0x118] sm:$0xff]
    %v674 = vld [vmem:[%s3 + $0x120] sm:$0xff]
    %v675 = vld [vmem:[%s3 + $0x128] sm:$0xff]
    %v676 = vld [vmem:[%s3 + $0x130] sm:$0xff]
    %v677 = vld [vmem:[%s3 + $0x138] sm:$0xff]
    %v678 = vld [vmem:[%s3 + $0x140] sm:$0xff]
    %v679 = vld [vmem:[%s3 + $0x148] sm:$0xff]
    %v680 = vld [vmem:[%s3 + $0x150] sm:$0xff]
    %v681 = vld [vmem:[%s3 + $0x158] sm:$0xff]
    %v682 = vld [vmem:[%s3 + $0x160] sm:$0xff]
    %v683 = vld [vmem:[%s3 + $0x168] sm:$0xff]
    %v684 = vld [vmem:[%s3 + $0x170] sm:$0xff]
    %v685 = vld [vmem:[%s3 + $0x178] sm:$0xff]
    %v686 = vld [vmem:[%s3 + $0x180] sm:$0xff]
    %v687 = vld [vmem:[%s3 + $0x188] sm:$0xff]
    %v688 = vld [vmem:[%s3 + $0x190] sm:$0xff]
    %v689 = vld [vmem:[%s3 + $0x198] sm:$0xff]
    %v690 = vld [vmem:[%s3 + $0x1a0] sm:$0xff]
    %v691 = vld [vmem:[%s3 + $0x1a8] sm:$0xff]
    %v692 = vld [vmem:[%s3 + $0x1b0] sm:$0xff]
    %v693 = vld [vmem:[%s3 + $0x1b8] sm:$0xff]
    %v694 = vld [vmem:[%s3 + $0x1c0] sm:$0xff]
    %v695 = vld [vmem:[%s3 + $0x1c8] sm:$0xff]
    %v696 = vld [vmem:[%s3 + $0x1d0] sm:$0xff]
    %v697 = vld [vmem:[%s3 + $0x1d8] sm:$0xff]
    %v698 = vld [vmem:[%s3 + $0x1e0] sm:$0xff]
    %v699 = vld [vmem:[%s3 + $0x1e8] sm:$0xff]
    %v700 = vld [vmem:[%s3 + $0x1f0] sm:$0xff]
    %v701 = vld [vmem:[%s3 + $0x1f8] sm:$0xff]
    %v702 = vld [vmem:[%s3 + $0x200] sm:$0xff]
    %v703 = vld [vmem:[%s3 + $0x208] sm:$0xff]
    %v704 = vld [vmem:[%s3 + $0x210] sm:$0xff]
    %v705 = vld [vmem:[%s3 + $0x218] sm:$0xff]
    %v706 = vld [vmem:[%s3 + $0x220] sm:$0xff]
    %v707 = vld [vmem:[%s3 + $0x228] sm:$0xff]
    %v708 = vld [vmem:[%s3 + $0x230] sm:$0xff]
    %v709 = vld [vmem:[%s3 + $0x238] sm:$0xff]
    %v710 = vld [vmem:[%s3 + $0x240] sm:$0xff]
    %v711 = vld [vmem:[%s3 + $0x248] sm:$0xff]
    %v712 = vld [vmem:[%s3 + $0x250] sm:$0xff]
    %v713 = vld [vmem:[%s3 + $0x258] sm:$0xff]
    %v714 = vld [vmem:[%s3 + $0x260] sm:$0xff]
    %v715 = vld [vmem:[%s3 + $0x268] sm:$0xff]
    %v716 = vld [vmem:[%s3 + $0x270] sm:$0xff]
    %v717 = vld [vmem:[%s3 + $0x278] sm:$0xff]
    %v718 = vld [vmem:[%s3 + $0x280] sm:$0xff]
    %v719 = vld [vmem:[%s3 + $0x288] sm:$0xff]
    %v720 = vld [vmem:[%s3 + $0x290] sm:$0xff]
    %v721 = vld [vmem:[%s3 + $0x298] sm:$0xff]
    %v722 = vld [vmem:[%s3 + $0x2a0] sm:$0xff]
    %v723 = vld [vmem:[%s3 + $0x2a8] sm:$0xff]
    %v724 = vld [vmem:[%s3 + $0x2b0] sm:$0xff]
    %v725 = vld [vmem:[%s3 + $0x2b8] sm:$0xff]
    %v726 = vld [vmem:[%s3 + $0x2c0] sm:$0xff]
    %v727 = vld [vmem:[%s3 + $0x2c8] sm:$0xff]
    %v728 = vld [vmem:[%s3 + $0x2d0] sm:$0xff]
    %v729 = vld [vmem:[%s3 + $0x2d8] sm:$0xff]
    %v730 = vld [vmem:[%s3 + $0x2e0] sm:$0xff]
    %v731 = vld [vmem:[%s3 + $0x2e8] sm:$0xff]
    %v732 = vld [vmem:[%s3 + $0x2f0] sm:$0xff]
    %v733 = vld [vmem:[%s3 + $0x2f8] sm:$0xff]
    %v734 = vld [vmem:[%s3 + $0x300] sm:$0xff]
    %v735 = vld [vmem:[%s3 + $0x308] sm:$0xff]
    %v736 = vld [vmem:[%s3 + $0x310] sm:$0xff]
    %v737 = vld [vmem:[%s3 + $0x318] sm:$0xff]
    %v738 = vld [vmem:[%s3 + $0x320] sm:$0xff]
    %v739 = vld [vmem:[%s3 + $0x328] sm:$0xff]
    %v740 = vld [vmem:[%s3 + $0x330] sm:$0xff]
    %v741 = vld [vmem:[%s3 + $0x338] sm:$0xff]
    %v742 = vld [vmem:[%s3 + $0x340] sm:$0xff]
    %v743 = vld [vmem:[%s3 + $0x348] sm:$0xff]
    %v744 = vld [vmem:[%s3 + $0x350] sm:$0xff]
    %v745 = vld [vmem:[%s3 + $0x358] sm:$0xff]
    %v746 = vld [vmem:[%s3 + $0x360] sm:$0xff]
    %v747 = vld [vmem:[%s3 + $0x368] sm:$0xff]
    %v748 = vld [vmem:[%s3 + $0x370] sm:$0xff]
    %v749 = vld [vmem:[%s3 + $0x378] sm:$0xff]
    %v750 = vld [vmem:[%s3 + $0x380] sm:$0xff]
    %v751 = vld [vmem:[%s3 + $0x388] sm:$0xff]
    %v752 = vld [vmem:[%s3 + $0x390] sm:$0xff]
    %v753 = vld [vmem:[%s3 + $0x398] sm:$0xff]
    %v754 = vld [vmem:[%s3 + $0x3a0] sm:$0xff]
    %v755 = vld [vmem:[%s3 + $0x3a8] sm:$0xff]
    %v756 = vld [vmem:[%s3 + $0x3b0] sm:$0xff]
    %v757 = vld [vmem:[%s3 + $0x3b8] sm:$0xff]
    %v758 = vld [vmem:[%s3 + $0x3c0] sm:$0xff]
    %v759 = vld [vmem:[%s3 + $0x3c8] sm:$0xff]
    %v760 = vld [vmem:[%s3 + $0x3d0] sm:$0xff]
    %v761 = vld [vmem:[%s3 + $0x3d8] sm:$0xff]
    %v762 = vld [vmem:[%s3 + $0x3e0] sm:$0xff]
    %v763 = vld [vmem:[%s3 + $0x3e8] sm:$0xff]
    %v764 = vld [vmem:[%s3 + $0x3f0] sm:$0xff]
    %v765 = vld [vmem:[%s3 + $0x3f8] sm:$0xff]
    %v766 = vld [vmem:[%s3 + $0x400] sm:$0xff]
    %v767 = vld [vmem:[%s3 + $0x408] sm:$0xff]
    %v768 = vld [vmem:[%s3 + $0x410] sm:$0xff]
    %v769 = vld [vmem:[%s3 + $0x418] sm:$0xff]
    %v770 = vld [vmem:[%s3 + $0x420] sm:$0xff]
    %v771 = vld [vmem:[%s3 + $0x428] sm:$0xff]
    %v772 = vld [vmem:[%s3 + $0x430] sm:$0xff]
    %v773 = vld [vmem:[%s3 + $0x438] sm:$0xff]
    %v774 = vld [vmem:[%s3 + $0x440] sm:$0xff]
    %v775 = vld [vmem:[%s3 + $0x448] sm:$0xff]
    %v776 = vld [vmem:[%s3 + $0x450] sm:$0xff]
    %v777 = vld [vmem:[%s3 + $0x458] sm:$0xff]
    %v778 = vld [vmem:[%s3 + $0x460] sm:$0xff]
    %v779 = vld [vmem:[%s3 + $0x468] sm:$0xff]
    %v780 = vld [vmem:[%s3 + $0x470] sm:$0xff]
    %v781 = vld [vmem:[%s3 + $0x478] sm:$0xff]
    %v782 = vld [vmem:[%s3 + $0x480] sm:$0xff]
    %v783 = vld [vmem:[%s3 + $0x488] sm:$0xff]
    %v784 = vld [vmem:[%s3 + $0x490] sm:$0xff]
    %v785 = vld [vmem:[%s3 + $0x498] sm:$0xff]
    %v786 = vld [vmem:[%s3 + $0x4a0] sm:$0xff]
    %v787 = vld [vmem:[%s3 + $0x4a8] sm:$0xff]
    %v788 = vld [vmem:[%s3 + $0x4b0] sm:$0xff]
    %v789 = vld [vmem:[%s3 + $0x4b8] sm:$0xff]
    %v790 = vld [vmem:[%s3 + $0x4c0] sm:$0xff]
    %v791 = vld [vmem:[%s3 + $0x4c8] sm:$0xff]
    %v792 = vld [vmem:[%s3 + $0x4d0] sm:$0xff]
    %v793 = vld [vmem:[%s3 + $0x4d8] sm:$0xff]
    %v794 = vld [vmem:[%s3 + $0x4e0] sm:$0xff]
    %v795 = vld [vmem:[%s3 + $0x4e8] sm:$0xff]
    %v796 = vld [vmem:[%s3 + $0x4f0] sm:$0xff]
    %v797 = vld [vmem:[%s3 + $0x4f8] sm:$0xff]
    %v798 = vld [vmem:[%s3 + $0x500] sm:$0xff]
    %v799 = vld [vmem:[%s3 + $0x508] sm:$0xff]
    %v800 = vld [vmem:[%s3 + $0x510] sm:$0xff]
    %v801 = vld [vmem:[%s3 + $0x518] sm:$0xff]
    %v802 = vld [vmem:[%s3 + $0x520] sm:$0xff]
    %v803 = vld [vmem:[%s3 + $0x528] sm:$0xff]
    %v804 = vld [vmem:[%s3 + $0x530] sm:$0xff]
    %v805 = vld [vmem:[%s3 + $0x538] sm:$0xff]
    %v806 = vld [vmem:[%s3 + $0x540] sm:$0xff]
    %v807 = vld [vmem:[%s3 + $0x548] sm:$0xff]
    %v808 = vld [vmem:[%s3 + $0x550] sm:$0xff]
    %v809 = vld [vmem:[%s3 + $0x558] sm:$0xff]
    %v810 = vld [vmem:[%s3 + $0x560] sm:$0xff]
    %v811 = vld [vmem:[%s3 + $0x568] sm:$0xff]
    %v812 = vld [vmem:[%s3 + $0x570] sm:$0xff]
    %v813 = vld [vmem:[%s3 + $0x578] sm:$0xff]
    %v814 = vld [vmem:[%s3 + $0x580] sm:$0xff]
    %v815 = vld [vmem:[%s3 + $0x588] sm:$0xff]
    %v816 = vld [vmem:[%s3 + $0x590] sm:$0xff]
    %v817 = vld [vmem:[%s3 + $0x598] sm:$0xff]
    %v818 = vld [vmem:[%s3 + $0x5a0] sm:$0xff]
    %v819 = vld [vmem:[%s3 + $0x5a8] sm:$0xff]
    %v820 = vld [vmem:[%s3 + $0x5b0] sm:$0xff]
    %v821 = vld [vmem:[%s3 + $0x5b8] sm:$0xff]
    %v822 = vld [vmem:[%s3 + $0x5c0] sm:$0xff]
    %v823 = vld [vmem:[%s3 + $0x5c8] sm:$0xff]
    %v824 = vld [vmem:[%s3 + $0x5d0] sm:$0xff]
    %v825 = vld [vmem:[%s3 + $0x5d8] sm:$0xff]
    %v826 = vld [vmem:[%s3 + $0x5e0] sm:$0xff]
    %v827 = vld [vmem:[%s3 + $0x5e8] sm:$0xff]
    %v828 = vld [vmem:[%s3 + $0x5f0] sm:$0xff]
    %v829 = vld [vmem:[%s3 + $0x5f8] sm:$0xff]
    %v830 = vld [vmem:[%s3 + $0x600] sm:$0xff]
    %v831 = vld [vmem:[%s3 + $0x608] sm:$0xff]
    %v832 = vld [vmem:[%s3 + $0x610] sm:$0xff]
    %v833 = vld [vmem:[%s3 + $0x618] sm:$0xff]
    %v834 = vld [vmem:[%s3 + $0x620] sm:$0xff]
    %v835 = vld [vmem:[%s3 + $0x628] sm:$0xff]
    %v836 = vld [vmem:[%s3 + $0x630] sm:$0xff]
    %v837 = vld [vmem:[%s3 + $0x638] sm:$0xff]
    %v838 = vld [vmem:[%s3 + $0x640] sm:$0xff]
    %v839 = vld [vmem:[%s3 + $0x648] sm:$0xff]
    %v840 = vld [vmem:[%s3 + $0x650] sm:$0xff]
    %v841 = vld [vmem:[%s3 + $0x658] sm:$0xff]
    %v842 = vld [vmem:[%s3 + $0x660] sm:$0xff]
    %v843 = vld [vmem:[%s3 + $0x668] sm:$0xff]
    %v844 = vld [vmem:[%s3 + $0x670] sm:$0xff]
    %v845 = vld [vmem:[%s3 + $0x678] sm:$0xff]
    %v846 = vld [vmem:[%s3 + $0x680] sm:$0xff]
    %v847 = vld [vmem:[%s3 + $0x688] sm:$0xff]
    %v848 = vld [vmem:[%s3 + $0x690] sm:$0xff]
    %v849 = vld [vmem:[%s3 + $0x698] sm:$0xff]
    %v850 = vld [vmem:[%s3 + $0x6a0] sm:$0xff]
    %v851 = vld [vmem:[%s3 + $0x6a8] sm:$0xff]
    %v852 = vld [vmem:[%s3 + $0x6b0] sm:$0xff]
    %v853 = vld [vmem:[%s3 + $0x6b8] sm:$0xff]
    %v854 = vld [vmem:[%s3 + $0x6c0] sm:$0xff]
    %v855 = vld [vmem:[%s3 + $0x6c8] sm:$0xff]
    %v856 = vld [vmem:[%s3 + $0x6d0] sm:$0xff]
    %v857 = vld [vmem:[%s3 + $0x6d8] sm:$0xff]
    %v858 = vld [vmem:[%s3 + $0x6e0] sm:$0xff]
    %v859 = vld [vmem:[%s3 + $0x6e8] sm:$0xff]
    %v860 = vld [vmem:[%s3 + $0x6f0] sm:$0xff]
    %v861 = vld [vmem:[%s3 + $0x6f8] sm:$0xff]
    %v862 = vld [vmem:[%s3 + $0x700] sm:$0xff]
    %v863 = vld [vmem:[%s3 + $0x708] sm:$0xff]
    %v864 = vld [vmem:[%s3 + $0x710] sm:$0xff]
    %v865 = vld [vmem:[%s3 + $0x718] sm:$0xff]
    %v866 = vld [vmem:[%s3 + $0x720] sm:$0xff]
    %v867 = vld [vmem:[%s3 + $0x728] sm:$0xff]
    %v868 = vld [vmem:[%s3 + $0x730] sm:$0xff]
    %v869 = vld [vmem:[%s3 + $0x738] sm:$0xff]
    %v870 = vld [vmem:[%s3 + $0x740] sm:$0xff]
    %v871 = vld [vmem:[%s3 + $0x748] sm:$0xff]
    %v872 = vld [vmem:[%s3 + $0x750] sm:$0xff]
    %v873 = vld [vmem:[%s3 + $0x758] sm:$0xff]
    %v874 = vld [vmem:[%s3 + $0x760] sm:$0xff]
    %v875 = vld [vmem:[%s3 + $0x768] sm:$0xff]
    %v876 = vld [vmem:[%s3 + $0x770] sm:$0xff]
    %v877 = vld [vmem:[%s3 + $0x778] sm:$0xff]
    %v878 = vld [vmem:[%s3 + $0x780] sm:$0xff]
    %v879 = vld [vmem:[%s3 + $0x788] sm:$0xff]
    %v880 = vld [vmem:[%s3 + $0x790] sm:$0xff]
    %v881 = vld [vmem:[%s3 + $0x798] sm:$0xff]
    %v882 = vld [vmem:[%s3 + $0x7a0] sm:$0xff]
    %v883 = vld [vmem:[%s3 + $0x7a8] sm:$0xff]
    %v884 = vld [vmem:[%s3 + $0x7b0] sm:$0xff]
    %v885 = vld [vmem:[%s3 + $0x7b8] sm:$0xff]
    %v886 = vld [vmem:[%s3 + $0x7c0] sm:$0xff]
    %v887 = vld [vmem:[%s3 + $0x7c8] sm:$0xff]
    %v888 = vld [vmem:[%s3 + $0x7d0] sm:$0xff]
    %v889 = vld [vmem:[%s3 + $0x7d8] sm:$0xff]
    %v890 = vld [vmem:[%s3 + $0x7e0] sm:$0xff]
    %v891 = vld [vmem:[%s3 + $0x7e8] sm:$0xff]
    %v892 = vld [vmem:[%s3 + $0x7f0] sm:$0xff]
    %v893 = vld [vmem:[%s3 + $0x7f8] sm:$0xff]
    %v894 = vld [vmem:[%s3 + $0x800] sm:$0xff]
    %v895 = vld [vmem:[%s3 + $0x808] sm:$0xff]
    %v896 = vld [vmem:[%s3 + $0x810] sm:$0xff]
    %v897 = vld [vmem:[%s3 + $0x818] sm:$0xff]
    %v898 = vld [vmem:[%s3 + $0x820] sm:$0xff]
    %v899 = vld [vmem:[%s3 + $0x828] sm:$0xff]
    %v900 = vld [vmem:[%s3 + $0x830] sm:$0xff]
    %v901 = vld [vmem:[%s3 + $0x838] sm:$0xff]
    %v902 = vld [vmem:[%s3 + $0x840] sm:$0xff]
    %v903 = vld [vmem:[%s3 + $0x848] sm:$0xff]
    %v904 = vld [vmem:[%s3 + $0x850] sm:$0xff]
    %v905 = vld [vmem:[%s3 + $0x858] sm:$0xff]
    %v906 = vld [vmem:[%s3 + $0x860] sm:$0xff]
    %v907 = vld [vmem:[%s3 + $0x868] sm:$0xff]
    %v908 = vld [vmem:[%s3 + $0x870] sm:$0xff]
    %v909 = vld [vmem:[%s3 + $0x878] sm:$0xff]
    %v910 = vld [vmem:[%s3 + $0x880] sm:$0xff]
    %v911 = vld [vmem:[%s3 + $0x888] sm:$0xff]
    %v912 = vld [vmem:[%s3 + $0x890] sm:$0xff]
    %v913 = vld [vmem:[%s3 + $0x898] sm:$0xff]
    %v914 = vld [vmem:[%s3 + $0x8a0] sm:$0xff]
    %v915 = vld [vmem:[%s3 + $0x8a8] sm:$0xff]
    %v916 = vld [vmem:[%s3 + $0x8b0] sm:$0xff]
    %v917 = vld [vmem:[%s3 + $0x8b8] sm:$0xff]
    %v918 = vld [vmem:[%s3 + $0x8c0] sm:$0xff]
    %v919 = vld [vmem:[%s3 + $0x8c8] sm:$0xff]
    %v920 = vld [vmem:[%s3 + $0x8d0] sm:$0xff]
    %v921 = vld [vmem:[%s3 + $0x8d8] sm:$0xff]
    %v922 = vld [vmem:[%s3 + $0x8e0] sm:$0xff]
    %v923 = vld [vmem:[%s3 + $0x8e8] sm:$0xff]
    %v924 = vld [vmem:[%s3 + $0x8f0] sm:$0xff]
    %v925 = vld [vmem:[%s3 + $0x8f8] sm:$0xff]
    %v926 = vld [vmem:[%s3 + $0x900] sm:$0xff]
    %v927 = vld [vmem:[%s3 + $0x908] sm:$0xff]
    %v928 = vld [vmem:[%s3 + $0x910] sm:$0xff]
    %v929 = vld [vmem:[%s3 + $0x918] sm:$0xff]
    %v930 = vld [vmem:[%s3 + $0x920] sm:$0xff]
    %v931 = vld [vmem:[%s3 + $0x928] sm:$0xff]
    %v932 = vld [vmem:[%s3 + $0x930] sm:$0xff]
    %v933 = vld [vmem:[%s3 + $0x938] sm:$0xff]
    %v934 = vld [vmem:[%s3 + $0x940] sm:$0xff]
    %v935 = vld [vmem:[%s3 + $0x948] sm:$0xff]
    %v936 = vld [vmem:[%s3 + $0x950] sm:$0xff]
    %v937 = vld [vmem:[%s3 + $0x958] sm:$0xff]
    %v938 = vld [vmem:[%s3 + $0x960] sm:$0xff]
    %v939 = vld [vmem:[%s3 + $0x968] sm:$0xff]
    %v940 = vld [vmem:[%s3 + $0x970] sm:$0xff]
    %v941 = vld [vmem:[%s3 + $0x978] sm:$0xff]
    %v942 = vld [vmem:[%s3 + $0x980] sm:$0xff]
    %v943 = vld [vmem:[%s3 + $0x988] sm:$0xff]
    %v944 = vld [vmem:[%s3 + $0x990] sm:$0xff]
    %v945 = vld [vmem:[%s3 + $0x998] sm:$0xff]
    %v946 = vld [vmem:[%s3 + $0x9a0] sm:$0xff]
    %v947 = vld [vmem:[%s3 + $0x9a8] sm:$0xff]
    %v948 = vld [vmem:[%s3 + $0x9b0] sm:$0xff]
    %v949 = vld [vmem:[%s3 + $0x9b8] sm:$0xff]
    %v950 = vld [vmem:[%s3 + $0x9c0] sm:$0xff]
    %v951 = vld [vmem:[%s3 + $0x9c8] sm:$0xff]
    %v952 = vld [vmem:[%s3 + $0x9d0] sm:$0xff]
    %v953 = vld [vmem:[%s3 + $0x9d8] sm:$0xff]
    %v954 = vld [vmem:[%s3 + $0x9e0] sm:$0xff]
    %v955 = vld [vmem:[%s3 + $0x9e8] sm:$0xff]
    %v956 = vld [vmem:[%s3 + $0x9f0] sm:$0xff]
    %v957 = vld [vmem:[%s3 + $0x9f8] sm:$0xff]
    %v958 = vld [vmem:[%s3 + $0xa00] sm:$0xff]
    %v959 = vld [vmem:[%s3 + $0xa08] sm:$0xff]
    %v960 = vld [vmem:[%s3 + $0xa10] sm:$0xff]
    %v961 = vld [vmem:[%s3 + $0xa18] sm:$0xff]
    %v962 = vld [vmem:[%s3 + $0xa20] sm:$0xff]
    %v963 = vld [vmem:[%s3 + $0xa28] sm:$0xff]
    %v964 = vld [vmem:[%s3 + $0xa30] sm:$0xff]
    %v965 = vld [vmem:[%s3 + $0xa38] sm:$0xff]
    %v966 = vld [vmem:[%s3 + $0xa40] sm:$0xff]
    %v967 = vld [vmem:[%s3 + $0xa48] sm:$0xff]
    %v968 = vld [vmem:[%s3 + $0xa50] sm:$0xff]
    %v969 = vld [vmem:[%s3 + $0xa58] sm:$0xff]
    %v970 = vld [vmem:[%s3 + $0xa60] sm:$0xff]
    %v971 = vld [vmem:[%s3 + $0xa68] sm:$0xff]
    %v972 = vld [vmem:[%s3 + $0xa70] sm:$0xff]
    %v973 = vld [vmem:[%s3 + $0xa78] sm:$0xff]
    %v974 = vld [vmem:[%s3 + $0xa80] sm:$0xff]
    %v975 = vld [vmem:[%s3 + $0xa88] sm:$0xff]
    %v976 = vld [vmem:[%s3 + $0xa90] sm:$0xff]
    %v977 = vld [vmem:[%s3 + $0xa98] sm:$0xff]
    %v978 = vld [vmem:[%s3 + $0xaa0] sm:$0xff]
    %v979 = vld [vmem:[%s3 + $0xaa8] sm:$0xff]
    %v980 = vld [vmem:[%s3 + $0xab0] sm:$0xff]
    %v981 = vld [vmem:[%s3 + $0xab8] sm:$0xff]
    %v982 = vld [vmem:[%s3 + $0xac0] sm:$0xff]
    %v983 = vld [vmem:[%s3 + $0xac8] sm:$0xff]
    %v984 = vld [vmem:[%s3 + $0xad0] sm:$0xff]
    %v985 = vld [vmem:[%s3 + $0xad8] sm:$0xff]
    %v986 = vld [vmem:[%s3 + $0xae0] sm:$0xff]
    %v987 = vld [vmem:[%s3 + $0xae8] sm:$0xff]
    %v988 = vld [vmem:[%s3 + $0xaf0] sm:$0xff]
    %v989 = vld [vmem:[%s3 + $0xaf8] sm:$0xff]
    %v990 = vld [vmem:[%s3 + $0xb00] sm:$0xff]
    %v991 = vld [vmem:[%s3 + $0xb08] sm:$0xff]
    %v992 = vld [vmem:[%s3 + $0xb10] sm:$0xff]
    %v993 = vld [vmem:[%s3 + $0xb18] sm:$0xff]
    %v994 = vld [vmem:[%s3 + $0xb20] sm:$0xff]
    %v995 = vld [vmem:[%s3 + $0xb28] sm:$0xff]
    %v996 = vld [vmem:[%s3 + $0xb30] sm:$0xff]
    %v997 = vld [vmem:[%s3 + $0xb38] sm:$0xff]
    %v998 = vld [vmem:[%s3 + $0xb40] sm:$0xff]
    %v999 = vld [vmem:[%s3 + $0xb48] sm:$0xff]
    %v1000 = vld [vmem:[%s3 + $0xb50] sm:$0xff]
    %v1001 = vld [vmem:[%s3 + $0xb58] sm:$0xff]
    %v1002 = vld [vmem:[%s3 + $0xb60] sm:$0xff]
    %v1003 = vld [vmem:[%s3 + $0xb68] sm:$0xff]
    %v1004 = vld [vmem:[%s3 + $0xb70] sm:$0xff]
    %v1005 = vld [vmem:[%s3 + $0xb78] sm:$0xff]
    %v1006 = vld [vmem:[%s3 + $0xb80] sm:$0xff]
    %v1007 = vld [vmem:[%s3 + $0xb88] sm:$0xff]
    %v1008 = vld [vmem:[%s3 + $0xb90] sm:$0xff]
    %v1009 = vld [vmem:[%s3 + $0xb98] sm:$0xff]
    %v1010 = vld [vmem:[%s3 + $0xba0] sm:$0xff]
    %v1011 = vld [vmem:[%s3 + $0xba8] sm:$0xff]
    %v1012 = vld [vmem:[%s3 + $0xbb0] sm:$0xff]
    %v1013 = vld [vmem:[%s3 + $0xbb8] sm:$0xff]
    %v1014 = vld [vmem:[%s3 + $0xbc0] sm:$0xff]
    %v1015 = vld [vmem:[%s3 + $0xbc8] sm:$0xff]
    %v1016 = vld [vmem:[%s3 + $0xbd0] sm:$0xff]
    %v1017 = vld [vmem:[%s3 + $0xbd8] sm:$0xff]
    %v1018 = vld [vmem:[%s3 + $0xbe0] sm:$0xff]
    %v1019 = vld [vmem:[%s3 + $0xbe8] sm:$0xff]
    %v1020 = vld [vmem:[%s3 + $0xbf0] sm:$0xff]
    %v1021 = vld [vmem:[%s3 + $0xbf8] sm:$0xff]
    %v1022 = vld [vmem:[%s3 + $0xc00] sm:$0xff]
    %v1023 = vld [vmem:[%s3 + $0xc08] sm:$0xff]
    %v1024 = vld [vmem:[%s3 + $0xc10] sm:$0xff]
    %v1025 = vld [vmem:[%s3 + $0xc18] sm:$0xff]
    %v1026 = vld [vmem:[%s3 + $0xc20] sm:$0xff]
    %v1027 = vld [vmem:[%s3 + $0xc28] sm:$0xff]
    %v1028 = vld [vmem:[%s3 + $0xc30] sm:$0xff]
    %v1029 = vld [vmem:[%s3 + $0xc38] sm:$0xff]
    %v1030 = vld [vmem:[%s3 + $0xc40] sm:$0xff]
    %v1031 = vld [vmem:[%s3 + $0xc48] sm:$0xff]
    %v1032 = vld [vmem:[%s3 + $0xc50] sm:$0xff]
    %v1033 = vld [vmem:[%s3 + $0xc58] sm:$0xff]
    %v1034 = vld [vmem:[%s3 + $0xc60] sm:$0xff]
    %v1035 = vld [vmem:[%s3 + $0xc68] sm:$0xff]
    %v1036 = vld [vmem:[%s3 + $0xc70] sm:$0xff]
    %v1037 = vld [vmem:[%s3 + $0xc78] sm:$0xff]
    %v1038 = vld [vmem:[%s3 + $0xc80] sm:$0xff]
    %v1039 = vld [vmem:[%s3 + $0xc88] sm:$0xff]
    %v1040 = vld [vmem:[%s3 + $0xc90] sm:$0xff]
    %v1041 = vld [vmem:[%s3 + $0xc98] sm:$0xff]
    %v1042 = vld [vmem:[%s3 + $0xca0] sm:$0xff]
    %v1043 = vld [vmem:[%s3 + $0xca8] sm:$0xff]
    %v1044 = vld [vmem:[%s3 + $0xcb0] sm:$0xff]
    %v1045 = vld [vmem:[%s3 + $0xcb8] sm:$0xff]
    %v1046 = vld [vmem:[%s3 + $0xcc0] sm:$0xff]
    %v1047 = vld [vmem:[%s3 + $0xcc8] sm:$0xff]
    %v1048 = vld [vmem:[%s3 + $0xcd0] sm:$0xff]
    %v1049 = vld [vmem:[%s3 + $0xcd8] sm:$0xff]
    %v1050 = vld [vmem:[%s3 + $0xce0] sm:$0xff]
    %v1051 = vld [vmem:[%s3 + $0xce8] sm:$0xff]
    %v1052 = vld [vmem:[%s3 + $0xcf0] sm:$0xff]
    %v1053 = vld [vmem:[%s3 + $0xcf8] sm:$0xff]
    %v1054 = vld [vmem:[%s3 + $0xd00] sm:$0xff]
    %v1055 = vld [vmem:[%s3 + $0xd08] sm:$0xff]
    %v1056 = vld [vmem:[%s3 + $0xd10] sm:$0xff]
    %v1057 = vld [vmem:[%s3 + $0xd18] sm:$0xff]
    %v1058 = vld [vmem:[%s3 + $0xd20] sm:$0xff]
    %v1059 = vld [vmem:[%s3 + $0xd28] sm:$0xff]
    %v1060 = vld [vmem:[%s3 + $0xd30] sm:$0xff]
    %v1061 = vld [vmem:[%s3 + $0xd38] sm:$0xff]
    %v1062 = vld [vmem:[%s3 + $0xd40] sm:$0xff]
    %v1063 = vld [vmem:[%s3 + $0xd48] sm:$0xff]
    %v1064 = vld [vmem:[%s3 + $0xd50] sm:$0xff]
    %v1065 = vld [vmem:[%s3 + $0xd58] sm:$0xff]
    %v1066 = vld [vmem:[%s3 + $0xd60] sm:$0xff]
    %v1067 = vld [vmem:[%s3 + $0xd68] sm:$0xff]
    %v1068 = vld [vmem:[%s3 + $0xd70] sm:$0xff]
    %v1069 = vld [vmem:[%s3 + $0xd78] sm:$0xff]
    %v1070 = vld [vmem:[%s3 + $0xd80] sm:$0xff]
    %v1071 = vld [vmem:[%s3 + $0xd88] sm:$0xff]
    %v1072 = vld [vmem:[%s3 + $0xd90] sm:$0xff]
    %v1073 = vld [vmem:[%s3 + $0xd98] sm:$0xff]
    %v1074 = vld [vmem:[%s3 + $0xda0] sm:$0xff]
    %v1075 = vld [vmem:[%s3 + $0xda8] sm:$0xff]
    %v1076 = vld [vmem:[%s3 + $0xdb0] sm:$0xff]
    %v1077 = vld [vmem:[%s3 + $0xdb8] sm:$0xff]
    %v1078 = vld [vmem:[%s3 + $0xdc0] sm:$0xff]
    %v1079 = vld [vmem:[%s3 + $0xdc8] sm:$0xff]
    %v1080 = vld [vmem:[%s3 + $0xdd0] sm:$0xff]
    %v1081 = vld [vmem:[%s3 + $0xdd8] sm:$0xff]
    %v1082 = vld [vmem:[%s3 + $0xde0] sm:$0xff]
    %v1083 = vld [vmem:[%s3 + $0xde8] sm:$0xff]
    %v1084 = vld [vmem:[%s3 + $0xdf0] sm:$0xff]
    %v1085 = vld [vmem:[%s3 + $0xdf8] sm:$0xff]
    %v1086 = vld [vmem:[%s3 + $0xe00] sm:$0xff]
    %v1087 = vld [vmem:[%s3 + $0xe08] sm:$0xff]
    %v1088 = vld [vmem:[%s3 + $0xe10] sm:$0xff]
    %v1089 = vld [vmem:[%s3 + $0xe18] sm:$0xff]
    %v1090 = vld [vmem:[%s3 + $0xe20] sm:$0xff]
    %v1091 = vld [vmem:[%s3 + $0xe28] sm:$0xff]
    %v1092 = vld [vmem:[%s3 + $0xe30] sm:$0xff]
    %v1093 = vld [vmem:[%s3 + $0xe38] sm:$0xff]
    %v1094 = vld [vmem:[%s3 + $0xe40] sm:$0xff]
    %v1095 = vld [vmem:[%s3 + $0xe48] sm:$0xff]
    %v1096 = vld [vmem:[%s3 + $0xe50] sm:$0xff]
    %v1097 = vld [vmem:[%s3 + $0xe58] sm:$0xff]
    %v1098 = vld [vmem:[%s3 + $0xe60] sm:$0xff]
    %v1099 = vld [vmem:[%s3 + $0xe68] sm:$0xff]
    %v1100 = vld [vmem:[%s3 + $0xe70] sm:$0xff]
    %v1101 = vld [vmem:[%s3 + $0xe78] sm:$0xff]
    %v1102 = vld [vmem:[%s3 + $0xe80] sm:$0xff]
    %v1103 = vld [vmem:[%s3 + $0xe88] sm:$0xff]
    %v1104 = vld [vmem:[%s3 + $0xe90] sm:$0xff]
    %v1105 = vld [vmem:[%s3 + $0xe98] sm:$0xff]
    %v1106 = vld [vmem:[%s3 + $0xea0] sm:$0xff]
    %v1107 = vld [vmem:[%s3 + $0xea8] sm:$0xff]
    %v1108 = vld [vmem:[%s3 + $0xeb0] sm:$0xff]
    %v1109 = vld [vmem:[%s3 + $0xeb8] sm:$0xff]
    %v1110 = vld [vmem:[%s3 + $0xec0] sm:$0xff]
    %v1111 = vld [vmem:[%s3 + $0xec8] sm:$0xff]
    %v1112 = vld [vmem:[%s3 + $0xed0] sm:$0xff]
    %v1113 = vld [vmem:[%s3 + $0xed8] sm:$0xff]
    %v1114 = vld [vmem:[%s3 + $0xee0] sm:$0xff]
    %v1115 = vld [vmem:[%s3 + $0xee8] sm:$0xff]
    %v1116 = vld [vmem:[%s3 + $0xef0] sm:$0xff]
    %v1117 = vld [vmem:[%s3 + $0xef8] sm:$0xff]
    %v1118 = vld [vmem:[%s3 + $0xf00] sm:$0xff]
    %v1119 = vld [vmem:[%s3 + $0xf08] sm:$0xff]
    %v1120 = vld [vmem:[%s3 + $0xf10] sm:$0xff]
    %v1121 = vld [vmem:[%s3 + $0xf18] sm:$0xff]
    %v1122 = vld [vmem:[%s3 + $0xf20] sm:$0xff]
    %v1123 = vld [vmem:[%s3 + $0xf28] sm:$0xff]
    %v1124 = vld [vmem:[%s3 + $0xf30] sm:$0xff]
    %v1125 = vld [vmem:[%s3 + $0xf38] sm:$0xff]
    %v1126 = vld [vmem:[%s3 + $0xf40] sm:$0xff]
    %v1127 = vld [vmem:[%s3 + $0xf48] sm:$0xff]
    %v1128 = vld [vmem:[%s3 + $0xf50] sm:$0xff]
    %v1129 = vld [vmem:[%s3 + $0xf58] sm:$0xff]
    %v1130 = vld [vmem:[%s3 + $0xf60] sm:$0xff]
    %v1131 = vld [vmem:[%s3 + $0xf68] sm:$0xff]
    %v1132 = vld [vmem:[%s3 + $0xf70] sm:$0xff]
    %v1133 = vld [vmem:[%s3 + $0xf78] sm:$0xff]
    %v1134 = vld [vmem:[%s3 + $0xf80] sm:$0xff]
    %v1135 = vld [vmem:[%s3 + $0xf88] sm:$0xff]
    %v1136 = vld [vmem:[%s3 + $0xf90] sm:$0xff]
    %v1137 = vld [vmem:[%s3 + $0xf98] sm:$0xff]
    %v1138 = vld [vmem:[%s3 + $0xfa0] sm:$0xff]
    %v1139 = vld [vmem:[%s3 + $0xfa8] sm:$0xff]
    %v1140 = vld [vmem:[%s3 + $0xfb0] sm:$0xff]
    %v1141 = vld [vmem:[%s3 + $0xfb8] sm:$0xff]
    %v1142 = vld [vmem:[%s3 + $0xfc0] sm:$0xff]
    %v1143 = vld [vmem:[%s3 + $0xfc8] sm:$0xff]
    %v1144 = vld [vmem:[%s3 + $0xfd0] sm:$0xff]
    %v1145 = vld [vmem:[%s3 + $0xfd8] sm:$0xff]
    %v1146 = vld [vmem:[%s3 + $0xfe0] sm:$0xff]
    %v1147 = vld [vmem:[%s3 + $0xfe8] sm:$0xff]
    %v1148 = vld [vmem:[%s3 + $0xff0] sm:$0xff]
    %v1149 = vld [vmem:[%s3 + $0xff8] sm:$0xff]
    %v1150 = vld [vmem:[%s4] sm:$0xff]
    %v1152 = vlaneseq
    %v1153 = vshrl.u32 %v1152, 7
    %v1154 = vsub.s32 0, %v1153
    %v1155 = vrot.slane %v1150, %v1154
    %v1156 = vlaneseq
    %v1157 = vshrl.u32 %v1156, 7
    %v1158 = vsub.s32 1, %v1157
    %v1159 = vrot.slane %v1150, %v1158
    %v1160 = vlaneseq
    %v1161 = vshrl.u32 %v1160, 7
    %v1162 = vsub.s32 2, %v1161
    %v1163 = vrot.slane %v1150, %v1162
    %v1164 = vlaneseq
    %v1165 = vshrl.u32 %v1164, 7
    %v1166 = vsub.s32 3, %v1165
    %v1167 = vrot.slane %v1150, %v1166
    %v1168 = vlaneseq
    %v1169 = vshrl.u32 %v1168, 7
    %v1170 = vsub.s32 4, %v1169
    %v1171 = vrot.slane %v1150, %v1170
    %v1172 = vlaneseq
    %v1173 = vshrl.u32 %v1172, 7
    %v1174 = vsub.s32 5, %v1173
    %v1175 = vrot.slane %v1150, %v1174
    %v1176 = vlaneseq
    %v1177 = vshrl.u32 %v1176, 7
    %v1178 = vsub.s32 6, %v1177
    %v1179 = vrot.slane %v1150, %v1178
    %v1180 = vlaneseq
    %v1181 = vshrl.u32 %v1180, 7
    %v1182 = vsub.s32 7, %v1181
    %v1183 = vrot.slane %v1150, %v1182
    %v1704 = vunpack.c.l.b16 %v638
    %v1705 = vunpack.c.h.b16 %v638
    %v1706 = vunpack.c.l.b16 %v639
    %v1707 = vunpack.c.h.b16 %v639
    %v1708 = vunpack.c.l.b16 %v640
    %v1709 = vunpack.c.h.b16 %v640
    %v1710 = vunpack.c.l.b16 %v641
    %v1711 = vunpack.c.h.b16 %v641
    %v1712 = vunpack.c.l.b16 %v642
    %v1713 = vunpack.c.h.b16 %v642
    %v1714 = vunpack.c.l.b16 %v643
    %v1715 = vunpack.c.h.b16 %v643
    %v1716 = vunpack.c.l.b16 %v644
    %v1717 = vunpack.c.h.b16 %v644
    %v1718 = vunpack.c.l.b16 %v645
    %v1719 = vunpack.c.h.b16 %v645
    %v1720 = vunpack.c.l.b16 %v646
    %v1721 = vunpack.c.h.b16 %v646
    %v1722 = vunpack.c.l.b16 %v647
    %v1723 = vunpack.c.h.b16 %v647
    %v1724 = vunpack.c.l.b16 %v648
    %v1725 = vunpack.c.h.b16 %v648
    %v1726 = vunpack.c.l.b16 %v649
    %v1727 = vunpack.c.h.b16 %v649
    %v1728 = vunpack.c.l.b16 %v650
    %v1729 = vunpack.c.h.b16 %v650
    %v1730 = vunpack.c.l.b16 %v651
    %v1731 = vunpack.c.h.b16 %v651
    %v1732 = vunpack.c.l.b16 %v652
    %v1733 = vunpack.c.h.b16 %v652
    %v1734 = vunpack.c.l.b16 %v653
    %v1735 = vunpack.c.h.b16 %v653
    %v1736 = vunpack.c.l.b16 %v654
    %v1737 = vunpack.c.h.b16 %v654
    %v1738 = vunpack.c.l.b16 %v655
    %v1739 = vunpack.c.h.b16 %v655
    %v1740 = vunpack.c.l.b16 %v656
    %v1741 = vunpack.c.h.b16 %v656
    %v1742 = vunpack.c.l.b16 %v657
    %v1743 = vunpack.c.h.b16 %v657
    %v1744 = vunpack.c.l.b16 %v658
    %v1745 = vunpack.c.h.b16 %v658
    %v1746 = vunpack.c.l.b16 %v659
    %v1747 = vunpack.c.h.b16 %v659
    %v1748 = vunpack.c.l.b16 %v660
    %v1749 = vunpack.c.h.b16 %v660
    %v1750 = vunpack.c.l.b16 %v661
    %v1751 = vunpack.c.h.b16 %v661
    %v1752 = vunpack.c.l.b16 %v662
    %v1753 = vunpack.c.h.b16 %v662
    %v1754 = vunpack.c.l.b16 %v663
    %v1755 = vunpack.c.h.b16 %v663
    %v1756 = vunpack.c.l.b16 %v664
    %v1757 = vunpack.c.h.b16 %v664
    %v1758 = vunpack.c.l.b16 %v665
    %v1759 = vunpack.c.h.b16 %v665
    %v1760 = vunpack.c.l.b16 %v666
    %v1761 = vunpack.c.h.b16 %v666
    %v1762 = vunpack.c.l.b16 %v667
    %v1763 = vunpack.c.h.b16 %v667
    %v1764 = vunpack.c.l.b16 %v668
    %v1765 = vunpack.c.h.b16 %v668
    %v1766 = vunpack.c.l.b16 %v669
    %v1767 = vunpack.c.h.b16 %v669
    %v1768 = vunpack.c.l.b16 %v670
    %v1769 = vunpack.c.h.b16 %v670
    %v1770 = vunpack.c.l.b16 %v671
    %v1771 = vunpack.c.h.b16 %v671
    %v1772 = vunpack.c.l.b16 %v672
    %v1773 = vunpack.c.h.b16 %v672
    %v1774 = vunpack.c.l.b16 %v673
    %v1775 = vunpack.c.h.b16 %v673
    %v1776 = vunpack.c.l.b16 %v674
    %v1777 = vunpack.c.h.b16 %v674
    %v1778 = vunpack.c.l.b16 %v675
    %v1779 = vunpack.c.h.b16 %v675
    %v1780 = vunpack.c.l.b16 %v676
    %v1781 = vunpack.c.h.b16 %v676
    %v1782 = vunpack.c.l.b16 %v677
    %v1783 = vunpack.c.h.b16 %v677
    %v1784 = vunpack.c.l.b16 %v678
    %v1785 = vunpack.c.h.b16 %v678
    %v1786 = vunpack.c.l.b16 %v679
    %v1787 = vunpack.c.h.b16 %v679
    %v1788 = vunpack.c.l.b16 %v680
    %v1789 = vunpack.c.h.b16 %v680
    %v1790 = vunpack.c.l.b16 %v681
    %v1791 = vunpack.c.h.b16 %v681
    %v1792 = vunpack.c.l.b16 %v682
    %v1793 = vunpack.c.h.b16 %v682
    %v1794 = vunpack.c.l.b16 %v683
    %v1795 = vunpack.c.h.b16 %v683
    %v1796 = vunpack.c.l.b16 %v684
    %v1797 = vunpack.c.h.b16 %v684
    %v1798 = vunpack.c.l.b16 %v685
    %v1799 = vunpack.c.h.b16 %v685
    %v1800 = vunpack.c.l.b16 %v686
    %v1801 = vunpack.c.h.b16 %v686
    %v1802 = vunpack.c.l.b16 %v687
    %v1803 = vunpack.c.h.b16 %v687
    %v1804 = vunpack.c.l.b16 %v688
    %v1805 = vunpack.c.h.b16 %v688
    %v1806 = vunpack.c.l.b16 %v689
    %v1807 = vunpack.c.h.b16 %v689
    %v1808 = vunpack.c.l.b16 %v690
    %v1809 = vunpack.c.h.b16 %v690
    %v1810 = vunpack.c.l.b16 %v691
    %v1811 = vunpack.c.h.b16 %v691
    %v1812 = vunpack.c.l.b16 %v692
    %v1813 = vunpack.c.h.b16 %v692
    %v1814 = vunpack.c.l.b16 %v693
    %v1815 = vunpack.c.h.b16 %v693
    %v1816 = vunpack.c.l.b16 %v694
    %v1817 = vunpack.c.h.b16 %v694
    %v1818 = vunpack.c.l.b16 %v695
    %v1819 = vunpack.c.h.b16 %v695
    %v1820 = vunpack.c.l.b16 %v696
    %v1821 = vunpack.c.h.b16 %v696
    %v1822 = vunpack.c.l.b16 %v697
    %v1823 = vunpack.c.h.b16 %v697
    %v1824 = vunpack.c.l.b16 %v698
    %v1825 = vunpack.c.h.b16 %v698
    %v1826 = vunpack.c.l.b16 %v699
    %v1827 = vunpack.c.h.b16 %v699
    %v1828 = vunpack.c.l.b16 %v700
    %v1829 = vunpack.c.h.b16 %v700
    %v1830 = vunpack.c.l.b16 %v701
    %v1831 = vunpack.c.h.b16 %v701
    %v1832 = vunpack.c.l.b16 %v702
    %v1833 = vunpack.c.h.b16 %v702
    %v1834 = vunpack.c.l.b16 %v703
    %v1835 = vunpack.c.h.b16 %v703
    %v1836 = vunpack.c.l.b16 %v704
    %v1837 = vunpack.c.h.b16 %v704
    %v1838 = vunpack.c.l.b16 %v705
    %v1839 = vunpack.c.h.b16 %v705
    %v1840 = vunpack.c.l.b16 %v706
    %v1841 = vunpack.c.h.b16 %v706
    %v1842 = vunpack.c.l.b16 %v707
    %v1843 = vunpack.c.h.b16 %v707
    %v1844 = vunpack.c.l.b16 %v708
    %v1845 = vunpack.c.h.b16 %v708
    %v1846 = vunpack.c.l.b16 %v709
    %v1847 = vunpack.c.h.b16 %v709
    %v1848 = vunpack.c.l.b16 %v710
    %v1849 = vunpack.c.h.b16 %v710
    %v1850 = vunpack.c.l.b16 %v711
    %v1851 = vunpack.c.h.b16 %v711
    %v1852 = vunpack.c.l.b16 %v712
    %v1853 = vunpack.c.h.b16 %v712
    %v1854 = vunpack.c.l.b16 %v713
    %v1855 = vunpack.c.h.b16 %v713
    %v1856 = vunpack.c.l.b16 %v714
    %v1857 = vunpack.c.h.b16 %v714
    %v1858 = vunpack.c.l.b16 %v715
    %v1859 = vunpack.c.h.b16 %v715
    %v1860 = vunpack.c.l.b16 %v716
    %v1861 = vunpack.c.h.b16 %v716
    %v1862 = vunpack.c.l.b16 %v717
    %v1863 = vunpack.c.h.b16 %v717
    %v1864 = vunpack.c.l.b16 %v718
    %v1865 = vunpack.c.h.b16 %v718
    %v1866 = vunpack.c.l.b16 %v719
    %v1867 = vunpack.c.h.b16 %v719
    %v1868 = vunpack.c.l.b16 %v720
    %v1869 = vunpack.c.h.b16 %v720
    %v1870 = vunpack.c.l.b16 %v721
    %v1871 = vunpack.c.h.b16 %v721
    %v1872 = vunpack.c.l.b16 %v722
    %v1873 = vunpack.c.h.b16 %v722
    %v1874 = vunpack.c.l.b16 %v723
    %v1875 = vunpack.c.h.b16 %v723
    %v1876 = vunpack.c.l.b16 %v724
    %v1877 = vunpack.c.h.b16 %v724
    %v1878 = vunpack.c.l.b16 %v725
    %v1879 = vunpack.c.h.b16 %v725
    %v1880 = vunpack.c.l.b16 %v726
    %v1881 = vunpack.c.h.b16 %v726
    %v1882 = vunpack.c.l.b16 %v727
    %v1883 = vunpack.c.h.b16 %v727
    %v1884 = vunpack.c.l.b16 %v728
    %v1885 = vunpack.c.h.b16 %v728
    %v1886 = vunpack.c.l.b16 %v729
    %v1887 = vunpack.c.h.b16 %v729
    %v1888 = vunpack.c.l.b16 %v730
    %v1889 = vunpack.c.h.b16 %v730
    %v1890 = vunpack.c.l.b16 %v731
    %v1891 = vunpack.c.h.b16 %v731
    %v1892 = vunpack.c.l.b16 %v732
    %v1893 = vunpack.c.h.b16 %v732
    %v1894 = vunpack.c.l.b16 %v733
    %v1895 = vunpack.c.h.b16 %v733
    %v1896 = vunpack.c.l.b16 %v734
    %v1897 = vunpack.c.h.b16 %v734
    %v1898 = vunpack.c.l.b16 %v735
    %v1899 = vunpack.c.h.b16 %v735
    %v1900 = vunpack.c.l.b16 %v736
    %v1901 = vunpack.c.h.b16 %v736
    %v1902 = vunpack.c.l.b16 %v737
    %v1903 = vunpack.c.h.b16 %v737
    %v1904 = vunpack.c.l.b16 %v738
    %v1905 = vunpack.c.h.b16 %v738
    %v1906 = vunpack.c.l.b16 %v739
    %v1907 = vunpack.c.h.b16 %v739
    %v1908 = vunpack.c.l.b16 %v740
    %v1909 = vunpack.c.h.b16 %v740
    %v1910 = vunpack.c.l.b16 %v741
    %v1911 = vunpack.c.h.b16 %v741
    %v1912 = vunpack.c.l.b16 %v742
    %v1913 = vunpack.c.h.b16 %v742
    %v1914 = vunpack.c.l.b16 %v743
    %v1915 = vunpack.c.h.b16 %v743
    %v1916 = vunpack.c.l.b16 %v744
    %v1917 = vunpack.c.h.b16 %v744
    %v1918 = vunpack.c.l.b16 %v745
    %v1919 = vunpack.c.h.b16 %v745
    %v1920 = vunpack.c.l.b16 %v746
    %v1921 = vunpack.c.h.b16 %v746
    %v1922 = vunpack.c.l.b16 %v747
    %v1923 = vunpack.c.h.b16 %v747
    %v1924 = vunpack.c.l.b16 %v748
    %v1925 = vunpack.c.h.b16 %v748
    %v1926 = vunpack.c.l.b16 %v749
    %v1927 = vunpack.c.h.b16 %v749
    %v1928 = vunpack.c.l.b16 %v750
    %v1929 = vunpack.c.h.b16 %v750
    %v1930 = vunpack.c.l.b16 %v751
    %v1931 = vunpack.c.h.b16 %v751
    %v1932 = vunpack.c.l.b16 %v752
    %v1933 = vunpack.c.h.b16 %v752
    %v1934 = vunpack.c.l.b16 %v753
    %v1935 = vunpack.c.h.b16 %v753
    %v1936 = vunpack.c.l.b16 %v754
    %v1937 = vunpack.c.h.b16 %v754
    %v1938 = vunpack.c.l.b16 %v755
    %v1939 = vunpack.c.h.b16 %v755
    %v1940 = vunpack.c.l.b16 %v756
    %v1941 = vunpack.c.h.b16 %v756
    %v1942 = vunpack.c.l.b16 %v757
    %v1943 = vunpack.c.h.b16 %v757
    %v1944 = vunpack.c.l.b16 %v758
    %v1945 = vunpack.c.h.b16 %v758
    %v1946 = vunpack.c.l.b16 %v759
    %v1947 = vunpack.c.h.b16 %v759
    %v1948 = vunpack.c.l.b16 %v760
    %v1949 = vunpack.c.h.b16 %v760
    %v1950 = vunpack.c.l.b16 %v761
    %v1951 = vunpack.c.h.b16 %v761
    %v1952 = vunpack.c.l.b16 %v762
    %v1953 = vunpack.c.h.b16 %v762
    %v1954 = vunpack.c.l.b16 %v763
    %v1955 = vunpack.c.h.b16 %v763
    %v1956 = vunpack.c.l.b16 %v764
    %v1957 = vunpack.c.h.b16 %v764
    %v1958 = vunpack.c.l.b16 %v765
    %v1959 = vunpack.c.h.b16 %v765
    %v1960 = vunpack.c.l.b16 %v766
    %v1961 = vunpack.c.h.b16 %v766
    %v1962 = vunpack.c.l.b16 %v767
    %v1963 = vunpack.c.h.b16 %v767
    %v1964 = vunpack.c.l.b16 %v768
    %v1965 = vunpack.c.h.b16 %v768
    %v1966 = vunpack.c.l.b16 %v769
    %v1967 = vunpack.c.h.b16 %v769
    %v1968 = vunpack.c.l.b16 %v770
    %v1969 = vunpack.c.h.b16 %v770
    %v1970 = vunpack.c.l.b16 %v771
    %v1971 = vunpack.c.h.b16 %v771
    %v1972 = vunpack.c.l.b16 %v772
    %v1973 = vunpack.c.h.b16 %v772
    %v1974 = vunpack.c.l.b16 %v773
    %v1975 = vunpack.c.h.b16 %v773
    %v1976 = vunpack.c.l.b16 %v774
    %v1977 = vunpack.c.h.b16 %v774
    %v1978 = vunpack.c.l.b16 %v775
    %v1979 = vunpack.c.h.b16 %v775
    %v1980 = vunpack.c.l.b16 %v776
    %v1981 = vunpack.c.h.b16 %v776
    %v1982 = vunpack.c.l.b16 %v777
    %v1983 = vunpack.c.h.b16 %v777
    %v1984 = vunpack.c.l.b16 %v778
    %v1985 = vunpack.c.h.b16 %v778
    %v1986 = vunpack.c.l.b16 %v779
    %v1987 = vunpack.c.h.b16 %v779
    %v1988 = vunpack.c.l.b16 %v780
    %v1989 = vunpack.c.h.b16 %v780
    %v1990 = vunpack.c.l.b16 %v781
    %v1991 = vunpack.c.h.b16 %v781
    %v1992 = vunpack.c.l.b16 %v782
    %v1993 = vunpack.c.h.b16 %v782
    %v1994 = vunpack.c.l.b16 %v783
    %v1995 = vunpack.c.h.b16 %v783
    %v1996 = vunpack.c.l.b16 %v784
    %v1997 = vunpack.c.h.b16 %v784
    %v1998 = vunpack.c.l.b16 %v785
    %v1999 = vunpack.c.h.b16 %v785
    %v2000 = vunpack.c.l.b16 %v786
    %v2001 = vunpack.c.h.b16 %v786
    %v2002 = vunpack.c.l.b16 %v787
    %v2003 = vunpack.c.h.b16 %v787
    %v2004 = vunpack.c.l.b16 %v788
    %v2005 = vunpack.c.h.b16 %v788
    %v2006 = vunpack.c.l.b16 %v789
    %v2007 = vunpack.c.h.b16 %v789
    %v2008 = vunpack.c.l.b16 %v790
    %v2009 = vunpack.c.h.b16 %v790
    %v2010 = vunpack.c.l.b16 %v791
    %v2011 = vunpack.c.h.b16 %v791
    %v2012 = vunpack.c.l.b16 %v792
    %v2013 = vunpack.c.h.b16 %v792
    %v2014 = vunpack.c.l.b16 %v793
    %v2015 = vunpack.c.h.b16 %v793
    %v2016 = vunpack.c.l.b16 %v794
    %v2017 = vunpack.c.h.b16 %v794
    %v2018 = vunpack.c.l.b16 %v795
    %v2019 = vunpack.c.h.b16 %v795
    %v2020 = vunpack.c.l.b16 %v796
    %v2021 = vunpack.c.h.b16 %v796
    %v2022 = vunpack.c.l.b16 %v797
    %v2023 = vunpack.c.h.b16 %v797
    %v2024 = vunpack.c.l.b16 %v798
    %v2025 = vunpack.c.h.b16 %v798
    %v2026 = vunpack.c.l.b16 %v799
    %v2027 = vunpack.c.h.b16 %v799
    %v2028 = vunpack.c.l.b16 %v800
    %v2029 = vunpack.c.h.b16 %v800
    %v2030 = vunpack.c.l.b16 %v801
    %v2031 = vunpack.c.h.b16 %v801
    %v2032 = vunpack.c.l.b16 %v802
    %v2033 = vunpack.c.h.b16 %v802
    %v2034 = vunpack.c.l.b16 %v803
    %v2035 = vunpack.c.h.b16 %v803
    %v2036 = vunpack.c.l.b16 %v804
    %v2037 = vunpack.c.h.b16 %v804
    %v2038 = vunpack.c.l.b16 %v805
    %v2039 = vunpack.c.h.b16 %v805
    %v2040 = vunpack.c.l.b16 %v806
    %v2041 = vunpack.c.h.b16 %v806
    %v2042 = vunpack.c.l.b16 %v807
    %v2043 = vunpack.c.h.b16 %v807
    %v2044 = vunpack.c.l.b16 %v808
    %v2045 = vunpack.c.h.b16 %v808
    %v2046 = vunpack.c.l.b16 %v809
    %v2047 = vunpack.c.h.b16 %v809
    %v2048 = vunpack.c.l.b16 %v810
    %v2049 = vunpack.c.h.b16 %v810
    %v2050 = vunpack.c.l.b16 %v811
    %v2051 = vunpack.c.h.b16 %v811
    %v2052 = vunpack.c.l.b16 %v812
    %v2053 = vunpack.c.h.b16 %v812
    %v2054 = vunpack.c.l.b16 %v813
    %v2055 = vunpack.c.h.b16 %v813
    %v2056 = vunpack.c.l.b16 %v814
    %v2057 = vunpack.c.h.b16 %v814
    %v2058 = vunpack.c.l.b16 %v815
    %v2059 = vunpack.c.h.b16 %v815
    %v2060 = vunpack.c.l.b16 %v816
    %v2061 = vunpack.c.h.b16 %v816
    %v2062 = vunpack.c.l.b16 %v817
    %v2063 = vunpack.c.h.b16 %v817
    %v2064 = vunpack.c.l.b16 %v818
    %v2065 = vunpack.c.h.b16 %v818
    %v2066 = vunpack.c.l.b16 %v819
    %v2067 = vunpack.c.h.b16 %v819
    %v2068 = vunpack.c.l.b16 %v820
    %v2069 = vunpack.c.h.b16 %v820
    %v2070 = vunpack.c.l.b16 %v821
    %v2071 = vunpack.c.h.b16 %v821
    %v2072 = vunpack.c.l.b16 %v822
    %v2073 = vunpack.c.h.b16 %v822
    %v2074 = vunpack.c.l.b16 %v823
    %v2075 = vunpack.c.h.b16 %v823
    %v2076 = vunpack.c.l.b16 %v824
    %v2077 = vunpack.c.h.b16 %v824
    %v2078 = vunpack.c.l.b16 %v825
    %v2079 = vunpack.c.h.b16 %v825
    %v2080 = vunpack.c.l.b16 %v826
    %v2081 = vunpack.c.h.b16 %v826
    %v2082 = vunpack.c.l.b16 %v827
    %v2083 = vunpack.c.h.b16 %v827
    %v2084 = vunpack.c.l.b16 %v828
    %v2085 = vunpack.c.h.b16 %v828
    %v2086 = vunpack.c.l.b16 %v829
    %v2087 = vunpack.c.h.b16 %v829
    %v2088 = vunpack.c.l.b16 %v830
    %v2089 = vunpack.c.h.b16 %v830
    %v2090 = vunpack.c.l.b16 %v831
    %v2091 = vunpack.c.h.b16 %v831
    %v2092 = vunpack.c.l.b16 %v832
    %v2093 = vunpack.c.h.b16 %v832
    %v2094 = vunpack.c.l.b16 %v833
    %v2095 = vunpack.c.h.b16 %v833
    %v2096 = vunpack.c.l.b16 %v834
    %v2097 = vunpack.c.h.b16 %v834
    %v2098 = vunpack.c.l.b16 %v835
    %v2099 = vunpack.c.h.b16 %v835
    %v2100 = vunpack.c.l.b16 %v836
    %v2101 = vunpack.c.h.b16 %v836
    %v2102 = vunpack.c.l.b16 %v837
    %v2103 = vunpack.c.h.b16 %v837
    %v2104 = vunpack.c.l.b16 %v838
    %v2105 = vunpack.c.h.b16 %v838
    %v2106 = vunpack.c.l.b16 %v839
    %v2107 = vunpack.c.h.b16 %v839
    %v2108 = vunpack.c.l.b16 %v840
    %v2109 = vunpack.c.h.b16 %v840
    %v2110 = vunpack.c.l.b16 %v841
    %v2111 = vunpack.c.h.b16 %v841
    %v2112 = vunpack.c.l.b16 %v842
    %v2113 = vunpack.c.h.b16 %v842
    %v2114 = vunpack.c.l.b16 %v843
    %v2115 = vunpack.c.h.b16 %v843
    %v2116 = vunpack.c.l.b16 %v844
    %v2117 = vunpack.c.h.b16 %v844
    %v2118 = vunpack.c.l.b16 %v845
    %v2119 = vunpack.c.h.b16 %v845
    %v2120 = vunpack.c.l.b16 %v846
    %v2121 = vunpack.c.h.b16 %v846
    %v2122 = vunpack.c.l.b16 %v847
    %v2123 = vunpack.c.h.b16 %v847
    %v2124 = vunpack.c.l.b16 %v848
    %v2125 = vunpack.c.h.b16 %v848
    %v2126 = vunpack.c.l.b16 %v849
    %v2127 = vunpack.c.h.b16 %v849
    %v2128 = vunpack.c.l.b16 %v850
    %v2129 = vunpack.c.h.b16 %v850
    %v2130 = vunpack.c.l.b16 %v851
    %v2131 = vunpack.c.h.b16 %v851
    %v2132 = vunpack.c.l.b16 %v852
    %v2133 = vunpack.c.h.b16 %v852
    %v2134 = vunpack.c.l.b16 %v853
    %v2135 = vunpack.c.h.b16 %v853
    %v2136 = vunpack.c.l.b16 %v854
    %v2137 = vunpack.c.h.b16 %v854
    %v2138 = vunpack.c.l.b16 %v855
    %v2139 = vunpack.c.h.b16 %v855
    %v2140 = vunpack.c.l.b16 %v856
    %v2141 = vunpack.c.h.b16 %v856
    %v2142 = vunpack.c.l.b16 %v857
    %v2143 = vunpack.c.h.b16 %v857
    %v2144 = vunpack.c.l.b16 %v858
    %v2145 = vunpack.c.h.b16 %v858
    %v2146 = vunpack.c.l.b16 %v859
    %v2147 = vunpack.c.h.b16 %v859
    %v2148 = vunpack.c.l.b16 %v860
    %v2149 = vunpack.c.h.b16 %v860
    %v2150 = vunpack.c.l.b16 %v861
    %v2151 = vunpack.c.h.b16 %v861
    %v2152 = vunpack.c.l.b16 %v862
    %v2153 = vunpack.c.h.b16 %v862
    %v2154 = vunpack.c.l.b16 %v863
    %v2155 = vunpack.c.h.b16 %v863
    %v2156 = vunpack.c.l.b16 %v864
    %v2157 = vunpack.c.h.b16 %v864
    %v2158 = vunpack.c.l.b16 %v865
    %v2159 = vunpack.c.h.b16 %v865
    %v2160 = vunpack.c.l.b16 %v866
    %v2161 = vunpack.c.h.b16 %v866
    %v2162 = vunpack.c.l.b16 %v867
    %v2163 = vunpack.c.h.b16 %v867
    %v2164 = vunpack.c.l.b16 %v868
    %v2165 = vunpack.c.h.b16 %v868
    %v2166 = vunpack.c.l.b16 %v869
    %v2167 = vunpack.c.h.b16 %v869
    %v2168 = vunpack.c.l.b16 %v870
    %v2169 = vunpack.c.h.b16 %v870
    %v2170 = vunpack.c.l.b16 %v871
    %v2171 = vunpack.c.h.b16 %v871
    %v2172 = vunpack.c.l.b16 %v872
    %v2173 = vunpack.c.h.b16 %v872
    %v2174 = vunpack.c.l.b16 %v873
    %v2175 = vunpack.c.h.b16 %v873
    %v2176 = vunpack.c.l.b16 %v874
    %v2177 = vunpack.c.h.b16 %v874
    %v2178 = vunpack.c.l.b16 %v875
    %v2179 = vunpack.c.h.b16 %v875
    %v2180 = vunpack.c.l.b16 %v876
    %v2181 = vunpack.c.h.b16 %v876
    %v2182 = vunpack.c.l.b16 %v877
    %v2183 = vunpack.c.h.b16 %v877
    %v2184 = vunpack.c.l.b16 %v878
    %v2185 = vunpack.c.h.b16 %v878
    %v2186 = vunpack.c.l.b16 %v879
    %v2187 = vunpack.c.h.b16 %v879
    %v2188 = vunpack.c.l.b16 %v880
    %v2189 = vunpack.c.h.b16 %v880
    %v2190 = vunpack.c.l.b16 %v881
    %v2191 = vunpack.c.h.b16 %v881
    %v2192 = vunpack.c.l.b16 %v882
    %v2193 = vunpack.c.h.b16 %v882
    %v2194 = vunpack.c.l.b16 %v883
    %v2195 = vunpack.c.h.b16 %v883
    %v2196 = vunpack.c.l.b16 %v884
    %v2197 = vunpack.c.h.b16 %v884
    %v2198 = vunpack.c.l.b16 %v885
    %v2199 = vunpack.c.h.b16 %v885
    %v2200 = vunpack.c.l.b16 %v886
    %v2201 = vunpack.c.h.b16 %v886
    %v2202 = vunpack.c.l.b16 %v887
    %v2203 = vunpack.c.h.b16 %v887
    %v2204 = vunpack.c.l.b16 %v888
    %v2205 = vunpack.c.h.b16 %v888
    %v2206 = vunpack.c.l.b16 %v889
    %v2207 = vunpack.c.h.b16 %v889
    %v2208 = vunpack.c.l.b16 %v890
    %v2209 = vunpack.c.h.b16 %v890
    %v2210 = vunpack.c.l.b16 %v891
    %v2211 = vunpack.c.h.b16 %v891
    %v2212 = vunpack.c.l.b16 %v892
    %v2213 = vunpack.c.h.b16 %v892
    %v2214 = vunpack.c.l.b16 %v893
    %v2215 = vunpack.c.h.b16 %v893
    %v2216 = vunpack.c.l.b16 %v894
    %v2217 = vunpack.c.h.b16 %v894
    %v2218 = vunpack.c.l.b16 %v895
    %v2219 = vunpack.c.h.b16 %v895
    %v2220 = vunpack.c.l.b16 %v896
    %v2221 = vunpack.c.h.b16 %v896
    %v2222 = vunpack.c.l.b16 %v897
    %v2223 = vunpack.c.h.b16 %v897
    %v2224 = vunpack.c.l.b16 %v898
    %v2225 = vunpack.c.h.b16 %v898
    %v2226 = vunpack.c.l.b16 %v899
    %v2227 = vunpack.c.h.b16 %v899
    %v2228 = vunpack.c.l.b16 %v900
    %v2229 = vunpack.c.h.b16 %v900
    %v2230 = vunpack.c.l.b16 %v901
    %v2231 = vunpack.c.h.b16 %v901
    %v2232 = vunpack.c.l.b16 %v902
    %v2233 = vunpack.c.h.b16 %v902
    %v2234 = vunpack.c.l.b16 %v903
    %v2235 = vunpack.c.h.b16 %v903
    %v2236 = vunpack.c.l.b16 %v904
    %v2237 = vunpack.c.h.b16 %v904
    %v2238 = vunpack.c.l.b16 %v905
    %v2239 = vunpack.c.h.b16 %v905
    %v2240 = vunpack.c.l.b16 %v906
    %v2241 = vunpack.c.h.b16 %v906
    %v2242 = vunpack.c.l.b16 %v907
    %v2243 = vunpack.c.h.b16 %v907
    %v2244 = vunpack.c.l.b16 %v908
    %v2245 = vunpack.c.h.b16 %v908
    %v2246 = vunpack.c.l.b16 %v909
    %v2247 = vunpack.c.h.b16 %v909
    %v2248 = vunpack.c.l.b16 %v910
    %v2249 = vunpack.c.h.b16 %v910
    %v2250 = vunpack.c.l.b16 %v911
    %v2251 = vunpack.c.h.b16 %v911
    %v2252 = vunpack.c.l.b16 %v912
    %v2253 = vunpack.c.h.b16 %v912
    %v2254 = vunpack.c.l.b16 %v913
    %v2255 = vunpack.c.h.b16 %v913
    %v2256 = vunpack.c.l.b16 %v914
    %v2257 = vunpack.c.h.b16 %v914
    %v2258 = vunpack.c.l.b16 %v915
    %v2259 = vunpack.c.h.b16 %v915
    %v2260 = vunpack.c.l.b16 %v916
    %v2261 = vunpack.c.h.b16 %v916
    %v2262 = vunpack.c.l.b16 %v917
    %v2263 = vunpack.c.h.b16 %v917
    %v2264 = vunpack.c.l.b16 %v918
    %v2265 = vunpack.c.h.b16 %v918
    %v2266 = vunpack.c.l.b16 %v919
    %v2267 = vunpack.c.h.b16 %v919
    %v2268 = vunpack.c.l.b16 %v920
    %v2269 = vunpack.c.h.b16 %v920
    %v2270 = vunpack.c.l.b16 %v921
    %v2271 = vunpack.c.h.b16 %v921
    %v2272 = vunpack.c.l.b16 %v922
    %v2273 = vunpack.c.h.b16 %v922
    %v2274 = vunpack.c.l.b16 %v923
    %v2275 = vunpack.c.h.b16 %v923
    %v2276 = vunpack.c.l.b16 %v924
    %v2277 = vunpack.c.h.b16 %v924
    %v2278 = vunpack.c.l.b16 %v925
    %v2279 = vunpack.c.h.b16 %v925
    %v2280 = vunpack.c.l.b16 %v926
    %v2281 = vunpack.c.h.b16 %v926
    %v2282 = vunpack.c.l.b16 %v927
    %v2283 = vunpack.c.h.b16 %v927
    %v2284 = vunpack.c.l.b16 %v928
    %v2285 = vunpack.c.h.b16 %v928
    %v2286 = vunpack.c.l.b16 %v929
    %v2287 = vunpack.c.h.b16 %v929
    %v2288 = vunpack.c.l.b16 %v930
    %v2289 = vunpack.c.h.b16 %v930
    %v2290 = vunpack.c.l.b16 %v931
    %v2291 = vunpack.c.h.b16 %v931
    %v2292 = vunpack.c.l.b16 %v932
    %v2293 = vunpack.c.h.b16 %v932
    %v2294 = vunpack.c.l.b16 %v933
    %v2295 = vunpack.c.h.b16 %v933
    %v2296 = vunpack.c.l.b16 %v934
    %v2297 = vunpack.c.h.b16 %v934
    %v2298 = vunpack.c.l.b16 %v935
    %v2299 = vunpack.c.h.b16 %v935
    %v2300 = vunpack.c.l.b16 %v936
    %v2301 = vunpack.c.h.b16 %v936
    %v2302 = vunpack.c.l.b16 %v937
    %v2303 = vunpack.c.h.b16 %v937
    %v2304 = vunpack.c.l.b16 %v938
    %v2305 = vunpack.c.h.b16 %v938
    %v2306 = vunpack.c.l.b16 %v939
    %v2307 = vunpack.c.h.b16 %v939
    %v2308 = vunpack.c.l.b16 %v940
    %v2309 = vunpack.c.h.b16 %v940
    %v2310 = vunpack.c.l.b16 %v941
    %v2311 = vunpack.c.h.b16 %v941
    %v2312 = vunpack.c.l.b16 %v942
    %v2313 = vunpack.c.h.b16 %v942
    %v2314 = vunpack.c.l.b16 %v943
    %v2315 = vunpack.c.h.b16 %v943
    %v2316 = vunpack.c.l.b16 %v944
    %v2317 = vunpack.c.h.b16 %v944
    %v2318 = vunpack.c.l.b16 %v945
    %v2319 = vunpack.c.h.b16 %v945
    %v2320 = vunpack.c.l.b16 %v946
    %v2321 = vunpack.c.h.b16 %v946
    %v2322 = vunpack.c.l.b16 %v947
    %v2323 = vunpack.c.h.b16 %v947
    %v2324 = vunpack.c.l.b16 %v948
    %v2325 = vunpack.c.h.b16 %v948
    %v2326 = vunpack.c.l.b16 %v949
    %v2327 = vunpack.c.h.b16 %v949
    %v2328 = vunpack.c.l.b16 %v950
    %v2329 = vunpack.c.h.b16 %v950
    %v2330 = vunpack.c.l.b16 %v951
    %v2331 = vunpack.c.h.b16 %v951
    %v2332 = vunpack.c.l.b16 %v952
    %v2333 = vunpack.c.h.b16 %v952
    %v2334 = vunpack.c.l.b16 %v953
    %v2335 = vunpack.c.h.b16 %v953
    %v2336 = vunpack.c.l.b16 %v954
    %v2337 = vunpack.c.h.b16 %v954
    %v2338 = vunpack.c.l.b16 %v955
    %v2339 = vunpack.c.h.b16 %v955
    %v2340 = vunpack.c.l.b16 %v956
    %v2341 = vunpack.c.h.b16 %v956
    %v2342 = vunpack.c.l.b16 %v957
    %v2343 = vunpack.c.h.b16 %v957
    %v2344 = vunpack.c.l.b16 %v958
    %v2345 = vunpack.c.h.b16 %v958
    %v2346 = vunpack.c.l.b16 %v959
    %v2347 = vunpack.c.h.b16 %v959
    %v2348 = vunpack.c.l.b16 %v960
    %v2349 = vunpack.c.h.b16 %v960
    %v2350 = vunpack.c.l.b16 %v961
    %v2351 = vunpack.c.h.b16 %v961
    %v2352 = vunpack.c.l.b16 %v962
    %v2353 = vunpack.c.h.b16 %v962
    %v2354 = vunpack.c.l.b16 %v963
    %v2355 = vunpack.c.h.b16 %v963
    %v2356 = vunpack.c.l.b16 %v964
    %v2357 = vunpack.c.h.b16 %v964
    %v2358 = vunpack.c.l.b16 %v965
    %v2359 = vunpack.c.h.b16 %v965
    %v2360 = vunpack.c.l.b16 %v966
    %v2361 = vunpack.c.h.b16 %v966
    %v2362 = vunpack.c.l.b16 %v967
    %v2363 = vunpack.c.h.b16 %v967
    %v2364 = vunpack.c.l.b16 %v968
    %v2365 = vunpack.c.h.b16 %v968
    %v2366 = vunpack.c.l.b16 %v969
    %v2367 = vunpack.c.h.b16 %v969
    %v2368 = vunpack.c.l.b16 %v970
    %v2369 = vunpack.c.h.b16 %v970
    %v2370 = vunpack.c.l.b16 %v971
    %v2371 = vunpack.c.h.b16 %v971
    %v2372 = vunpack.c.l.b16 %v972
    %v2373 = vunpack.c.h.b16 %v972
    %v2374 = vunpack.c.l.b16 %v973
    %v2375 = vunpack.c.h.b16 %v973
    %v2376 = vunpack.c.l.b16 %v974
    %v2377 = vunpack.c.h.b16 %v974
    %v2378 = vunpack.c.l.b16 %v975
    %v2379 = vunpack.c.h.b16 %v975
    %v2380 = vunpack.c.l.b16 %v976
    %v2381 = vunpack.c.h.b16 %v976
    %v2382 = vunpack.c.l.b16 %v977
    %v2383 = vunpack.c.h.b16 %v977
    %v2384 = vunpack.c.l.b16 %v978
    %v2385 = vunpack.c.h.b16 %v978
    %v2386 = vunpack.c.l.b16 %v979
    %v2387 = vunpack.c.h.b16 %v979
    %v2388 = vunpack.c.l.b16 %v980
    %v2389 = vunpack.c.h.b16 %v980
    %v2390 = vunpack.c.l.b16 %v981
    %v2391 = vunpack.c.h.b16 %v981
    %v2392 = vunpack.c.l.b16 %v982
    %v2393 = vunpack.c.h.b16 %v982
    %v2394 = vunpack.c.l.b16 %v983
    %v2395 = vunpack.c.h.b16 %v983
    %v2396 = vunpack.c.l.b16 %v984
    %v2397 = vunpack.c.h.b16 %v984
    %v2398 = vunpack.c.l.b16 %v985
    %v2399 = vunpack.c.h.b16 %v985
    %v2400 = vunpack.c.l.b16 %v986
    %v2401 = vunpack.c.h.b16 %v986
    %v2402 = vunpack.c.l.b16 %v987
    %v2403 = vunpack.c.h.b16 %v987
    %v2404 = vunpack.c.l.b16 %v988
    %v2405 = vunpack.c.h.b16 %v988
    %v2406 = vunpack.c.l.b16 %v989
    %v2407 = vunpack.c.h.b16 %v989
    %v2408 = vunpack.c.l.b16 %v990
    %v2409 = vunpack.c.h.b16 %v990
    %v2410 = vunpack.c.l.b16 %v991
    %v2411 = vunpack.c.h.b16 %v991
    %v2412 = vunpack.c.l.b16 %v992
    %v2413 = vunpack.c.h.b16 %v992
    %v2414 = vunpack.c.l.b16 %v993
    %v2415 = vunpack.c.h.b16 %v993
    %v2416 = vunpack.c.l.b16 %v994
    %v2417 = vunpack.c.h.b16 %v994
    %v2418 = vunpack.c.l.b16 %v995
    %v2419 = vunpack.c.h.b16 %v995
    %v2420 = vunpack.c.l.b16 %v996
    %v2421 = vunpack.c.h.b16 %v996
    %v2422 = vunpack.c.l.b16 %v997
    %v2423 = vunpack.c.h.b16 %v997
    %v2424 = vunpack.c.l.b16 %v998
    %v2425 = vunpack.c.h.b16 %v998
    %v2426 = vunpack.c.l.b16 %v999
    %v2427 = vunpack.c.h.b16 %v999
    %v2428 = vunpack.c.l.b16 %v1000
    %v2429 = vunpack.c.h.b16 %v1000
    %v2430 = vunpack.c.l.b16 %v1001
    %v2431 = vunpack.c.h.b16 %v1001
    %v2432 = vunpack.c.l.b16 %v1002
    %v2433 = vunpack.c.h.b16 %v1002
    %v2434 = vunpack.c.l.b16 %v1003
    %v2435 = vunpack.c.h.b16 %v1003
    %v2436 = vunpack.c.l.b16 %v1004
    %v2437 = vunpack.c.h.b16 %v1004
    %v2438 = vunpack.c.l.b16 %v1005
    %v2439 = vunpack.c.h.b16 %v1005
    %v2440 = vunpack.c.l.b16 %v1006
    %v2441 = vunpack.c.h.b16 %v1006
    %v2442 = vunpack.c.l.b16 %v1007
    %v2443 = vunpack.c.h.b16 %v1007
    %v2444 = vunpack.c.l.b16 %v1008
    %v2445 = vunpack.c.h.b16 %v1008
    %v2446 = vunpack.c.l.b16 %v1009
    %v2447 = vunpack.c.h.b16 %v1009
    %v2448 = vunpack.c.l.b16 %v1010
    %v2449 = vunpack.c.h.b16 %v1010
    %v2450 = vunpack.c.l.b16 %v1011
    %v2451 = vunpack.c.h.b16 %v1011
    %v2452 = vunpack.c.l.b16 %v1012
    %v2453 = vunpack.c.h.b16 %v1012
    %v2454 = vunpack.c.l.b16 %v1013
    %v2455 = vunpack.c.h.b16 %v1013
    %v2456 = vunpack.c.l.b16 %v1014
    %v2457 = vunpack.c.h.b16 %v1014
    %v2458 = vunpack.c.l.b16 %v1015
    %v2459 = vunpack.c.h.b16 %v1015
    %v2460 = vunpack.c.l.b16 %v1016
    %v2461 = vunpack.c.h.b16 %v1016
    %v2462 = vunpack.c.l.b16 %v1017
    %v2463 = vunpack.c.h.b16 %v1017
    %v2464 = vunpack.c.l.b16 %v1018
    %v2465 = vunpack.c.h.b16 %v1018
    %v2466 = vunpack.c.l.b16 %v1019
    %v2467 = vunpack.c.h.b16 %v1019
    %v2468 = vunpack.c.l.b16 %v1020
    %v2469 = vunpack.c.h.b16 %v1020
    %v2470 = vunpack.c.l.b16 %v1021
    %v2471 = vunpack.c.h.b16 %v1021
    %v2472 = vunpack.c.l.b16 %v1022
    %v2473 = vunpack.c.h.b16 %v1022
    %v2474 = vunpack.c.l.b16 %v1023
    %v2475 = vunpack.c.h.b16 %v1023
    %v2476 = vunpack.c.l.b16 %v1024
    %v2477 = vunpack.c.h.b16 %v1024
    %v2478 = vunpack.c.l.b16 %v1025
    %v2479 = vunpack.c.h.b16 %v1025
    %v2480 = vunpack.c.l.b16 %v1026
    %v2481 = vunpack.c.h.b16 %v1026
    %v2482 = vunpack.c.l.b16 %v1027
    %v2483 = vunpack.c.h.b16 %v1027
    %v2484 = vunpack.c.l.b16 %v1028
    %v2485 = vunpack.c.h.b16 %v1028
    %v2486 = vunpack.c.l.b16 %v1029
    %v2487 = vunpack.c.h.b16 %v1029
    %v2488 = vunpack.c.l.b16 %v1030
    %v2489 = vunpack.c.h.b16 %v1030
    %v2490 = vunpack.c.l.b16 %v1031
    %v2491 = vunpack.c.h.b16 %v1031
    %v2492 = vunpack.c.l.b16 %v1032
    %v2493 = vunpack.c.h.b16 %v1032
    %v2494 = vunpack.c.l.b16 %v1033
    %v2495 = vunpack.c.h.b16 %v1033
    %v2496 = vunpack.c.l.b16 %v1034
    %v2497 = vunpack.c.h.b16 %v1034
    %v2498 = vunpack.c.l.b16 %v1035
    %v2499 = vunpack.c.h.b16 %v1035
    %v2500 = vunpack.c.l.b16 %v1036
    %v2501 = vunpack.c.h.b16 %v1036
    %v2502 = vunpack.c.l.b16 %v1037
    %v2503 = vunpack.c.h.b16 %v1037
    %v2504 = vunpack.c.l.b16 %v1038
    %v2505 = vunpack.c.h.b16 %v1038
    %v2506 = vunpack.c.l.b16 %v1039
    %v2507 = vunpack.c.h.b16 %v1039
    %v2508 = vunpack.c.l.b16 %v1040
    %v2509 = vunpack.c.h.b16 %v1040
    %v2510 = vunpack.c.l.b16 %v1041
    %v2511 = vunpack.c.h.b16 %v1041
    %v2512 = vunpack.c.l.b16 %v1042
    %v2513 = vunpack.c.h.b16 %v1042
    %v2514 = vunpack.c.l.b16 %v1043
    %v2515 = vunpack.c.h.b16 %v1043
    %v2516 = vunpack.c.l.b16 %v1044
    %v2517 = vunpack.c.h.b16 %v1044
    %v2518 = vunpack.c.l.b16 %v1045
    %v2519 = vunpack.c.h.b16 %v1045
    %v2520 = vunpack.c.l.b16 %v1046
    %v2521 = vunpack.c.h.b16 %v1046
    %v2522 = vunpack.c.l.b16 %v1047
    %v2523 = vunpack.c.h.b16 %v1047
    %v2524 = vunpack.c.l.b16 %v1048
    %v2525 = vunpack.c.h.b16 %v1048
    %v2526 = vunpack.c.l.b16 %v1049
    %v2527 = vunpack.c.h.b16 %v1049
    %v2528 = vunpack.c.l.b16 %v1050
    %v2529 = vunpack.c.h.b16 %v1050
    %v2530 = vunpack.c.l.b16 %v1051
    %v2531 = vunpack.c.h.b16 %v1051
    %v2532 = vunpack.c.l.b16 %v1052
    %v2533 = vunpack.c.h.b16 %v1052
    %v2534 = vunpack.c.l.b16 %v1053
    %v2535 = vunpack.c.h.b16 %v1053
    %v2536 = vunpack.c.l.b16 %v1054
    %v2537 = vunpack.c.h.b16 %v1054
    %v2538 = vunpack.c.l.b16 %v1055
    %v2539 = vunpack.c.h.b16 %v1055
    %v2540 = vunpack.c.l.b16 %v1056
    %v2541 = vunpack.c.h.b16 %v1056
    %v2542 = vunpack.c.l.b16 %v1057
    %v2543 = vunpack.c.h.b16 %v1057
    %v2544 = vunpack.c.l.b16 %v1058
    %v2545 = vunpack.c.h.b16 %v1058
    %v2546 = vunpack.c.l.b16 %v1059
    %v2547 = vunpack.c.h.b16 %v1059
    %v2548 = vunpack.c.l.b16 %v1060
    %v2549 = vunpack.c.h.b16 %v1060
    %v2550 = vunpack.c.l.b16 %v1061
    %v2551 = vunpack.c.h.b16 %v1061
    %v2552 = vunpack.c.l.b16 %v1062
    %v2553 = vunpack.c.h.b16 %v1062
    %v2554 = vunpack.c.l.b16 %v1063
    %v2555 = vunpack.c.h.b16 %v1063
    %v2556 = vunpack.c.l.b16 %v1064
    %v2557 = vunpack.c.h.b16 %v1064
    %v2558 = vunpack.c.l.b16 %v1065
    %v2559 = vunpack.c.h.b16 %v1065
    %v2560 = vunpack.c.l.b16 %v1066
    %v2561 = vunpack.c.h.b16 %v1066
    %v2562 = vunpack.c.l.b16 %v1067
    %v2563 = vunpack.c.h.b16 %v1067
    %v2564 = vunpack.c.l.b16 %v1068
    %v2565 = vunpack.c.h.b16 %v1068
    %v2566 = vunpack.c.l.b16 %v1069
    %v2567 = vunpack.c.h.b16 %v1069
    %v2568 = vunpack.c.l.b16 %v1070
    %v2569 = vunpack.c.h.b16 %v1070
    %v2570 = vunpack.c.l.b16 %v1071
    %v2571 = vunpack.c.h.b16 %v1071
    %v2572 = vunpack.c.l.b16 %v1072
    %v2573 = vunpack.c.h.b16 %v1072
    %v2574 = vunpack.c.l.b16 %v1073
    %v2575 = vunpack.c.h.b16 %v1073
    %v2576 = vunpack.c.l.b16 %v1074
    %v2577 = vunpack.c.h.b16 %v1074
    %v2578 = vunpack.c.l.b16 %v1075
    %v2579 = vunpack.c.h.b16 %v1075
    %v2580 = vunpack.c.l.b16 %v1076
    %v2581 = vunpack.c.h.b16 %v1076
    %v2582 = vunpack.c.l.b16 %v1077
    %v2583 = vunpack.c.h.b16 %v1077
    %v2584 = vunpack.c.l.b16 %v1078
    %v2585 = vunpack.c.h.b16 %v1078
    %v2586 = vunpack.c.l.b16 %v1079
    %v2587 = vunpack.c.h.b16 %v1079
    %v2588 = vunpack.c.l.b16 %v1080
    %v2589 = vunpack.c.h.b16 %v1080
    %v2590 = vunpack.c.l.b16 %v1081
    %v2591 = vunpack.c.h.b16 %v1081
    %v2592 = vunpack.c.l.b16 %v1082
    %v2593 = vunpack.c.h.b16 %v1082
    %v2594 = vunpack.c.l.b16 %v1083
    %v2595 = vunpack.c.h.b16 %v1083
    %v2596 = vunpack.c.l.b16 %v1084
    %v2597 = vunpack.c.h.b16 %v1084
    %v2598 = vunpack.c.l.b16 %v1085
    %v2599 = vunpack.c.h.b16 %v1085
    %v2600 = vunpack.c.l.b16 %v1086
    %v2601 = vunpack.c.h.b16 %v1086
    %v2602 = vunpack.c.l.b16 %v1087
    %v2603 = vunpack.c.h.b16 %v1087
    %v2604 = vunpack.c.l.b16 %v1088
    %v2605 = vunpack.c.h.b16 %v1088
    %v2606 = vunpack.c.l.b16 %v1089
    %v2607 = vunpack.c.h.b16 %v1089
    %v2608 = vunpack.c.l.b16 %v1090
    %v2609 = vunpack.c.h.b16 %v1090
    %v2610 = vunpack.c.l.b16 %v1091
    %v2611 = vunpack.c.h.b16 %v1091
    %v2612 = vunpack.c.l.b16 %v1092
    %v2613 = vunpack.c.h.b16 %v1092
    %v2614 = vunpack.c.l.b16 %v1093
    %v2615 = vunpack.c.h.b16 %v1093
    %v2616 = vunpack.c.l.b16 %v1094
    %v2617 = vunpack.c.h.b16 %v1094
    %v2618 = vunpack.c.l.b16 %v1095
    %v2619 = vunpack.c.h.b16 %v1095
    %v2620 = vunpack.c.l.b16 %v1096
    %v2621 = vunpack.c.h.b16 %v1096
    %v2622 = vunpack.c.l.b16 %v1097
    %v2623 = vunpack.c.h.b16 %v1097
    %v2624 = vunpack.c.l.b16 %v1098
    %v2625 = vunpack.c.h.b16 %v1098
    %v2626 = vunpack.c.l.b16 %v1099
    %v2627 = vunpack.c.h.b16 %v1099
    %v2628 = vunpack.c.l.b16 %v1100
    %v2629 = vunpack.c.h.b16 %v1100
    %v2630 = vunpack.c.l.b16 %v1101
    %v2631 = vunpack.c.h.b16 %v1101
    %v2632 = vunpack.c.l.b16 %v1102
    %v2633 = vunpack.c.h.b16 %v1102
    %v2634 = vunpack.c.l.b16 %v1103
    %v2635 = vunpack.c.h.b16 %v1103
    %v2636 = vunpack.c.l.b16 %v1104
    %v2637 = vunpack.c.h.b16 %v1104
    %v2638 = vunpack.c.l.b16 %v1105
    %v2639 = vunpack.c.h.b16 %v1105
    %v2640 = vunpack.c.l.b16 %v1106
    %v2641 = vunpack.c.h.b16 %v1106
    %v2642 = vunpack.c.l.b16 %v1107
    %v2643 = vunpack.c.h.b16 %v1107
    %v2644 = vunpack.c.l.b16 %v1108
    %v2645 = vunpack.c.h.b16 %v1108
    %v2646 = vunpack.c.l.b16 %v1109
    %v2647 = vunpack.c.h.b16 %v1109
    %v2648 = vunpack.c.l.b16 %v1110
    %v2649 = vunpack.c.h.b16 %v1110
    %v2650 = vunpack.c.l.b16 %v1111
    %v2651 = vunpack.c.h.b16 %v1111
    %v2652 = vunpack.c.l.b16 %v1112
    %v2653 = vunpack.c.h.b16 %v1112
    %v2654 = vunpack.c.l.b16 %v1113
    %v2655 = vunpack.c.h.b16 %v1113
    %v2656 = vunpack.c.l.b16 %v1114
    %v2657 = vunpack.c.h.b16 %v1114
    %v2658 = vunpack.c.l.b16 %v1115
    %v2659 = vunpack.c.h.b16 %v1115
    %v2660 = vunpack.c.l.b16 %v1116
    %v2661 = vunpack.c.h.b16 %v1116
    %v2662 = vunpack.c.l.b16 %v1117
    %v2663 = vunpack.c.h.b16 %v1117
    %v2664 = vunpack.c.l.b16 %v1118
    %v2665 = vunpack.c.h.b16 %v1118
    %v2666 = vunpack.c.l.b16 %v1119
    %v2667 = vunpack.c.h.b16 %v1119
    %v2668 = vunpack.c.l.b16 %v1120
    %v2669 = vunpack.c.h.b16 %v1120
    %v2670 = vunpack.c.l.b16 %v1121
    %v2671 = vunpack.c.h.b16 %v1121
    %v2672 = vunpack.c.l.b16 %v1122
    %v2673 = vunpack.c.h.b16 %v1122
    %v2674 = vunpack.c.l.b16 %v1123
    %v2675 = vunpack.c.h.b16 %v1123
    %v2676 = vunpack.c.l.b16 %v1124
    %v2677 = vunpack.c.h.b16 %v1124
    %v2678 = vunpack.c.l.b16 %v1125
    %v2679 = vunpack.c.h.b16 %v1125
    %v2680 = vunpack.c.l.b16 %v1126
    %v2681 = vunpack.c.h.b16 %v1126
    %v2682 = vunpack.c.l.b16 %v1127
    %v2683 = vunpack.c.h.b16 %v1127
    %v2684 = vunpack.c.l.b16 %v1128
    %v2685 = vunpack.c.h.b16 %v1128
    %v2686 = vunpack.c.l.b16 %v1129
    %v2687 = vunpack.c.h.b16 %v1129
    %v2688 = vunpack.c.l.b16 %v1130
    %v2689 = vunpack.c.h.b16 %v1130
    %v2690 = vunpack.c.l.b16 %v1131
    %v2691 = vunpack.c.h.b16 %v1131
    %v2692 = vunpack.c.l.b16 %v1132
    %v2693 = vunpack.c.h.b16 %v1132
    %v2694 = vunpack.c.l.b16 %v1133
    %v2695 = vunpack.c.h.b16 %v1133
    %v2696 = vunpack.c.l.b16 %v1134
    %v2697 = vunpack.c.h.b16 %v1134
    %v2698 = vunpack.c.l.b16 %v1135
    %v2699 = vunpack.c.h.b16 %v1135
    %v2700 = vunpack.c.l.b16 %v1136
    %v2701 = vunpack.c.h.b16 %v1136
    %v2702 = vunpack.c.l.b16 %v1137
    %v2703 = vunpack.c.h.b16 %v1137
    %v2704 = vunpack.c.l.b16 %v1138
    %v2705 = vunpack.c.h.b16 %v1138
    %v2706 = vunpack.c.l.b16 %v1139
    %v2707 = vunpack.c.h.b16 %v1139
    %v2708 = vunpack.c.l.b16 %v1140
    %v2709 = vunpack.c.h.b16 %v1140
    %v2710 = vunpack.c.l.b16 %v1141
    %v2711 = vunpack.c.h.b16 %v1141
    %v2712 = vunpack.c.l.b16 %v1142
    %v2713 = vunpack.c.h.b16 %v1142
    %v2714 = vunpack.c.l.b16 %v1143
    %v2715 = vunpack.c.h.b16 %v1143
    %v2716 = vunpack.c.l.b16 %v1144
    %v2717 = vunpack.c.h.b16 %v1144
    %v2718 = vunpack.c.l.b16 %v1145
    %v2719 = vunpack.c.h.b16 %v1145
    %v2720 = vunpack.c.l.b16 %v1146
    %v2721 = vunpack.c.h.b16 %v1146
    %v2722 = vunpack.c.l.b16 %v1147
    %v2723 = vunpack.c.h.b16 %v1147
    %v2724 = vunpack.c.l.b16 %v1148
    %v2725 = vunpack.c.h.b16 %v1148
    %v2726 = vunpack.c.l.b16 %v1149
    %v2727 = vunpack.c.h.b16 %v1149
    %v2728 = vpack.c.b16 %v1712, %v1704
    %v2729 = vpack.c.b16 %v1713, %v1705
    %v2730 = vpack.c.b16 %v1714, %v1706
    %v2731 = vpack.c.b16 %v1715, %v1707
    %v2732 = vpack.c.b16 %v1716, %v1708
    %v2733 = vpack.c.b16 %v1717, %v1709
    %v2734 = vpack.c.b16 %v1718, %v1710
    %v2735 = vpack.c.b16 %v1719, %v1711
    %v2736 = vpack.c.b16 %v1728, %v1720
    %v2737 = vpack.c.b16 %v1729, %v1721
    %v2738 = vpack.c.b16 %v1730, %v1722
    %v2739 = vpack.c.b16 %v1731, %v1723
    %v2740 = vpack.c.b16 %v1732, %v1724
    %v2741 = vpack.c.b16 %v1733, %v1725
    %v2742 = vpack.c.b16 %v1734, %v1726
    %v2743 = vpack.c.b16 %v1735, %v1727
    %v2744 = vpack.c.b16 %v1744, %v1736
    %v2745 = vpack.c.b16 %v1745, %v1737
    %v2746 = vpack.c.b16 %v1746, %v1738
    %v2747 = vpack.c.b16 %v1747, %v1739
    %v2748 = vpack.c.b16 %v1748, %v1740
    %v2749 = vpack.c.b16 %v1749, %v1741
    %v2750 = vpack.c.b16 %v1750, %v1742
    %v2751 = vpack.c.b16 %v1751, %v1743
    %v2752 = vpack.c.b16 %v1760, %v1752
    %v2753 = vpack.c.b16 %v1761, %v1753
    %v2754 = vpack.c.b16 %v1762, %v1754
    %v2755 = vpack.c.b16 %v1763, %v1755
    %v2756 = vpack.c.b16 %v1764, %v1756
    %v2757 = vpack.c.b16 %v1765, %v1757
    %v2758 = vpack.c.b16 %v1766, %v1758
    %v2759 = vpack.c.b16 %v1767, %v1759
    %v2760 = vpack.c.b16 %v1776, %v1768
    %v2761 = vpack.c.b16 %v1777, %v1769
    %v2762 = vpack.c.b16 %v1778, %v1770
    %v2763 = vpack.c.b16 %v1779, %v1771
    %v2764 = vpack.c.b16 %v1780, %v1772
    %v2765 = vpack.c.b16 %v1781, %v1773
    %v2766 = vpack.c.b16 %v1782, %v1774
    %v2767 = vpack.c.b16 %v1783, %v1775
    %v2768 = vpack.c.b16 %v1792, %v1784
    %v2769 = vpack.c.b16 %v1793, %v1785
    %v2770 = vpack.c.b16 %v1794, %v1786
    %v2771 = vpack.c.b16 %v1795, %v1787
    %v2772 = vpack.c.b16 %v1796, %v1788
    %v2773 = vpack.c.b16 %v1797, %v1789
    %v2774 = vpack.c.b16 %v1798, %v1790
    %v2775 = vpack.c.b16 %v1799, %v1791
    %v2776 = vpack.c.b16 %v1808, %v1800
    %v2777 = vpack.c.b16 %v1809, %v1801
    %v2778 = vpack.c.b16 %v1810, %v1802
    %v2779 = vpack.c.b16 %v1811, %v1803
    %v2780 = vpack.c.b16 %v1812, %v1804
    %v2781 = vpack.c.b16 %v1813, %v1805
    %v2782 = vpack.c.b16 %v1814, %v1806
    %v2783 = vpack.c.b16 %v1815, %v1807
    %v2784 = vpack.c.b16 %v1824, %v1816
    %v2785 = vpack.c.b16 %v1825, %v1817
    %v2786 = vpack.c.b16 %v1826, %v1818
    %v2787 = vpack.c.b16 %v1827, %v1819
    %v2788 = vpack.c.b16 %v1828, %v1820
    %v2789 = vpack.c.b16 %v1829, %v1821
    %v2790 = vpack.c.b16 %v1830, %v1822
    %v2791 = vpack.c.b16 %v1831, %v1823
    %v2792 = vpack.c.b16 %v1840, %v1832
    %v2793 = vpack.c.b16 %v1841, %v1833
    %v2794 = vpack.c.b16 %v1842, %v1834
    %v2795 = vpack.c.b16 %v1843, %v1835
    %v2796 = vpack.c.b16 %v1844, %v1836
    %v2797 = vpack.c.b16 %v1845, %v1837
    %v2798 = vpack.c.b16 %v1846, %v1838
    %v2799 = vpack.c.b16 %v1847, %v1839
    %v2800 = vpack.c.b16 %v1856, %v1848
    %v2801 = vpack.c.b16 %v1857, %v1849
    %v2802 = vpack.c.b16 %v1858, %v1850
    %v2803 = vpack.c.b16 %v1859, %v1851
    %v2804 = vpack.c.b16 %v1860, %v1852
    %v2805 = vpack.c.b16 %v1861, %v1853
    %v2806 = vpack.c.b16 %v1862, %v1854
    %v2807 = vpack.c.b16 %v1863, %v1855
    %v2808 = vpack.c.b16 %v1872, %v1864
    %v2809 = vpack.c.b16 %v1873, %v1865
    %v2810 = vpack.c.b16 %v1874, %v1866
    %v2811 = vpack.c.b16 %v1875, %v1867
    %v2812 = vpack.c.b16 %v1876, %v1868
    %v2813 = vpack.c.b16 %v1877, %v1869
    %v2814 = vpack.c.b16 %v1878, %v1870
    %v2815 = vpack.c.b16 %v1879, %v1871
    %v2816 = vpack.c.b16 %v1888, %v1880
    %v2817 = vpack.c.b16 %v1889, %v1881
    %v2818 = vpack.c.b16 %v1890, %v1882
    %v2819 = vpack.c.b16 %v1891, %v1883
    %v2820 = vpack.c.b16 %v1892, %v1884
    %v2821 = vpack.c.b16 %v1893, %v1885
    %v2822 = vpack.c.b16 %v1894, %v1886
    %v2823 = vpack.c.b16 %v1895, %v1887
    %v2824 = vpack.c.b16 %v1904, %v1896
    %v2825 = vpack.c.b16 %v1905, %v1897
    %v2826 = vpack.c.b16 %v1906, %v1898
    %v2827 = vpack.c.b16 %v1907, %v1899
    %v2828 = vpack.c.b16 %v1908, %v1900
    %v2829 = vpack.c.b16 %v1909, %v1901
    %v2830 = vpack.c.b16 %v1910, %v1902
    %v2831 = vpack.c.b16 %v1911, %v1903
    %v2832 = vpack.c.b16 %v1920, %v1912
    %v2833 = vpack.c.b16 %v1921, %v1913
    %v2834 = vpack.c.b16 %v1922, %v1914
    %v2835 = vpack.c.b16 %v1923, %v1915
    %v2836 = vpack.c.b16 %v1924, %v1916
    %v2837 = vpack.c.b16 %v1925, %v1917
    %v2838 = vpack.c.b16 %v1926, %v1918
    %v2839 = vpack.c.b16 %v1927, %v1919
    %v2840 = vpack.c.b16 %v1936, %v1928
    %v2841 = vpack.c.b16 %v1937, %v1929
    %v2842 = vpack.c.b16 %v1938, %v1930
    %v2843 = vpack.c.b16 %v1939, %v1931
    %v2844 = vpack.c.b16 %v1940, %v1932
    %v2845 = vpack.c.b16 %v1941, %v1933
    %v2846 = vpack.c.b16 %v1942, %v1934
    %v2847 = vpack.c.b16 %v1943, %v1935
    %v2848 = vpack.c.b16 %v1952, %v1944
    %v2849 = vpack.c.b16 %v1953, %v1945
    %v2850 = vpack.c.b16 %v1954, %v1946
    %v2851 = vpack.c.b16 %v1955, %v1947
    %v2852 = vpack.c.b16 %v1956, %v1948
    %v2853 = vpack.c.b16 %v1957, %v1949
    %v2854 = vpack.c.b16 %v1958, %v1950
    %v2855 = vpack.c.b16 %v1959, %v1951
    %v2856 = vpack.c.b16 %v1968, %v1960
    %v2857 = vpack.c.b16 %v1969, %v1961
    %v2858 = vpack.c.b16 %v1970, %v1962
    %v2859 = vpack.c.b16 %v1971, %v1963
    %v2860 = vpack.c.b16 %v1972, %v1964
    %v2861 = vpack.c.b16 %v1973, %v1965
    %v2862 = vpack.c.b16 %v1974, %v1966
    %v2863 = vpack.c.b16 %v1975, %v1967
    %v2864 = vpack.c.b16 %v1984, %v1976
    %v2865 = vpack.c.b16 %v1985, %v1977
    %v2866 = vpack.c.b16 %v1986, %v1978
    %v2867 = vpack.c.b16 %v1987, %v1979
    %v2868 = vpack.c.b16 %v1988, %v1980
    %v2869 = vpack.c.b16 %v1989, %v1981
    %v2870 = vpack.c.b16 %v1990, %v1982
    %v2871 = vpack.c.b16 %v1991, %v1983
    %v2872 = vpack.c.b16 %v2000, %v1992
    %v2873 = vpack.c.b16 %v2001, %v1993
    %v2874 = vpack.c.b16 %v2002, %v1994
    %v2875 = vpack.c.b16 %v2003, %v1995
    %v2876 = vpack.c.b16 %v2004, %v1996
    %v2877 = vpack.c.b16 %v2005, %v1997
    %v2878 = vpack.c.b16 %v2006, %v1998
    %v2879 = vpack.c.b16 %v2007, %v1999
    %v2880 = vpack.c.b16 %v2016, %v2008
    %v2881 = vpack.c.b16 %v2017, %v2009
    %v2882 = vpack.c.b16 %v2018, %v2010
    %v2883 = vpack.c.b16 %v2019, %v2011
    %v2884 = vpack.c.b16 %v2020, %v2012
    %v2885 = vpack.c.b16 %v2021, %v2013
    %v2886 = vpack.c.b16 %v2022, %v2014
    %v2887 = vpack.c.b16 %v2023, %v2015
    %v2888 = vpack.c.b16 %v2032, %v2024
    %v2889 = vpack.c.b16 %v2033, %v2025
    %v2890 = vpack.c.b16 %v2034, %v2026
    %v2891 = vpack.c.b16 %v2035, %v2027
    %v2892 = vpack.c.b16 %v2036, %v2028
    %v2893 = vpack.c.b16 %v2037, %v2029
    %v2894 = vpack.c.b16 %v2038, %v2030
    %v2895 = vpack.c.b16 %v2039, %v2031
    %v2896 = vpack.c.b16 %v2048, %v2040
    %v2897 = vpack.c.b16 %v2049, %v2041
    %v2898 = vpack.c.b16 %v2050, %v2042
    %v2899 = vpack.c.b16 %v2051, %v2043
    %v2900 = vpack.c.b16 %v2052, %v2044
    %v2901 = vpack.c.b16 %v2053, %v2045
    %v2902 = vpack.c.b16 %v2054, %v2046
    %v2903 = vpack.c.b16 %v2055, %v2047
    %v2904 = vpack.c.b16 %v2064, %v2056
    %v2905 = vpack.c.b16 %v2065, %v2057
    %v2906 = vpack.c.b16 %v2066, %v2058
    %v2907 = vpack.c.b16 %v2067, %v2059
    %v2908 = vpack.c.b16 %v2068, %v2060
    %v2909 = vpack.c.b16 %v2069, %v2061
    %v2910 = vpack.c.b16 %v2070, %v2062
    %v2911 = vpack.c.b16 %v2071, %v2063
    %v2912 = vpack.c.b16 %v2080, %v2072
    %v2913 = vpack.c.b16 %v2081, %v2073
    %v2914 = vpack.c.b16 %v2082, %v2074
    %v2915 = vpack.c.b16 %v2083, %v2075
    %v2916 = vpack.c.b16 %v2084, %v2076
    %v2917 = vpack.c.b16 %v2085, %v2077
    %v2918 = vpack.c.b16 %v2086, %v2078
    %v2919 = vpack.c.b16 %v2087, %v2079
    %v2920 = vpack.c.b16 %v2096, %v2088
    %v2921 = vpack.c.b16 %v2097, %v2089
    %v2922 = vpack.c.b16 %v2098, %v2090
    %v2923 = vpack.c.b16 %v2099, %v2091
    %v2924 = vpack.c.b16 %v2100, %v2092
    %v2925 = vpack.c.b16 %v2101, %v2093
    %v2926 = vpack.c.b16 %v2102, %v2094
    %v2927 = vpack.c.b16 %v2103, %v2095
    %v2928 = vpack.c.b16 %v2112, %v2104
    %v2929 = vpack.c.b16 %v2113, %v2105
    %v2930 = vpack.c.b16 %v2114, %v2106
    %v2931 = vpack.c.b16 %v2115, %v2107
    %v2932 = vpack.c.b16 %v2116, %v2108
    %v2933 = vpack.c.b16 %v2117, %v2109
    %v2934 = vpack.c.b16 %v2118, %v2110
    %v2935 = vpack.c.b16 %v2119, %v2111
    %v2936 = vpack.c.b16 %v2128, %v2120
    %v2937 = vpack.c.b16 %v2129, %v2121
    %v2938 = vpack.c.b16 %v2130, %v2122
    %v2939 = vpack.c.b16 %v2131, %v2123
    %v2940 = vpack.c.b16 %v2132, %v2124
    %v2941 = vpack.c.b16 %v2133, %v2125
    %v2942 = vpack.c.b16 %v2134, %v2126
    %v2943 = vpack.c.b16 %v2135, %v2127
    %v2944 = vpack.c.b16 %v2144, %v2136
    %v2945 = vpack.c.b16 %v2145, %v2137
    %v2946 = vpack.c.b16 %v2146, %v2138
    %v2947 = vpack.c.b16 %v2147, %v2139
    %v2948 = vpack.c.b16 %v2148, %v2140
    %v2949 = vpack.c.b16 %v2149, %v2141
    %v2950 = vpack.c.b16 %v2150, %v2142
    %v2951 = vpack.c.b16 %v2151, %v2143
    %v2952 = vpack.c.b16 %v2160, %v2152
    %v2953 = vpack.c.b16 %v2161, %v2153
    %v2954 = vpack.c.b16 %v2162, %v2154
    %v2955 = vpack.c.b16 %v2163, %v2155
    %v2956 = vpack.c.b16 %v2164, %v2156
    %v2957 = vpack.c.b16 %v2165, %v2157
    %v2958 = vpack.c.b16 %v2166, %v2158
    %v2959 = vpack.c.b16 %v2167, %v2159
    %v2960 = vpack.c.b16 %v2176, %v2168
    %v2961 = vpack.c.b16 %v2177, %v2169
    %v2962 = vpack.c.b16 %v2178, %v2170
    %v2963 = vpack.c.b16 %v2179, %v2171
    %v2964 = vpack.c.b16 %v2180, %v2172
    %v2965 = vpack.c.b16 %v2181, %v2173
    %v2966 = vpack.c.b16 %v2182, %v2174
    %v2967 = vpack.c.b16 %v2183, %v2175
    %v2968 = vpack.c.b16 %v2192, %v2184
    %v2969 = vpack.c.b16 %v2193, %v2185
    %v2970 = vpack.c.b16 %v2194, %v2186
    %v2971 = vpack.c.b16 %v2195, %v2187
    %v2972 = vpack.c.b16 %v2196, %v2188
    %v2973 = vpack.c.b16 %v2197, %v2189
    %v2974 = vpack.c.b16 %v2198, %v2190
    %v2975 = vpack.c.b16 %v2199, %v2191
    %v2976 = vpack.c.b16 %v2208, %v2200
    %v2977 = vpack.c.b16 %v2209, %v2201
    %v2978 = vpack.c.b16 %v2210, %v2202
    %v2979 = vpack.c.b16 %v2211, %v2203
    %v2980 = vpack.c.b16 %v2212, %v2204
    %v2981 = vpack.c.b16 %v2213, %v2205
    %v2982 = vpack.c.b16 %v2214, %v2206
    %v2983 = vpack.c.b16 %v2215, %v2207
    %v2984 = vpack.c.b16 %v2224, %v2216
    %v2985 = vpack.c.b16 %v2225, %v2217
    %v2986 = vpack.c.b16 %v2226, %v2218
    %v2987 = vpack.c.b16 %v2227, %v2219
    %v2988 = vpack.c.b16 %v2228, %v2220
    %v2989 = vpack.c.b16 %v2229, %v2221
    %v2990 = vpack.c.b16 %v2230, %v2222
    %v2991 = vpack.c.b16 %v2231, %v2223
    %v2992 = vpack.c.b16 %v2240, %v2232
    %v2993 = vpack.c.b16 %v2241, %v2233
    %v2994 = vpack.c.b16 %v2242, %v2234
    %v2995 = vpack.c.b16 %v2243, %v2235
    %v2996 = vpack.c.b16 %v2244, %v2236
    %v2997 = vpack.c.b16 %v2245, %v2237
    %v2998 = vpack.c.b16 %v2246, %v2238
    %v2999 = vpack.c.b16 %v2247, %v2239
    %v3000 = vpack.c.b16 %v2256, %v2248
    %v3001 = vpack.c.b16 %v2257, %v2249
    %v3002 = vpack.c.b16 %v2258, %v2250
    %v3003 = vpack.c.b16 %v2259, %v2251
    %v3004 = vpack.c.b16 %v2260, %v2252
    %v3005 = vpack.c.b16 %v2261, %v2253
    %v3006 = vpack.c.b16 %v2262, %v2254
    %v3007 = vpack.c.b16 %v2263, %v2255
    %v3008 = vpack.c.b16 %v2272, %v2264
    %v3009 = vpack.c.b16 %v2273, %v2265
    %v3010 = vpack.c.b16 %v2274, %v2266
    %v3011 = vpack.c.b16 %v2275, %v2267
    %v3012 = vpack.c.b16 %v2276, %v2268
    %v3013 = vpack.c.b16 %v2277, %v2269
    %v3014 = vpack.c.b16 %v2278, %v2270
    %v3015 = vpack.c.b16 %v2279, %v2271
    %v3016 = vpack.c.b16 %v2288, %v2280
    %v3017 = vpack.c.b16 %v2289, %v2281
    %v3018 = vpack.c.b16 %v2290, %v2282
    %v3019 = vpack.c.b16 %v2291, %v2283
    %v3020 = vpack.c.b16 %v2292, %v2284
    %v3021 = vpack.c.b16 %v2293, %v2285
    %v3022 = vpack.c.b16 %v2294, %v2286
    %v3023 = vpack.c.b16 %v2295, %v2287
    %v3024 = vpack.c.b16 %v2304, %v2296
    %v3025 = vpack.c.b16 %v2305, %v2297
    %v3026 = vpack.c.b16 %v2306, %v2298
    %v3027 = vpack.c.b16 %v2307, %v2299
    %v3028 = vpack.c.b16 %v2308, %v2300
    %v3029 = vpack.c.b16 %v2309, %v2301
    %v3030 = vpack.c.b16 %v2310, %v2302
    %v3031 = vpack.c.b16 %v2311, %v2303
    %v3032 = vpack.c.b16 %v2320, %v2312
    %v3033 = vpack.c.b16 %v2321, %v2313
    %v3034 = vpack.c.b16 %v2322, %v2314
    %v3035 = vpack.c.b16 %v2323, %v2315
    %v3036 = vpack.c.b16 %v2324, %v2316
    %v3037 = vpack.c.b16 %v2325, %v2317
    %v3038 = vpack.c.b16 %v2326, %v2318
    %v3039 = vpack.c.b16 %v2327, %v2319
    %v3040 = vpack.c.b16 %v2336, %v2328
    %v3041 = vpack.c.b16 %v2337, %v2329
    %v3042 = vpack.c.b16 %v2338, %v2330
    %v3043 = vpack.c.b16 %v2339, %v2331
    %v3044 = vpack.c.b16 %v2340, %v2332
    %v3045 = vpack.c.b16 %v2341, %v2333
    %v3046 = vpack.c.b16 %v2342, %v2334
    %v3047 = vpack.c.b16 %v2343, %v2335
    %v3048 = vpack.c.b16 %v2352, %v2344
    %v3049 = vpack.c.b16 %v2353, %v2345
    %v3050 = vpack.c.b16 %v2354, %v2346
    %v3051 = vpack.c.b16 %v2355, %v2347
    %v3052 = vpack.c.b16 %v2356, %v2348
    %v3053 = vpack.c.b16 %v2357, %v2349
    %v3054 = vpack.c.b16 %v2358, %v2350
    %v3055 = vpack.c.b16 %v2359, %v2351
    %v3056 = vpack.c.b16 %v2368, %v2360
    %v3057 = vpack.c.b16 %v2369, %v2361
    %v3058 = vpack.c.b16 %v2370, %v2362
    %v3059 = vpack.c.b16 %v2371, %v2363
    %v3060 = vpack.c.b16 %v2372, %v2364
    %v3061 = vpack.c.b16 %v2373, %v2365
    %v3062 = vpack.c.b16 %v2374, %v2366
    %v3063 = vpack.c.b16 %v2375, %v2367
    %v3064 = vpack.c.b16 %v2384, %v2376
    %v3065 = vpack.c.b16 %v2385, %v2377
    %v3066 = vpack.c.b16 %v2386, %v2378
    %v3067 = vpack.c.b16 %v2387, %v2379
    %v3068 = vpack.c.b16 %v2388, %v2380
    %v3069 = vpack.c.b16 %v2389, %v2381
    %v3070 = vpack.c.b16 %v2390, %v2382
    %v3071 = vpack.c.b16 %v2391, %v2383
    %v3072 = vpack.c.b16 %v2400, %v2392
    %v3073 = vpack.c.b16 %v2401, %v2393
    %v3074 = vpack.c.b16 %v2402, %v2394
    %v3075 = vpack.c.b16 %v2403, %v2395
    %v3076 = vpack.c.b16 %v2404, %v2396
    %v3077 = vpack.c.b16 %v2405, %v2397
    %v3078 = vpack.c.b16 %v2406, %v2398
    %v3079 = vpack.c.b16 %v2407, %v2399
    %v3080 = vpack.c.b16 %v2416, %v2408
    %v3081 = vpack.c.b16 %v2417, %v2409
    %v3082 = vpack.c.b16 %v2418, %v2410
    %v3083 = vpack.c.b16 %v2419, %v2411
    %v3084 = vpack.c.b16 %v2420, %v2412
    %v3085 = vpack.c.b16 %v2421, %v2413
    %v3086 = vpack.c.b16 %v2422, %v2414
    %v3087 = vpack.c.b16 %v2423, %v2415
    %v3088 = vpack.c.b16 %v2432, %v2424
    %v3089 = vpack.c.b16 %v2433, %v2425
    %v3090 = vpack.c.b16 %v2434, %v2426
    %v3091 = vpack.c.b16 %v2435, %v2427
    %v3092 = vpack.c.b16 %v2436, %v2428
    %v3093 = vpack.c.b16 %v2437, %v2429
    %v3094 = vpack.c.b16 %v2438, %v2430
    %v3095 = vpack.c.b16 %v2439, %v2431
    %v3096 = vpack.c.b16 %v2448, %v2440
    %v3097 = vpack.c.b16 %v2449, %v2441
    %v3098 = vpack.c.b16 %v2450, %v2442
    %v3099 = vpack.c.b16 %v2451, %v2443
    %v3100 = vpack.c.b16 %v2452, %v2444
    %v3101 = vpack.c.b16 %v2453, %v2445
    %v3102 = vpack.c.b16 %v2454, %v2446
    %v3103 = vpack.c.b16 %v2455, %v2447
    %v3104 = vpack.c.b16 %v2464, %v2456
    %v3105 = vpack.c.b16 %v2465, %v2457
    %v3106 = vpack.c.b16 %v2466, %v2458
    %v3107 = vpack.c.b16 %v2467, %v2459
    %v3108 = vpack.c.b16 %v2468, %v2460
    %v3109 = vpack.c.b16 %v2469, %v2461
    %v3110 = vpack.c.b16 %v2470, %v2462
    %v3111 = vpack.c.b16 %v2471, %v2463
    %v3112 = vpack.c.b16 %v2480, %v2472
    %v3113 = vpack.c.b16 %v2481, %v2473
    %v3114 = vpack.c.b16 %v2482, %v2474
    %v3115 = vpack.c.b16 %v2483, %v2475
    %v3116 = vpack.c.b16 %v2484, %v2476
    %v3117 = vpack.c.b16 %v2485, %v2477
    %v3118 = vpack.c.b16 %v2486, %v2478
    %v3119 = vpack.c.b16 %v2487, %v2479
    %v3120 = vpack.c.b16 %v2496, %v2488
    %v3121 = vpack.c.b16 %v2497, %v2489
    %v3122 = vpack.c.b16 %v2498, %v2490
    %v3123 = vpack.c.b16 %v2499, %v2491
    %v3124 = vpack.c.b16 %v2500, %v2492
    %v3125 = vpack.c.b16 %v2501, %v2493
    %v3126 = vpack.c.b16 %v2502, %v2494
    %v3127 = vpack.c.b16 %v2503, %v2495
    %v3128 = vpack.c.b16 %v2512, %v2504
    %v3129 = vpack.c.b16 %v2513, %v2505
    %v3130 = vpack.c.b16 %v2514, %v2506
    %v3131 = vpack.c.b16 %v2515, %v2507
    %v3132 = vpack.c.b16 %v2516, %v2508
    %v3133 = vpack.c.b16 %v2517, %v2509
    %v3134 = vpack.c.b16 %v2518, %v2510
    %v3135 = vpack.c.b16 %v2519, %v2511
    %v3136 = vpack.c.b16 %v2528, %v2520
    %v3137 = vpack.c.b16 %v2529, %v2521
    %v3138 = vpack.c.b16 %v2530, %v2522
    %v3139 = vpack.c.b16 %v2531, %v2523
    %v3140 = vpack.c.b16 %v2532, %v2524
    %v3141 = vpack.c.b16 %v2533, %v2525
    %v3142 = vpack.c.b16 %v2534, %v2526
    %v3143 = vpack.c.b16 %v2535, %v2527
    %v3144 = vpack.c.b16 %v2544, %v2536
    %v3145 = vpack.c.b16 %v2545, %v2537
    %v3146 = vpack.c.b16 %v2546, %v2538
    %v3147 = vpack.c.b16 %v2547, %v2539
    %v3148 = vpack.c.b16 %v2548, %v2540
    %v3149 = vpack.c.b16 %v2549, %v2541
    %v3150 = vpack.c.b16 %v2550, %v2542
    %v3151 = vpack.c.b16 %v2551, %v2543
    %v3152 = vpack.c.b16 %v2560, %v2552
    %v3153 = vpack.c.b16 %v2561, %v2553
    %v3154 = vpack.c.b16 %v2562, %v2554
    %v3155 = vpack.c.b16 %v2563, %v2555
    %v3156 = vpack.c.b16 %v2564, %v2556
    %v3157 = vpack.c.b16 %v2565, %v2557
    %v3158 = vpack.c.b16 %v2566, %v2558
    %v3159 = vpack.c.b16 %v2567, %v2559
    %v3160 = vpack.c.b16 %v2576, %v2568
    %v3161 = vpack.c.b16 %v2577, %v2569
    %v3162 = vpack.c.b16 %v2578, %v2570
    %v3163 = vpack.c.b16 %v2579, %v2571
    %v3164 = vpack.c.b16 %v2580, %v2572
    %v3165 = vpack.c.b16 %v2581, %v2573
    %v3166 = vpack.c.b16 %v2582, %v2574
    %v3167 = vpack.c.b16 %v2583, %v2575
    %v3168 = vpack.c.b16 %v2592, %v2584
    %v3169 = vpack.c.b16 %v2593, %v2585
    %v3170 = vpack.c.b16 %v2594, %v2586
    %v3171 = vpack.c.b16 %v2595, %v2587
    %v3172 = vpack.c.b16 %v2596, %v2588
    %v3173 = vpack.c.b16 %v2597, %v2589
    %v3174 = vpack.c.b16 %v2598, %v2590
    %v3175 = vpack.c.b16 %v2599, %v2591
    %v3176 = vpack.c.b16 %v2608, %v2600
    %v3177 = vpack.c.b16 %v2609, %v2601
    %v3178 = vpack.c.b16 %v2610, %v2602
    %v3179 = vpack.c.b16 %v2611, %v2603
    %v3180 = vpack.c.b16 %v2612, %v2604
    %v3181 = vpack.c.b16 %v2613, %v2605
    %v3182 = vpack.c.b16 %v2614, %v2606
    %v3183 = vpack.c.b16 %v2615, %v2607
    %v3184 = vpack.c.b16 %v2624, %v2616
    %v3185 = vpack.c.b16 %v2625, %v2617
    %v3186 = vpack.c.b16 %v2626, %v2618
    %v3187 = vpack.c.b16 %v2627, %v2619
    %v3188 = vpack.c.b16 %v2628, %v2620
    %v3189 = vpack.c.b16 %v2629, %v2621
    %v3190 = vpack.c.b16 %v2630, %v2622
    %v3191 = vpack.c.b16 %v2631, %v2623
    %v3192 = vpack.c.b16 %v2640, %v2632
    %v3193 = vpack.c.b16 %v2641, %v2633
    %v3194 = vpack.c.b16 %v2642, %v2634
    %v3195 = vpack.c.b16 %v2643, %v2635
    %v3196 = vpack.c.b16 %v2644, %v2636
    %v3197 = vpack.c.b16 %v2645, %v2637
    %v3198 = vpack.c.b16 %v2646, %v2638
    %v3199 = vpack.c.b16 %v2647, %v2639
    %v3200 = vpack.c.b16 %v2656, %v2648
    %v3201 = vpack.c.b16 %v2657, %v2649
    %v3202 = vpack.c.b16 %v2658, %v2650
    %v3203 = vpack.c.b16 %v2659, %v2651
    %v3204 = vpack.c.b16 %v2660, %v2652
    %v3205 = vpack.c.b16 %v2661, %v2653
    %v3206 = vpack.c.b16 %v2662, %v2654
    %v3207 = vpack.c.b16 %v2663, %v2655
    %v3208 = vpack.c.b16 %v2672, %v2664
    %v3209 = vpack.c.b16 %v2673, %v2665
    %v3210 = vpack.c.b16 %v2674, %v2666
    %v3211 = vpack.c.b16 %v2675, %v2667
    %v3212 = vpack.c.b16 %v2676, %v2668
    %v3213 = vpack.c.b16 %v2677, %v2669
    %v3214 = vpack.c.b16 %v2678, %v2670
    %v3215 = vpack.c.b16 %v2679, %v2671
    %v3216 = vpack.c.b16 %v2688, %v2680
    %v3217 = vpack.c.b16 %v2689, %v2681
    %v3218 = vpack.c.b16 %v2690, %v2682
    %v3219 = vpack.c.b16 %v2691, %v2683
    %v3220 = vpack.c.b16 %v2692, %v2684
    %v3221 = vpack.c.b16 %v2693, %v2685
    %v3222 = vpack.c.b16 %v2694, %v2686
    %v3223 = vpack.c.b16 %v2695, %v2687
    %v3224 = vpack.c.b16 %v2704, %v2696
    %v3225 = vpack.c.b16 %v2705, %v2697
    %v3226 = vpack.c.b16 %v2706, %v2698
    %v3227 = vpack.c.b16 %v2707, %v2699
    %v3228 = vpack.c.b16 %v2708, %v2700
    %v3229 = vpack.c.b16 %v2709, %v2701
    %v3230 = vpack.c.b16 %v2710, %v2702
    %v3231 = vpack.c.b16 %v2711, %v2703
    %v3232 = vpack.c.b16 %v2720, %v2712
    %v3233 = vpack.c.b16 %v2721, %v2713
    %v3234 = vpack.c.b16 %v2722, %v2714
    %v3235 = vpack.c.b16 %v2723, %v2715
    %v3236 = vpack.c.b16 %v2724, %v2716
    %v3237 = vpack.c.b16 %v2725, %v2717
    %v3238 = vpack.c.b16 %v2726, %v2718
    %v3239 = vpack.c.b16 %v2727, %v2719
    %3752 = vmatprep.subr.bf16.mxu0 %v2785
    %3753 = vmatpush1.bf16.msra.mxu0 %v2784
    %3754 = vmatprep.subr.bf16.mxu0 %v2777
    %3755 = vmatpush1.bf16.msra.mxu0 %v2776
    %3756 = vmatprep.subr.bf16.mxu0 %v2769
    %3757 = vmatpush1.bf16.msra.mxu0 %v2768
    %3758 = vmatprep.subr.bf16.mxu0 %v2761
    %3759 = vmatpush1.bf16.msra.mxu0 %v2760
    %3760 = vmatprep.subr.bf16.mxu0 %v2753
    %3761 = vmatpush1.bf16.msra.mxu0 %v2752
    %3762 = vmatprep.subr.bf16.mxu0 %v2745
    %3763 = vmatpush1.bf16.msra.mxu0 %v2744
    %3764 = vmatprep.subr.bf16.mxu0 %v2737
    %3765 = vmatpush1.bf16.msra.mxu0 %v2736
    %3766 = vmatprep.subr.bf16.mxu0 %v2729
    %3767 = vmatpush1.bf16.msra.mxu0 %v2728
    %3768 = vmatprep.subr.bf16.mxu0 %v2849
    %3769 = vmatpush2.bf16.msra.mxu0 %v2848
    %3770 = vmatprep.subr.bf16.mxu0 %v2841
    %3771 = vmatpush2.bf16.msra.mxu0 %v2840
    %3772 = vmatprep.subr.bf16.mxu0 %v2833
    %3773 = vmatpush2.bf16.msra.mxu0 %v2832
    %3774 = vmatprep.subr.bf16.mxu0 %v2825
    %3775 = vmatpush2.bf16.msra.mxu0 %v2824
    %3776 = vmatprep.subr.bf16.mxu0 %v2817
    %3777 = vmatpush2.bf16.msra.mxu0 %v2816
    %3778 = vmatprep.subr.bf16.mxu0 %v2809
    %3779 = vmatpush2.bf16.msra.mxu0 %v2808
    %3780 = vmatprep.subr.bf16.mxu0 %v2801
    %3781 = vmatpush2.bf16.msra.mxu0 %v2800
    %3782 = vmatprep.subr.bf16.mxu0 %v2793
    %3783 = vmatpush2.bf16.msra.mxu0 %v2792
    %3784 = vmatprep.mubr.bf16.mxu0 %v631
    %3785 = vmatmul.mubr.bf16.gmra.mxu0 %v630
    %v3786 = vpop.f32.mrf.mxu0
    %v3787 = vadd.f32 %v1155, %v3786
    %v3788 = vpop.f32.mrf.mxu0
    %v3789 = vadd.f32 %v1159, %v3788
    %v3790 = vpop.f32.mrf.mxu0
    %v3791 = vpop.f32.mrf.mxu0
    %3792 = vdwg.mxu0
    %3793 = vmatprep.subr.bf16.mxu0 %v2913
    %3794 = vmatpush1.bf16.msra.mxu0 %v2912
    %3795 = vmatprep.subr.bf16.mxu0 %v2905
    %3796 = vmatpush1.bf16.msra.mxu0 %v2904
    %3797 = vmatprep.subr.bf16.mxu0 %v2897
    %3798 = vmatpush1.bf16.msra.mxu0 %v2896
    %3799 = vmatprep.subr.bf16.mxu0 %v2889
    %3800 = vmatpush1.bf16.msra.mxu0 %v2888
    %3801 = vmatprep.subr.bf16.mxu0 %v2881
    %3802 = vmatpush1.bf16.msra.mxu0 %v2880
    %3803 = vmatprep.subr.bf16.mxu0 %v2873
    %3804 = vmatpush1.bf16.msra.mxu0 %v2872
    %3805 = vmatprep.subr.bf16.mxu0 %v2865
    %3806 = vmatpush1.bf16.msra.mxu0 %v2864
    %3807 = vmatprep.subr.bf16.mxu0 %v2857
    %3808 = vmatpush1.bf16.msra.mxu0 %v2856
    %3809 = vmatprep.subr.bf16.mxu0 %v2977
    %3810 = vmatpush2.bf16.msra.mxu0 %v2976
    %3811 = vmatprep.subr.bf16.mxu0 %v2969
    %3812 = vmatpush2.bf16.msra.mxu0 %v2968
    %3813 = vmatprep.subr.bf16.mxu0 %v2961
    %3814 = vmatpush2.bf16.msra.mxu0 %v2960
    %3815 = vmatprep.subr.bf16.mxu0 %v2953
    %3816 = vmatpush2.bf16.msra.mxu0 %v2952
    %3817 = vmatprep.subr.bf16.mxu0 %v2945
    %3818 = vmatpush2.bf16.msra.mxu0 %v2944
    %3819 = vmatprep.subr.bf16.mxu0 %v2937
    %3820 = vmatpush2.bf16.msra.mxu0 %v2936
    %3821 = vmatprep.subr.bf16.mxu0 %v2929
    %3822 = vmatpush2.bf16.msra.mxu0 %v2928
    %3823 = vmatprep.subr.bf16.mxu0 %v2921
    %3824 = vmatpush2.bf16.msra.mxu0 %v2920
    %3825 = vmatprep.mubr.bf16.mxu0 %v633
    %3826 = vmatmul.mubr.bf16.gmra.mxu0 %v632
    %v3827 = vpop.f32.mrf.mxu0
    %v3828 = vadd.f32 %v3787, %v3827
    %v3829 = vpop.f32.mrf.mxu0
    %v3830 = vadd.f32 %v3789, %v3829
    %v3831 = vpop.f32.mrf.mxu0
    %v3832 = vpop.f32.mrf.mxu0
    %3833 = vdwg.mxu0
    %3834 = vmatprep.subr.bf16.mxu0 %v3041
    %3835 = vmatpush1.bf16.msra.mxu0 %v3040
    %3836 = vmatprep.subr.bf16.mxu0 %v3033
    %3837 = vmatpush1.bf16.msra.mxu0 %v3032
    %3838 = vmatprep.subr.bf16.mxu0 %v3025
    %3839 = vmatpush1.bf16.msra.mxu0 %v3024
    %3840 = vmatprep.subr.bf16.mxu0 %v3017
    %3841 = vmatpush1.bf16.msra.mxu0 %v3016
    %3842 = vmatprep.subr.bf16.mxu0 %v3009
    %3843 = vmatpush1.bf16.msra.mxu0 %v3008
    %3844 = vmatprep.subr.bf16.mxu0 %v3001
    %3845 = vmatpush1.bf16.msra.mxu0 %v3000
    %3846 = vmatprep.subr.bf16.mxu0 %v2993
    %3847 = vmatpush1.bf16.msra.mxu0 %v2992
    %3848 = vmatprep.subr.bf16.mxu0 %v2985
    %3849 = vmatpush1.bf16.msra.mxu0 %v2984
    %3850 = vmatprep.subr.bf16.mxu0 %v3105
    %3851 = vmatpush2.bf16.msra.mxu0 %v3104
    %3852 = vmatprep.subr.bf16.mxu0 %v3097
    %3853 = vmatpush2.bf16.msra.mxu0 %v3096
    %3854 = vmatprep.subr.bf16.mxu0 %v3089
    %3855 = vmatpush2.bf16.msra.mxu0 %v3088
    %3856 = vmatprep.subr.bf16.mxu0 %v3081
    %3857 = vmatpush2.bf16.msra.mxu0 %v3080
    %3858 = vmatprep.subr.bf16.mxu0 %v3073
    %3859 = vmatpush2.bf16.msra.mxu0 %v3072
    %3860 = vmatprep.subr.bf16.mxu0 %v3065
    %3861 = vmatpush2.bf16.msra.mxu0 %v3064
    %3862 = vmatprep.subr.bf16.mxu0 %v3057
    %3863 = vmatpush2.bf16.msra.mxu0 %v3056
    %3864 = vmatprep.subr.bf16.mxu0 %v3049
    %3865 = vmatpush2.bf16.msra.mxu0 %v3048
    %3866 = vmatprep.mubr.bf16.mxu0 %v635
    %3867 = vmatmul.mubr.bf16.gmra.mxu0 %v634
    %v3868 = vpop.f32.mrf.mxu0
    %v3869 = vadd.f32 %v3828, %v3868
    %v3870 = vpop.f32.mrf.mxu0
    %v3871 = vadd.f32 %v3830, %v3870
    %v3872 = vpop.f32.mrf.mxu0
    %v3873 = vpop.f32.mrf.mxu0
    %3874 = vdwg.mxu0
    %3875 = vmatprep.subr.bf16.mxu0 %v3169
    %3876 = vmatpush1.bf16.msra.mxu0 %v3168
    %3877 = vmatprep.subr.bf16.mxu0 %v3161
    %3878 = vmatpush1.bf16.msra.mxu0 %v3160
    %3879 = vmatprep.subr.bf16.mxu0 %v3153
    %3880 = vmatpush1.bf16.msra.mxu0 %v3152
    %3881 = vmatprep.subr.bf16.mxu0 %v3145
    %3882 = vmatpush1.bf16.msra.mxu0 %v3144
    %3883 = vmatprep.subr.bf16.mxu0 %v3137
    %3884 = vmatpush1.bf16.msra.mxu0 %v3136
    %3885 = vmatprep.subr.bf16.mxu0 %v3129
    %3886 = vmatpush1.bf16.msra.mxu0 %v3128
    %3887 = vmatprep.subr.bf16.mxu0 %v3121
    %3888 = vmatpush1.bf16.msra.mxu0 %v3120
    %3889 = vmatprep.subr.bf16.mxu0 %v3113
    %3890 = vmatpush1.bf16.msra.mxu0 %v3112
    %3891 = vmatprep.subr.bf16.mxu0 %v3233
    %3892 = vmatpush2.bf16.msra.mxu0 %v3232
    %3893 = vmatprep.subr.bf16.mxu0 %v3225
    %3894 = vmatpush2.bf16.msra.mxu0 %v3224
    %3895 = vmatprep.subr.bf16.mxu0 %v3217
    %3896 = vmatpush2.bf16.msra.mxu0 %v3216
    %3897 = vmatprep.subr.bf16.mxu0 %v3209
    %3898 = vmatpush2.bf16.msra.mxu0 %v3208
    %3899 = vmatprep.subr.bf16.mxu0 %v3201
    %3900 = vmatpush2.bf16.msra.mxu0 %v3200
    %3901 = vmatprep.subr.bf16.mxu0 %v3193
    %3902 = vmatpush2.bf16.msra.mxu0 %v3192
    %3903 = vmatprep.subr.bf16.mxu0 %v3185
    %3904 = vmatpush2.bf16.msra.mxu0 %v3184
    %3905 = vmatprep.subr.bf16.mxu0 %v3177
    %3906 = vmatpush2.bf16.msra.mxu0 %v3176
    %3907 = vmatprep.mubr.bf16.mxu0 %v637
    %3908 = vmatmul.mubr.bf16.gmra.mxu0 %v636
    %v3909 = vpop.f32.mrf.mxu0
    %v3910 = vadd.f32 %v3869, %v3909
    %v3911 = vpop.f32.mrf.mxu0
    %v3912 = vadd.f32 %v3871, %v3911
    %v3913 = vpop.f32.mrf.mxu0
    %v3914 = vpop.f32.mrf.mxu0
    %3915 = vdwg.mxu0
    %3916 = vmatprep.subr.bf16.mxu0 %v2787
    %3917 = vmatpush1.bf16.msra.mxu0 %v2786
    %3918 = vmatprep.subr.bf16.mxu0 %v2779
    %3919 = vmatpush1.bf16.msra.mxu0 %v2778
    %3920 = vmatprep.subr.bf16.mxu0 %v2771
    %3921 = vmatpush1.bf16.msra.mxu0 %v2770
    %3922 = vmatprep.subr.bf16.mxu0 %v2763
    %3923 = vmatpush1.bf16.msra.mxu0 %v2762
    %3924 = vmatprep.subr.bf16.mxu0 %v2755
    %3925 = vmatpush1.bf16.msra.mxu0 %v2754
    %3926 = vmatprep.subr.bf16.mxu0 %v2747
    %3927 = vmatpush1.bf16.msra.mxu0 %v2746
    %3928 = vmatprep.subr.bf16.mxu0 %v2739
    %3929 = vmatpush1.bf16.msra.mxu0 %v2738
    %3930 = vmatprep.subr.bf16.mxu0 %v2731
    %3931 = vmatpush1.bf16.msra.mxu0 %v2730
    %3932 = vmatprep.subr.bf16.mxu0 %v2851
    %3933 = vmatpush2.bf16.msra.mxu0 %v2850
    %3934 = vmatprep.subr.bf16.mxu0 %v2843
    %3935 = vmatpush2.bf16.msra.mxu0 %v2842
    %3936 = vmatprep.subr.bf16.mxu0 %v2835
    %3937 = vmatpush2.bf16.msra.mxu0 %v2834
    %3938 = vmatprep.subr.bf16.mxu0 %v2827
    %3939 = vmatpush2.bf16.msra.mxu0 %v2826
    %3940 = vmatprep.subr.bf16.mxu0 %v2819
    %3941 = vmatpush2.bf16.msra.mxu0 %v2818
    %3942 = vmatprep.subr.bf16.mxu0 %v2811
    %3943 = vmatpush2.bf16.msra.mxu0 %v2810
    %3944 = vmatprep.subr.bf16.mxu0 %v2803
    %3945 = vmatpush2.bf16.msra.mxu0 %v2802
    %3946 = vmatprep.subr.bf16.mxu0 %v2795
    %3947 = vmatpush2.bf16.msra.mxu0 %v2794
    %3948 = vmatprep.mubr.bf16.mxu0 %v631
    %3949 = vmatmul.mubr.bf16.gmra.mxu0 %v630
    %v3950 = vpop.f32.mrf.mxu0
    %v3951 = vadd.f32 %v1163, %v3950
    %v3952 = vpop.f32.mrf.mxu0
    %v3953 = vadd.f32 %v1167, %v3952
    %v3954 = vpop.f32.mrf.mxu0
    %v3955 = vpop.f32.mrf.mxu0
    %3956 = vdwg.mxu0
    %3957 = vmatprep.subr.bf16.mxu0 %v2915
    %3958 = vmatpush1.bf16.msra.mxu0 %v2914
    %3959 = vmatprep.subr.bf16.mxu0 %v2907
    %3960 = vmatpush1.bf16.msra.mxu0 %v2906
    %3961 = vmatprep.subr.bf16.mxu0 %v2899
    %3962 = vmatpush1.bf16.msra.mxu0 %v2898
    %3963 = vmatprep.subr.bf16.mxu0 %v2891
    %3964 = vmatpush1.bf16.msra.mxu0 %v2890
    %3965 = vmatprep.subr.bf16.mxu0 %v2883
    %3966 = vmatpush1.bf16.msra.mxu0 %v2882
    %3967 = vmatprep.subr.bf16.mxu0 %v2875
    %3968 = vmatpush1.bf16.msra.mxu0 %v2874
    %3969 = vmatprep.subr.bf16.mxu0 %v2867
    %3970 = vmatpush1.bf16.msra.mxu0 %v2866
    %3971 = vmatprep.subr.bf16.mxu0 %v2859
    %3972 = vmatpush1.bf16.msra.mxu0 %v2858
    %3973 = vmatprep.subr.bf16.mxu0 %v2979
    %3974 = vmatpush2.bf16.msra.mxu0 %v2978
    %3975 = vmatprep.subr.bf16.mxu0 %v2971
    %3976 = vmatpush2.bf16.msra.mxu0 %v2970
    %3977 = vmatprep.subr.bf16.mxu0 %v2963
    %3978 = vmatpush2.bf16.msra.mxu0 %v2962
    %3979 = vmatprep.subr.bf16.mxu0 %v2955
    %3980 = vmatpush2.bf16.msra.mxu0 %v2954
    %3981 = vmatprep.subr.bf16.mxu0 %v2947
    %3982 = vmatpush2.bf16.msra.mxu0 %v2946
    %3983 = vmatprep.subr.bf16.mxu0 %v2939
    %3984 = vmatpush2.bf16.msra.mxu0 %v2938
    %3985 = vmatprep.subr.bf16.mxu0 %v2931
    %3986 = vmatpush2.bf16.msra.mxu0 %v2930
    %3987 = vmatprep.subr.bf16.mxu0 %v2923
    %3988 = vmatpush2.bf16.msra.mxu0 %v2922
    %3989 = vmatprep.mubr.bf16.mxu0 %v633
    %3990 = vmatmul.mubr.bf16.gmra.mxu0 %v632
    %v3991 = vpop.f32.mrf.mxu0
    %v3992 = vadd.f32 %v3951, %v3991
    %v3993 = vpop.f32.mrf.mxu0
    %v3994 = vadd.f32 %v3953, %v3993
    %v3995 = vpop.f32.mrf.mxu0
    %v3996 = vpop.f32.mrf.mxu0
    %3997 = vdwg.mxu0
    %3998 = vmatprep.subr.bf16.mxu0 %v3043
    %3999 = vmatpush1.bf16.msra.mxu0 %v3042
    %4000 = vmatprep.subr.bf16.mxu0 %v3035
    %4001 = vmatpush1.bf16.msra.mxu0 %v3034
    %4002 = vmatprep.subr.bf16.mxu0 %v3027
    %4003 = vmatpush1.bf16.msra.mxu0 %v3026
    %4004 = vmatprep.subr.bf16.mxu0 %v3019
    %4005 = vmatpush1.bf16.msra.mxu0 %v3018
    %4006 = vmatprep.subr.bf16.mxu0 %v3011
    %4007 = vmatpush1.bf16.msra.mxu0 %v3010
    %4008 = vmatprep.subr.bf16.mxu0 %v3003
    %4009 = vmatpush1.bf16.msra.mxu0 %v3002
    %4010 = vmatprep.subr.bf16.mxu0 %v2995
    %4011 = vmatpush1.bf16.msra.mxu0 %v2994
    %4012 = vmatprep.subr.bf16.mxu0 %v2987
    %4013 = vmatpush1.bf16.msra.mxu0 %v2986
    %4014 = vmatprep.subr.bf16.mxu0 %v3107
    %4015 = vmatpush2.bf16.msra.mxu0 %v3106
    %4016 = vmatprep.subr.bf16.mxu0 %v3099
    %4017 = vmatpush2.bf16.msra.mxu0 %v3098
    %4018 = vmatprep.subr.bf16.mxu0 %v3091
    %4019 = vmatpush2.bf16.msra.mxu0 %v3090
    %4020 = vmatprep.subr.bf16.mxu0 %v3083
    %4021 = vmatpush2.bf16.msra.mxu0 %v3082
    %4022 = vmatprep.subr.bf16.mxu0 %v3075
    %4023 = vmatpush2.bf16.msra.mxu0 %v3074
    %4024 = vmatprep.subr.bf16.mxu0 %v3067
    %4025 = vmatpush2.bf16.msra.mxu0 %v3066
    %4026 = vmatprep.subr.bf16.mxu0 %v3059
    %4027 = vmatpush2.bf16.msra.mxu0 %v3058
    %4028 = vmatprep.subr.bf16.mxu0 %v3051
    %4029 = vmatpush2.bf16.msra.mxu0 %v3050
    %4030 = vmatprep.mubr.bf16.mxu0 %v635
    %4031 = vmatmul.mubr.bf16.gmra.mxu0 %v634
    %v4032 = vpop.f32.mrf.mxu0
    %v4033 = vadd.f32 %v3992, %v4032
    %v4034 = vpop.f32.mrf.mxu0
    %v4035 = vadd.f32 %v3994, %v4034
    %v4036 = vpop.f32.mrf.mxu0
    %v4037 = vpop.f32.mrf.mxu0
    %4038 = vdwg.mxu0
    %4039 = vmatprep.subr.bf16.mxu0 %v3171
    %4040 = vmatpush1.bf16.msra.mxu0 %v3170
    %4041 = vmatprep.subr.bf16.mxu0 %v3163
    %4042 = vmatpush1.bf16.msra.mxu0 %v3162
    %4043 = vmatprep.subr.bf16.mxu0 %v3155
    %4044 = vmatpush1.bf16.msra.mxu0 %v3154
    %4045 = vmatprep.subr.bf16.mxu0 %v3147
    %4046 = vmatpush1.bf16.msra.mxu0 %v3146
    %4047 = vmatprep.subr.bf16.mxu0 %v3139
    %4048 = vmatpush1.bf16.msra.mxu0 %v3138
    %4049 = vmatprep.subr.bf16.mxu0 %v3131
    %4050 = vmatpush1.bf16.msra.mxu0 %v3130
    %4051 = vmatprep.subr.bf16.mxu0 %v3123
    %4052 = vmatpush1.bf16.msra.mxu0 %v3122
    %4053 = vmatprep.subr.bf16.mxu0 %v3115
    %4054 = vmatpush1.bf16.msra.mxu0 %v3114
    %4055 = vmatprep.subr.bf16.mxu0 %v3235
    %4056 = vmatpush2.bf16.msra.mxu0 %v3234
    %4057 = vmatprep.subr.bf16.mxu0 %v3227
    %4058 = vmatpush2.bf16.msra.mxu0 %v3226
    %4059 = vmatprep.subr.bf16.mxu0 %v3219
    %4060 = vmatpush2.bf16.msra.mxu0 %v3218
    %4061 = vmatprep.subr.bf16.mxu0 %v3211
    %4062 = vmatpush2.bf16.msra.mxu0 %v3210
    %4063 = vmatprep.subr.bf16.mxu0 %v3203
    %4064 = vmatpush2.bf16.msra.mxu0 %v3202
    %4065 = vmatprep.subr.bf16.mxu0 %v3195
    %4066 = vmatpush2.bf16.msra.mxu0 %v3194
    %4067 = vmatprep.subr.bf16.mxu0 %v3187
    %4068 = vmatpush2.bf16.msra.mxu0 %v3186
    %4069 = vmatprep.subr.bf16.mxu0 %v3179
    %4070 = vmatpush2.bf16.msra.mxu0 %v3178
    %4071 = vmatprep.mubr.bf16.mxu0 %v637
    %4072 = vmatmul.mubr.bf16.gmra.mxu0 %v636
    %v4073 = vpop.f32.mrf.mxu0
    %v4074 = vadd.f32 %v4033, %v4073
    %v4075 = vpop.f32.mrf.mxu0
    %v4076 = vadd.f32 %v4035, %v4075
    %v4077 = vpop.f32.mrf.mxu0
    %v4078 = vpop.f32.mrf.mxu0
    %4079 = vdwg.mxu0
    %4080 = vmatprep.subr.bf16.mxu0 %v2789
    %4081 = vmatpush1.bf16.msra.mxu0 %v2788
    %4082 = vmatprep.subr.bf16.mxu0 %v2781
    %4083 = vmatpush1.bf16.msra.mxu0 %v2780
    %4084 = vmatprep.subr.bf16.mxu0 %v2773
    %4085 = vmatpush1.bf16.msra.mxu0 %v2772
    %4086 = vmatprep.subr.bf16.mxu0 %v2765
    %4087 = vmatpush1.bf16.msra.mxu0 %v2764
    %4088 = vmatprep.subr.bf16.mxu0 %v2757
    %4089 = vmatpush1.bf16.msra.mxu0 %v2756
    %4090 = vmatprep.subr.bf16.mxu0 %v2749
    %4091 = vmatpush1.bf16.msra.mxu0 %v2748
    %4092 = vmatprep.subr.bf16.mxu0 %v2741
    %4093 = vmatpush1.bf16.msra.mxu0 %v2740
    %4094 = vmatprep.subr.bf16.mxu0 %v2733
    %4095 = vmatpush1.bf16.msra.mxu0 %v2732
    %4096 = vmatprep.subr.bf16.mxu0 %v2853
    %4097 = vmatpush2.bf16.msra.mxu0 %v2852
    %4098 = vmatprep.subr.bf16.mxu0 %v2845
    %4099 = vmatpush2.bf16.msra.mxu0 %v2844
    %4100 = vmatprep.subr.bf16.mxu0 %v2837
    %4101 = vmatpush2.bf16.msra.mxu0 %v2836
    %4102 = vmatprep.subr.bf16.mxu0 %v2829
    %4103 = vmatpush2.bf16.msra.mxu0 %v2828
    %4104 = vmatprep.subr.bf16.mxu0 %v2821
    %4105 = vmatpush2.bf16.msra.mxu0 %v2820
    %4106 = vmatprep.subr.bf16.mxu0 %v2813
    %4107 = vmatpush2.bf16.msra.mxu0 %v2812
    %4108 = vmatprep.subr.bf16.mxu0 %v2805
    %4109 = vmatpush2.bf16.msra.mxu0 %v2804
    %4110 = vmatprep.subr.bf16.mxu0 %v2797
    %4111 = vmatpush2.bf16.msra.mxu0 %v2796
    %4112 = vmatprep.mubr.bf16.mxu0 %v631
    %4113 = vmatmul.mubr.bf16.gmra.mxu0 %v630
    %v4114 = vpop.f32.mrf.mxu0
    %v4115 = vadd.f32 %v1171, %v4114
    %v4116 = vpop.f32.mrf.mxu0
    %v4117 = vadd.f32 %v1175, %v4116
    %v4118 = vpop.f32.mrf.mxu0
    %v4119 = vpop.f32.mrf.mxu0
    %4120 = vdwg.mxu0
    %4121 = vmatprep.subr.bf16.mxu0 %v2917
    %4122 = vmatpush1.bf16.msra.mxu0 %v2916
    %4123 = vmatprep.subr.bf16.mxu0 %v2909
    %4124 = vmatpush1.bf16.msra.mxu0 %v2908
    %4125 = vmatprep.subr.bf16.mxu0 %v2901
    %4126 = vmatpush1.bf16.msra.mxu0 %v2900
    %4127 = vmatprep.subr.bf16.mxu0 %v2893
    %4128 = vmatpush1.bf16.msra.mxu0 %v2892
    %4129 = vmatprep.subr.bf16.mxu0 %v2885
    %4130 = vmatpush1.bf16.msra.mxu0 %v2884
    %4131 = vmatprep.subr.bf16.mxu0 %v2877
    %4132 = vmatpush1.bf16.msra.mxu0 %v2876
    %4133 = vmatprep.subr.bf16.mxu0 %v2869
    %4134 = vmatpush1.bf16.msra.mxu0 %v2868
    %4135 = vmatprep.subr.bf16.mxu0 %v2861
    %4136 = vmatpush1.bf16.msra.mxu0 %v2860
    %4137 = vmatprep.subr.bf16.mxu0 %v2981
    %4138 = vmatpush2.bf16.msra.mxu0 %v2980
    %4139 = vmatprep.subr.bf16.mxu0 %v2973
    %4140 = vmatpush2.bf16.msra.mxu0 %v2972
    %4141 = vmatprep.subr.bf16.mxu0 %v2965
    %4142 = vmatpush2.bf16.msra.mxu0 %v2964
    %4143 = vmatprep.subr.bf16.mxu0 %v2957
    %4144 = vmatpush2.bf16.msra.mxu0 %v2956
    %4145 = vmatprep.subr.bf16.mxu0 %v2949
    %4146 = vmatpush2.bf16.msra.mxu0 %v2948
    %4147 = vmatprep.subr.bf16.mxu0 %v2941
    %4148 = vmatpush2.bf16.msra.mxu0 %v2940
    %4149 = vmatprep.subr.bf16.mxu0 %v2933
    %4150 = vmatpush2.bf16.msra.mxu0 %v2932
    %4151 = vmatprep.subr.bf16.mxu0 %v2925
    %4152 = vmatpush2.bf16.msra.mxu0 %v2924
    %4153 = vmatprep.mubr.bf16.mxu0 %v633
    %4154 = vmatmul.mubr.bf16.gmra.mxu0 %v632
    %v4155 = vpop.f32.mrf.mxu0
    %v4156 = vadd.f32 %v4115, %v4155
    %v4157 = vpop.f32.mrf.mxu0
    %v4158 = vadd.f32 %v4117, %v4157
    %v4159 = vpop.f32.mrf.mxu0
    %v4160 = vpop.f32.mrf.mxu0
    %4161 = vdwg.mxu0
    %4162 = vmatprep.subr.bf16.mxu0 %v3045
    %4163 = vmatpush1.bf16.msra.mxu0 %v3044
    %4164 = vmatprep.subr.bf16.mxu0 %v3037
    %4165 = vmatpush1.bf16.msra.mxu0 %v3036
    %4166 = vmatprep.subr.bf16.mxu0 %v3029
    %4167 = vmatpush1.bf16.msra.mxu0 %v3028
    %4168 = vmatprep.subr.bf16.mxu0 %v3021
    %4169 = vmatpush1.bf16.msra.mxu0 %v3020
    %4170 = vmatprep.subr.bf16.mxu0 %v3013
    %4171 = vmatpush1.bf16.msra.mxu0 %v3012
    %4172 = vmatprep.subr.bf16.mxu0 %v3005
    %4173 = vmatpush1.bf16.msra.mxu0 %v3004
    %4174 = vmatprep.subr.bf16.mxu0 %v2997
    %4175 = vmatpush1.bf16.msra.mxu0 %v2996
    %4176 = vmatprep.subr.bf16.mxu0 %v2989
    %4177 = vmatpush1.bf16.msra.mxu0 %v2988
    %4178 = vmatprep.subr.bf16.mxu0 %v3109
    %4179 = vmatpush2.bf16.msra.mxu0 %v3108
    %4180 = vmatprep.subr.bf16.mxu0 %v3101
    %4181 = vmatpush2.bf16.msra.mxu0 %v3100
    %4182 = vmatprep.subr.bf16.mxu0 %v3093
    %4183 = vmatpush2.bf16.msra.mxu0 %v3092
    %4184 = vmatprep.subr.bf16.mxu0 %v3085
    %4185 = vmatpush2.bf16.msra.mxu0 %v3084
    %4186 = vmatprep.subr.bf16.mxu0 %v3077
    %4187 = vmatpush2.bf16.msra.mxu0 %v3076
    %4188 = vmatprep.subr.bf16.mxu0 %v3069
    %4189 = vmatpush2.bf16.msra.mxu0 %v3068
    %4190 = vmatprep.subr.bf16.mxu0 %v3061
    %4191 = vmatpush2.bf16.msra.mxu0 %v3060
    %4192 = vmatprep.subr.bf16.mxu0 %v3053
    %4193 = vmatpush2.bf16.msra.mxu0 %v3052
    %4194 = vmatprep.mubr.bf16.mxu0 %v635
    %4195 = vmatmul.mubr.bf16.gmra.mxu0 %v634
    %v4196 = vpop.f32.mrf.mxu0
    %v4197 = vadd.f32 %v4156, %v4196
    %v4198 = vpop.f32.mrf.mxu0
    %v4199 = vadd.f32 %v4158, %v4198
    %v4200 = vpop.f32.mrf.mxu0
    %v4201 = vpop.f32.mrf.mxu0
    %4202 = vdwg.mxu0
    %4203 = vmatprep.subr.bf16.mxu0 %v3173
    %4204 = vmatpush1.bf16.msra.mxu0 %v3172
    %4205 = vmatprep.subr.bf16.mxu0 %v3165
    %4206 = vmatpush1.bf16.msra.mxu0 %v3164
    %4207 = vmatprep.subr.bf16.mxu0 %v3157
    %4208 = vmatpush1.bf16.msra.mxu0 %v3156
    %4209 = vmatprep.subr.bf16.mxu0 %v3149
    %4210 = vmatpush1.bf16.msra.mxu0 %v3148
    %4211 = vmatprep.subr.bf16.mxu0 %v3141
    %4212 = vmatpush1.bf16.msra.mxu0 %v3140
    %4213 = vmatprep.subr.bf16.mxu0 %v3133
    %4214 = vmatpush1.bf16.msra.mxu0 %v3132
    %4215 = vmatprep.subr.bf16.mxu0 %v3125
    %4216 = vmatpush1.bf16.msra.mxu0 %v3124
    %4217 = vmatprep.subr.bf16.mxu0 %v3117
    %4218 = vmatpush1.bf16.msra.mxu0 %v3116
    %4219 = vmatprep.subr.bf16.mxu0 %v3237
    %4220 = vmatpush2.bf16.msra.mxu0 %v3236
    %4221 = vmatprep.subr.bf16.mxu0 %v3229
    %4222 = vmatpush2.bf16.msra.mxu0 %v3228
    %4223 = vmatprep.subr.bf16.mxu0 %v3221
    %4224 = vmatpush2.bf16.msra.mxu0 %v3220
    %4225 = vmatprep.subr.bf16.mxu0 %v3213
    %4226 = vmatpush2.bf16.msra.mxu0 %v3212
    %4227 = vmatprep.subr.bf16.mxu0 %v3205
    %4228 = vmatpush2.bf16.msra.mxu0 %v3204
    %4229 = vmatprep.subr.bf16.mxu0 %v3197
    %4230 = vmatpush2.bf16.msra.mxu0 %v3196
    %4231 = vmatprep.subr.bf16.mxu0 %v3189
    %4232 = vmatpush2.bf16.msra.mxu0 %v3188
    %4233 = vmatprep.subr.bf16.mxu0 %v3181
    %4234 = vmatpush2.bf16.msra.mxu0 %v3180
    %4235 = vmatprep.mubr.bf16.mxu0 %v637
    %4236 = vmatmul.mubr.bf16.gmra.mxu0 %v636
    %v4237 = vpop.f32.mrf.mxu0
    %v4238 = vadd.f32 %v4197, %v4237
    %v4239 = vpop.f32.mrf.mxu0
    %v4240 = vadd.f32 %v4199, %v4239
    %v4241 = vpop.f32.mrf.mxu0
    %v4242 = vpop.f32.mrf.mxu0
    %4243 = vdwg.mxu0
    %4244 = vmatprep.subr.bf16.mxu0 %v2791
    %4245 = vmatpush1.bf16.msra.mxu0 %v2790
    %4246 = vmatprep.subr.bf16.mxu0 %v2783
    %4247 = vmatpush1.bf16.msra.mxu0 %v2782
    %4248 = vmatprep.subr.bf16.mxu0 %v2775
    %4249 = vmatpush1.bf16.msra.mxu0 %v2774
    %4250 = vmatprep.subr.bf16.mxu0 %v2767
    %4251 = vmatpush1.bf16.msra.mxu0 %v2766
    %4252 = vmatprep.subr.bf16.mxu0 %v2759
    %4253 = vmatpush1.bf16.msra.mxu0 %v2758
    %4254 = vmatprep.subr.bf16.mxu0 %v2751
    %4255 = vmatpush1.bf16.msra.mxu0 %v2750
    %4256 = vmatprep.subr.bf16.mxu0 %v2743
    %4257 = vmatpush1.bf16.msra.mxu0 %v2742
    %4258 = vmatprep.subr.bf16.mxu0 %v2735
    %4259 = vmatpush1.bf16.msra.mxu0 %v2734
    %4260 = vmatprep.subr.bf16.mxu0 %v2855
    %4261 = vmatpush2.bf16.msra.mxu0 %v2854
    %4262 = vmatprep.subr.bf16.mxu0 %v2847
    %4263 = vmatpush2.bf16.msra.mxu0 %v2846
    %4264 = vmatprep.subr.bf16.mxu0 %v2839
    %4265 = vmatpush2.bf16.msra.mxu0 %v2838
    %4266 = vmatprep.subr.bf16.mxu0 %v2831
    %4267 = vmatpush2.bf16.msra.mxu0 %v2830
    %4268 = vmatprep.subr.bf16.mxu0 %v2823
    %4269 = vmatpush2.bf16.msra.mxu0 %v2822
    %4270 = vmatprep.subr.bf16.mxu0 %v2815
    %4271 = vmatpush2.bf16.msra.mxu0 %v2814
    %4272 = vmatprep.subr.bf16.mxu0 %v2807
    %4273 = vmatpush2.bf16.msra.mxu0 %v2806
    %4274 = vmatprep.subr.bf16.mxu0 %v2799
    %4275 = vmatpush2.bf16.msra.mxu0 %v2798
    %4276 = vmatprep.mubr.bf16.mxu0 %v631
    %4277 = vmatmul.mubr.bf16.gmra.mxu0 %v630
    %v4278 = vpop.f32.mrf.mxu0
    %v4279 = vadd.f32 %v1179, %v4278
    %v4280 = vpop.f32.mrf.mxu0
    %v4281 = vadd.f32 %v1183, %v4280
    %v4282 = vpop.f32.mrf.mxu0
    %v4283 = vpop.f32.mrf.mxu0
    %4284 = vdwg.mxu0
    %4285 = vmatprep.subr.bf16.mxu0 %v2919
    %4286 = vmatpush1.bf16.msra.mxu0 %v2918
    %4287 = vmatprep.subr.bf16.mxu0 %v2911
    %4288 = vmatpush1.bf16.msra.mxu0 %v2910
    %4289 = vmatprep.subr.bf16.mxu0 %v2903
    %4290 = vmatpush1.bf16.msra.mxu0 %v2902
    %4291 = vmatprep.subr.bf16.mxu0 %v2895
    %4292 = vmatpush1.bf16.msra.mxu0 %v2894
    %4293 = vmatprep.subr.bf16.mxu0 %v2887
    %4294 = vmatpush1.bf16.msra.mxu0 %v2886
    %4295 = vmatprep.subr.bf16.mxu0 %v2879
    %4296 = vmatpush1.bf16.msra.mxu0 %v2878
    %4297 = vmatprep.subr.bf16.mxu0 %v2871
    %4298 = vmatpush1.bf16.msra.mxu0 %v2870
    %4299 = vmatprep.subr.bf16.mxu0 %v2863
    %4300 = vmatpush1.bf16.msra.mxu0 %v2862
    %4301 = vmatprep.subr.bf16.mxu0 %v2983
    %4302 = vmatpush2.bf16.msra.mxu0 %v2982
    %4303 = vmatprep.subr.bf16.mxu0 %v2975
    %4304 = vmatpush2.bf16.msra.mxu0 %v2974
    %4305 = vmatprep.subr.bf16.mxu0 %v2967
    %4306 = vmatpush2.bf16.msra.mxu0 %v2966
    %4307 = vmatprep.subr.bf16.mxu0 %v2959
    %4308 = vmatpush2.bf16.msra.mxu0 %v2958
    %4309 = vmatprep.subr.bf16.mxu0 %v2951
    %4310 = vmatpush2.bf16.msra.mxu0 %v2950
    %4311 = vmatprep.subr.bf16.mxu0 %v2943
    %4312 = vmatpush2.bf16.msra.mxu0 %v2942
    %4313 = vmatprep.subr.bf16.mxu0 %v2935
    %4314 = vmatpush2.bf16.msra.mxu0 %v2934
    %4315 = vmatprep.subr.bf16.mxu0 %v2927
    %4316 = vmatpush2.bf16.msra.mxu0 %v2926
    %4317 = vmatprep.mubr.bf16.mxu0 %v633
    %4318 = vmatmul.mubr.bf16.gmra.mxu0 %v632
    %v4319 = vpop.f32.mrf.mxu0
    %v4320 = vadd.f32 %v4279, %v4319
    %v4321 = vpop.f32.mrf.mxu0
    %v4322 = vadd.f32 %v4281, %v4321
    %v4323 = vpop.f32.mrf.mxu0
    %v4324 = vpop.f32.mrf.mxu0
    %4325 = vdwg.mxu0
    %4326 = vmatprep.subr.bf16.mxu0 %v3047
    %4327 = vmatpush1.bf16.msra.mxu0 %v3046
    %4328 = vmatprep.subr.bf16.mxu0 %v3039
    %4329 = vmatpush1.bf16.msra.mxu0 %v3038
    %4330 = vmatprep.subr.bf16.mxu0 %v3031
    %4331 = vmatpush1.bf16.msra.mxu0 %v3030
    %4332 = vmatprep.subr.bf16.mxu0 %v3023
    %4333 = vmatpush1.bf16.msra.mxu0 %v3022
    %4334 = vmatprep.subr.bf16.mxu0 %v3015
    %4335 = vmatpush1.bf16.msra.mxu0 %v3014
    %4336 = vmatprep.subr.bf16.mxu0 %v3007
    %4337 = vmatpush1.bf16.msra.mxu0 %v3006
    %4338 = vmatprep.subr.bf16.mxu0 %v2999
    %4339 = vmatpush1.bf16.msra.mxu0 %v2998
    %4340 = vmatprep.subr.bf16.mxu0 %v2991
    %4341 = vmatpush1.bf16.msra.mxu0 %v2990
    %4342 = vmatprep.subr.bf16.mxu0 %v3111
    %4343 = vmatpush2.bf16.msra.mxu0 %v3110
    %4344 = vmatprep.subr.bf16.mxu0 %v3103
    %4345 = vmatpush2.bf16.msra.mxu0 %v3102
    %4346 = vmatprep.subr.bf16.mxu0 %v3095
    %4347 = vmatpush2.bf16.msra.mxu0 %v3094
    %4348 = vmatprep.subr.bf16.mxu0 %v3087
    %4349 = vmatpush2.bf16.msra.mxu0 %v3086
    %4350 = vmatprep.subr.bf16.mxu0 %v3079
    %4351 = vmatpush2.bf16.msra.mxu0 %v3078
    %4352 = vmatprep.subr.bf16.mxu0 %v3071
    %4353 = vmatpush2.bf16.msra.mxu0 %v3070
    %4354 = vmatprep.subr.bf16.mxu0 %v3063
    %4355 = vmatpush2.bf16.msra.mxu0 %v3062
    %4356 = vmatprep.subr.bf16.mxu0 %v3055
    %4357 = vmatpush2.bf16.msra.mxu0 %v3054
    %4358 = vmatprep.mubr.bf16.mxu0 %v635
    %4359 = vmatmul.mubr.bf16.gmra.mxu0 %v634
    %v4360 = vpop.f32.mrf.mxu0
    %v4361 = vadd.f32 %v4320, %v4360
    %v4362 = vpop.f32.mrf.mxu0
    %v4363 = vadd.f32 %v4322, %v4362
    %v4364 = vpop.f32.mrf.mxu0
    %v4365 = vpop.f32.mrf.mxu0
    %4366 = vdwg.mxu0
    %4367 = vmatprep.subr.bf16.mxu0 %v3175
    %4368 = vmatpush1.bf16.msra.mxu0 %v3174
    %4369 = vmatprep.subr.bf16.mxu0 %v3167
    %4370 = vmatpush1.bf16.msra.mxu0 %v3166
    %4371 = vmatprep.subr.bf16.mxu0 %v3159
    %4372 = vmatpush1.bf16.msra.mxu0 %v3158
    %4373 = vmatprep.subr.bf16.mxu0 %v3151
    %4374 = vmatpush1.bf16.msra.mxu0 %v3150
    %4375 = vmatprep.subr.bf16.mxu0 %v3143
    %4376 = vmatpush1.bf16.msra.mxu0 %v3142
    %4377 = vmatprep.subr.bf16.mxu0 %v3135
    %4378 = vmatpush1.bf16.msra.mxu0 %v3134
    %4379 = vmatprep.subr.bf16.mxu0 %v3127
    %4380 = vmatpush1.bf16.msra.mxu0 %v3126
    %4381 = vmatprep.subr.bf16.mxu0 %v3119
    %4382 = vmatpush1.bf16.msra.mxu0 %v3118
    %4383 = vmatprep.subr.bf16.mxu0 %v3239
    %4384 = vmatpush2.bf16.msra.mxu0 %v3238
    %4385 = vmatprep.subr.bf16.mxu0 %v3231
    %4386 = vmatpush2.bf16.msra.mxu0 %v3230
    %4387 = vmatprep.subr.bf16.mxu0 %v3223
    %4388 = vmatpush2.bf16.msra.mxu0 %v3222
    %4389 = vmatprep.subr.bf16.mxu0 %v3215
    %4390 = vmatpush2.bf16.msra.mxu0 %v3214
    %4391 = vmatprep.subr.bf16.mxu0 %v3207
    %4392 = vmatpush2.bf16.msra.mxu0 %v3206
    %4393 = vmatprep.subr.bf16.mxu0 %v3199
    %4394 = vmatpush2.bf16.msra.mxu0 %v3198
    %4395 = vmatprep.subr.bf16.mxu0 %v3191
    %4396 = vmatpush2.bf16.msra.mxu0 %v3190
    %4397 = vmatprep.subr.bf16.mxu0 %v3183
    %4398 = vmatpush2.bf16.msra.mxu0 %v3182
    %4399 = vmatprep.mubr.bf16.mxu0 %v637
    %4400 = vmatmul.mubr.bf16.gmra.mxu0 %v636
    %v4401 = vpop.f32.mrf.mxu0
    %v4402 = vadd.f32 %v4361, %v4401
    %v4403 = vpop.f32.mrf.mxu0
    %v4404 = vadd.f32 %v4363, %v4403
    %v4405 = vpop.f32.mrf.mxu0
    %v4406 = vpop.f32.mrf.mxu0
    %4407 = vdwg.mxu0
    %v4408 = vmax.f32 %v3910, 0.0
    %v4409 = vmax.f32 %v3912, 0.0
    %v4410 = vmax.f32 %v4074, 0.0
    %v4411 = vmax.f32 %v4076, 0.0
    %v4412 = vmax.f32 %v4238, 0.0
    %v4413 = vmax.f32 %v4240, 0.0
    %v4414 = vmax.f32 %v4402, 0.0
    %v4415 = vmax.f32 %v4404, 0.0
    %v4416 = vpack.c.bf16 %v4408, %v4408
    %v4417 = vpack.c.bf16 %v4409, %v4409
    %v4418 = vpack.c.bf16 %v4410, %v4410
    %v4419 = vpack.c.bf16 %v4411, %v4411
    %v4420 = vpack.c.bf16 %v4412, %v4412
    %v4421 = vpack.c.bf16 %v4413, %v4413
    %v4422 = vpack.c.bf16 %v4414, %v4414
    %v4423 = vpack.c.bf16 %v4415, %v4415
    %v4424 = vld [vmem:[%s5] sm:$0xf]
    %v4425 = vld [vmem:[%s5 + $0x4] sm:$0xf]
    %v4426 = vld [vmem:[%s5 + $0x8] sm:$0xf]
    %v4427 = vld [vmem:[%s5 + $0xc] sm:$0xf]
    %v4428 = vld [vmem:[%s5 + $0x10] sm:$0xf]
    %v4429 = vld [vmem:[%s5 + $0x14] sm:$0xf]
    %v4430 = vld [vmem:[%s5 + $0x18] sm:$0xf]
    %v4431 = vld [vmem:[%s5 + $0x1c] sm:$0xf]
    %v4432 = vld [vmem:[%s5 + $0x20] sm:$0xf]
    %v4433 = vld [vmem:[%s5 + $0x24] sm:$0xf]
    %v4434 = vld [vmem:[%s5 + $0x28] sm:$0xf]
    %v4435 = vld [vmem:[%s5 + $0x2c] sm:$0xf]
    %v4436 = vld [vmem:[%s5 + $0x30] sm:$0xf]
    %v4437 = vld [vmem:[%s5 + $0x34] sm:$0xf]
    %v4438 = vld [vmem:[%s5 + $0x38] sm:$0xf]
    %v4439 = vld [vmem:[%s5 + $0x3c] sm:$0xf]
    %v4440 = vld [vmem:[%s5 + $0x40] sm:$0xf]
    %v4441 = vld [vmem:[%s5 + $0x44] sm:$0xf]
    %v4442 = vld [vmem:[%s5 + $0x48] sm:$0xf]
    %v4443 = vld [vmem:[%s5 + $0x4c] sm:$0xf]
    %v4444 = vld [vmem:[%s5 + $0x50] sm:$0xf]
    %v4445 = vld [vmem:[%s5 + $0x54] sm:$0xf]
    %v4446 = vld [vmem:[%s5 + $0x58] sm:$0xf]
    %v4447 = vld [vmem:[%s5 + $0x5c] sm:$0xf]
    %v4448 = vld [vmem:[%s5 + $0x60] sm:$0xf]
    %v4449 = vld [vmem:[%s5 + $0x64] sm:$0xf]
    %v4450 = vld [vmem:[%s5 + $0x68] sm:$0xf]
    %v4451 = vld [vmem:[%s5 + $0x6c] sm:$0xf]
    %v4452 = vld [vmem:[%s5 + $0x70] sm:$0xf]
    %v4453 = vld [vmem:[%s5 + $0x74] sm:$0xf]
    %v4454 = vld [vmem:[%s5 + $0x78] sm:$0xf]
    %v4455 = vld [vmem:[%s5 + $0x7c] sm:$0xf]
    %v4456 = vld [vmem:[%s5 + $0x80] sm:$0xf]
    %v4457 = vld [vmem:[%s5 + $0x84] sm:$0xf]
    %v4458 = vld [vmem:[%s5 + $0x88] sm:$0xf]
    %v4459 = vld [vmem:[%s5 + $0x8c] sm:$0xf]
    %v4460 = vld [vmem:[%s5 + $0x90] sm:$0xf]
    %v4461 = vld [vmem:[%s5 + $0x94] sm:$0xf]
    %v4462 = vld [vmem:[%s5 + $0x98] sm:$0xf]
    %v4463 = vld [vmem:[%s5 + $0x9c] sm:$0xf]
    %v4464 = vld [vmem:[%s5 + $0xa0] sm:$0xf]
    %v4465 = vld [vmem:[%s5 + $0xa4] sm:$0xf]
    %v4466 = vld [vmem:[%s5 + $0xa8] sm:$0xf]
    %v4467 = vld [vmem:[%s5 + $0xac] sm:$0xf]
    %v4468 = vld [vmem:[%s5 + $0xb0] sm:$0xf]
    %v4469 = vld [vmem:[%s5 + $0xb4] sm:$0xf]
    %v4470 = vld [vmem:[%s5 + $0xb8] sm:$0xf]
    %v4471 = vld [vmem:[%s5 + $0xbc] sm:$0xf]
    %v4472 = vld [vmem:[%s5 + $0xc0] sm:$0xf]
    %v4473 = vld [vmem:[%s5 + $0xc4] sm:$0xf]
    %v4474 = vld [vmem:[%s5 + $0xc8] sm:$0xf]
    %v4475 = vld [vmem:[%s5 + $0xcc] sm:$0xf]
    %v4476 = vld [vmem:[%s5 + $0xd0] sm:$0xf]
    %v4477 = vld [vmem:[%s5 + $0xd4] sm:$0xf]
    %v4478 = vld [vmem:[%s5 + $0xd8] sm:$0xf]
    %v4479 = vld [vmem:[%s5 + $0xdc] sm:$0xf]
    %v4480 = vld [vmem:[%s5 + $0xe0] sm:$0xf]
    %v4481 = vld [vmem:[%s5 + $0xe4] sm:$0xf]
    %v4482 = vld [vmem:[%s5 + $0xe8] sm:$0xf]
    %v4483 = vld [vmem:[%s5 + $0xec] sm:$0xf]
    %v4484 = vld [vmem:[%s5 + $0xf0] sm:$0xf]
    %v4485 = vld [vmem:[%s5 + $0xf4] sm:$0xf]
    %v4486 = vld [vmem:[%s5 + $0xf8] sm:$0xf]
    %v4487 = vld [vmem:[%s5 + $0xfc] sm:$0xf]
    %v4488 = vld [vmem:[%s5 + $0x100] sm:$0xf]
    %v4489 = vld [vmem:[%s5 + $0x104] sm:$0xf]
    %v4490 = vld [vmem:[%s5 + $0x108] sm:$0xf]
    %v4491 = vld [vmem:[%s5 + $0x10c] sm:$0xf]
    %v4492 = vld [vmem:[%s5 + $0x110] sm:$0xf]
    %v4493 = vld [vmem:[%s5 + $0x114] sm:$0xf]
    %v4494 = vld [vmem:[%s5 + $0x118] sm:$0xf]
    %v4495 = vld [vmem:[%s5 + $0x11c] sm:$0xf]
    %v4496 = vld [vmem:[%s5 + $0x120] sm:$0xf]
    %v4497 = vld [vmem:[%s5 + $0x124] sm:$0xf]
    %v4498 = vld [vmem:[%s5 + $0x128] sm:$0xf]
    %v4499 = vld [vmem:[%s5 + $0x12c] sm:$0xf]
    %v4500 = vld [vmem:[%s5 + $0x130] sm:$0xf]
    %v4501 = vld [vmem:[%s5 + $0x134] sm:$0xf]
    %v4502 = vld [vmem:[%s5 + $0x138] sm:$0xf]
    %v4503 = vld [vmem:[%s5 + $0x13c] sm:$0xf]
    %v4504 = vld [vmem:[%s5 + $0x140] sm:$0xf]
    %v4505 = vld [vmem:[%s5 + $0x144] sm:$0xf]
    %v4506 = vld [vmem:[%s5 + $0x148] sm:$0xf]
    %v4507 = vld [vmem:[%s5 + $0x14c] sm:$0xf]
    %v4508 = vld [vmem:[%s5 + $0x150] sm:$0xf]
    %v4509 = vld [vmem:[%s5 + $0x154] sm:$0xf]
    %v4510 = vld [vmem:[%s5 + $0x158] sm:$0xf]
    %v4511 = vld [vmem:[%s5 + $0x15c] sm:$0xf]
    %v4512 = vld [vmem:[%s5 + $0x160] sm:$0xf]
    %v4513 = vld [vmem:[%s5 + $0x164] sm:$0xf]
    %v4514 = vld [vmem:[%s5 + $0x168] sm:$0xf]
    %v4515 = vld [vmem:[%s5 + $0x16c] sm:$0xf]
    %v4516 = vld [vmem:[%s5 + $0x170] sm:$0xf]
    %v4517 = vld [vmem:[%s5 + $0x174] sm:$0xf]
    %v4518 = vld [vmem:[%s5 + $0x178] sm:$0xf]
    %v4519 = vld [vmem:[%s5 + $0x17c] sm:$0xf]
    %v4520 = vld [vmem:[%s5 + $0x180] sm:$0xf]
    %v4521 = vld [vmem:[%s5 + $0x184] sm:$0xf]
    %v4522 = vld [vmem:[%s5 + $0x188] sm:$0xf]
    %v4523 = vld [vmem:[%s5 + $0x18c] sm:$0xf]
    %v4524 = vld [vmem:[%s5 + $0x190] sm:$0xf]
    %v4525 = vld [vmem:[%s5 + $0x194] sm:$0xf]
    %v4526 = vld [vmem:[%s5 + $0x198] sm:$0xf]
    %v4527 = vld [vmem:[%s5 + $0x19c] sm:$0xf]
    %v4528 = vld [vmem:[%s5 + $0x1a0] sm:$0xf]
    %v4529 = vld [vmem:[%s5 + $0x1a4] sm:$0xf]
    %v4530 = vld [vmem:[%s5 + $0x1a8] sm:$0xf]
    %v4531 = vld [vmem:[%s5 + $0x1ac] sm:$0xf]
    %v4532 = vld [vmem:[%s5 + $0x1b0] sm:$0xf]
    %v4533 = vld [vmem:[%s5 + $0x1b4] sm:$0xf]
    %v4534 = vld [vmem:[%s5 + $0x1b8] sm:$0xf]
    %v4535 = vld [vmem:[%s5 + $0x1bc] sm:$0xf]
    %v4536 = vld [vmem:[%s5 + $0x1c0] sm:$0xf]
    %v4537 = vld [vmem:[%s5 + $0x1c4] sm:$0xf]
    %v4538 = vld [vmem:[%s5 + $0x1c8] sm:$0xf]
    %v4539 = vld [vmem:[%s5 + $0x1cc] sm:$0xf]
    %v4540 = vld [vmem:[%s5 + $0x1d0] sm:$0xf]
    %v4541 = vld [vmem:[%s5 + $0x1d4] sm:$0xf]
    %v4542 = vld [vmem:[%s5 + $0x1d8] sm:$0xf]
    %v4543 = vld [vmem:[%s5 + $0x1dc] sm:$0xf]
    %v4544 = vld [vmem:[%s5 + $0x1e0] sm:$0xf]
    %v4545 = vld [vmem:[%s5 + $0x1e4] sm:$0xf]
    %v4546 = vld [vmem:[%s5 + $0x1e8] sm:$0xf]
    %v4547 = vld [vmem:[%s5 + $0x1ec] sm:$0xf]
    %v4548 = vld [vmem:[%s5 + $0x1f0] sm:$0xf]
    %v4549 = vld [vmem:[%s5 + $0x1f4] sm:$0xf]
    %v4550 = vld [vmem:[%s5 + $0x1f8] sm:$0xf]
    %v4551 = vld [vmem:[%s5 + $0x1fc] sm:$0xf]
    %v4552 = vld [vmem:[%s6] sm:$0x1]
    %v4554 = vlaneseq
    %v4555 = vshrl.u32 %v4554, 7
    %v4556 = vsub.s32 0, %v4555
    %v4557 = vrot.slane %v4552, %v4556
    %v4687 = vunpack.c.l.b16 %v4424
    %v4688 = vunpack.c.l.b16 %v4425
    %v4689 = vunpack.c.l.b16 %v4426
    %v4690 = vunpack.c.l.b16 %v4427
    %v4691 = vunpack.c.l.b16 %v4428
    %v4692 = vunpack.c.l.b16 %v4429
    %v4693 = vunpack.c.l.b16 %v4430
    %v4694 = vunpack.c.l.b16 %v4431
    %v4695 = vunpack.c.l.b16 %v4432
    %v4696 = vunpack.c.l.b16 %v4433
    %v4697 = vunpack.c.l.b16 %v4434
    %v4698 = vunpack.c.l.b16 %v4435
    %v4699 = vunpack.c.l.b16 %v4436
    %v4700 = vunpack.c.l.b16 %v4437
    %v4701 = vunpack.c.l.b16 %v4438
    %v4702 = vunpack.c.l.b16 %v4439
    %v4703 = vunpack.c.l.b16 %v4440
    %v4704 = vunpack.c.l.b16 %v4441
    %v4705 = vunpack.c.l.b16 %v4442
    %v4706 = vunpack.c.l.b16 %v4443
    %v4707 = vunpack.c.l.b16 %v4444
    %v4708 = vunpack.c.l.b16 %v4445
    %v4709 = vunpack.c.l.b16 %v4446
    %v4710 = vunpack.c.l.b16 %v4447
    %v4711 = vunpack.c.l.b16 %v4448
    %v4712 = vunpack.c.l.b16 %v4449
    %v4713 = vunpack.c.l.b16 %v4450
    %v4714 = vunpack.c.l.b16 %v4451
    %v4715 = vunpack.c.l.b16 %v4452
    %v4716 = vunpack.c.l.b16 %v4453
    %v4717 = vunpack.c.l.b16 %v4454
    %v4718 = vunpack.c.l.b16 %v4455
    %v4719 = vunpack.c.l.b16 %v4456
    %v4720 = vunpack.c.l.b16 %v4457
    %v4721 = vunpack.c.l.b16 %v4458
    %v4722 = vunpack.c.l.b16 %v4459
    %v4723 = vunpack.c.l.b16 %v4460
    %v4724 = vunpack.c.l.b16 %v4461
    %v4725 = vunpack.c.l.b16 %v4462
    %v4726 = vunpack.c.l.b16 %v4463
    %v4727 = vunpack.c.l.b16 %v4464
    %v4728 = vunpack.c.l.b16 %v4465
    %v4729 = vunpack.c.l.b16 %v4466
    %v4730 = vunpack.c.l.b16 %v4467
    %v4731 = vunpack.c.l.b16 %v4468
    %v4732 = vunpack.c.l.b16 %v4469
    %v4733 = vunpack.c.l.b16 %v4470
    %v4734 = vunpack.c.l.b16 %v4471
    %v4735 = vunpack.c.l.b16 %v4472
    %v4736 = vunpack.c.l.b16 %v4473
    %v4737 = vunpack.c.l.b16 %v4474
    %v4738 = vunpack.c.l.b16 %v4475
    %v4739 = vunpack.c.l.b16 %v4476
    %v4740 = vunpack.c.l.b16 %v4477
    %v4741 = vunpack.c.l.b16 %v4478
    %v4742 = vunpack.c.l.b16 %v4479
    %v4743 = vunpack.c.l.b16 %v4480
    %v4744 = vunpack.c.l.b16 %v4481
    %v4745 = vunpack.c.l.b16 %v4482
    %v4746 = vunpack.c.l.b16 %v4483
    %v4747 = vunpack.c.l.b16 %v4484
    %v4748 = vunpack.c.l.b16 %v4485
    %v4749 = vunpack.c.l.b16 %v4486
    %v4750 = vunpack.c.l.b16 %v4487
    %v4751 = vunpack.c.l.b16 %v4488
    %v4752 = vunpack.c.l.b16 %v4489
    %v4753 = vunpack.c.l.b16 %v4490
    %v4754 = vunpack.c.l.b16 %v4491
    %v4755 = vunpack.c.l.b16 %v4492
    %v4756 = vunpack.c.l.b16 %v4493
    %v4757 = vunpack.c.l.b16 %v4494
    %v4758 = vunpack.c.l.b16 %v4495
    %v4759 = vunpack.c.l.b16 %v4496
    %v4760 = vunpack.c.l.b16 %v4497
    %v4761 = vunpack.c.l.b16 %v4498
    %v4762 = vunpack.c.l.b16 %v4499
    %v4763 = vunpack.c.l.b16 %v4500
    %v4764 = vunpack.c.l.b16 %v4501
    %v4765 = vunpack.c.l.b16 %v4502
    %v4766 = vunpack.c.l.b16 %v4503
    %v4767 = vunpack.c.l.b16 %v4504
    %v4768 = vunpack.c.l.b16 %v4505
    %v4769 = vunpack.c.l.b16 %v4506
    %v4770 = vunpack.c.l.b16 %v4507
    %v4771 = vunpack.c.l.b16 %v4508
    %v4772 = vunpack.c.l.b16 %v4509
    %v4773 = vunpack.c.l.b16 %v4510
    %v4774 = vunpack.c.l.b16 %v4511
    %v4775 = vunpack.c.l.b16 %v4512
    %v4776 = vunpack.c.l.b16 %v4513
    %v4777 = vunpack.c.l.b16 %v4514
    %v4778 = vunpack.c.l.b16 %v4515
    %v4779 = vunpack.c.l.b16 %v4516
    %v4780 = vunpack.c.l.b16 %v4517
    %v4781 = vunpack.c.l.b16 %v4518
    %v4782 = vunpack.c.l.b16 %v4519
    %v4783 = vunpack.c.l.b16 %v4520
    %v4784 = vunpack.c.l.b16 %v4521
    %v4785 = vunpack.c.l.b16 %v4522
    %v4786 = vunpack.c.l.b16 %v4523
    %v4787 = vunpack.c.l.b16 %v4524
    %v4788 = vunpack.c.l.b16 %v4525
    %v4789 = vunpack.c.l.b16 %v4526
    %v4790 = vunpack.c.l.b16 %v4527
    %v4791 = vunpack.c.l.b16 %v4528
    %v4792 = vunpack.c.l.b16 %v4529
    %v4793 = vunpack.c.l.b16 %v4530
    %v4794 = vunpack.c.l.b16 %v4531
    %v4795 = vunpack.c.l.b16 %v4532
    %v4796 = vunpack.c.l.b16 %v4533
    %v4797 = vunpack.c.l.b16 %v4534
    %v4798 = vunpack.c.l.b16 %v4535
    %v4799 = vunpack.c.l.b16 %v4536
    %v4800 = vunpack.c.l.b16 %v4537
    %v4801 = vunpack.c.l.b16 %v4538
    %v4802 = vunpack.c.l.b16 %v4539
    %v4803 = vunpack.c.l.b16 %v4540
    %v4804 = vunpack.c.l.b16 %v4541
    %v4805 = vunpack.c.l.b16 %v4542
    %v4806 = vunpack.c.l.b16 %v4543
    %v4807 = vunpack.c.l.b16 %v4544
    %v4808 = vunpack.c.l.b16 %v4545
    %v4809 = vunpack.c.l.b16 %v4546
    %v4810 = vunpack.c.l.b16 %v4547
    %v4811 = vunpack.c.l.b16 %v4548
    %v4812 = vunpack.c.l.b16 %v4549
    %v4813 = vunpack.c.l.b16 %v4550
    %v4814 = vunpack.c.l.b16 %v4551
    %v4815 = vpack.c.b16 %v4688, %v4687
    %v4816 = vpack.c.b16 %v4690, %v4689
    %v4817 = vpack.c.b16 %v4692, %v4691
    %v4818 = vpack.c.b16 %v4694, %v4693
    %v4819 = vpack.c.b16 %v4696, %v4695
    %v4820 = vpack.c.b16 %v4698, %v4697
    %v4821 = vpack.c.b16 %v4700, %v4699
    %v4822 = vpack.c.b16 %v4702, %v4701
    %v4823 = vpack.c.b16 %v4704, %v4703
    %v4824 = vpack.c.b16 %v4706, %v4705
    %v4825 = vpack.c.b16 %v4708, %v4707
    %v4826 = vpack.c.b16 %v4710, %v4709
    %v4827 = vpack.c.b16 %v4712, %v4711
    %v4828 = vpack.c.b16 %v4714, %v4713
    %v4829 = vpack.c.b16 %v4716, %v4715
    %v4830 = vpack.c.b16 %v4718, %v4717
    %v4831 = vpack.c.b16 %v4720, %v4719
    %v4832 = vpack.c.b16 %v4722, %v4721
    %v4833 = vpack.c.b16 %v4724, %v4723
    %v4834 = vpack.c.b16 %v4726, %v4725
    %v4835 = vpack.c.b16 %v4728, %v4727
    %v4836 = vpack.c.b16 %v4730, %v4729
    %v4837 = vpack.c.b16 %v4732, %v4731
    %v4838 = vpack.c.b16 %v4734, %v4733
    %v4839 = vpack.c.b16 %v4736, %v4735
    %v4840 = vpack.c.b16 %v4738, %v4737
    %v4841 = vpack.c.b16 %v4740, %v4739
    %v4842 = vpack.c.b16 %v4742, %v4741
    %v4843 = vpack.c.b16 %v4744, %v4743
    %v4844 = vpack.c.b16 %v4746, %v4745
    %v4845 = vpack.c.b16 %v4748, %v4747
    %v4846 = vpack.c.b16 %v4750, %v4749
    %v4847 = vpack.c.b16 %v4752, %v4751
    %v4848 = vpack.c.b16 %v4754, %v4753
    %v4849 = vpack.c.b16 %v4756, %v4755
    %v4850 = vpack.c.b16 %v4758, %v4757
    %v4851 = vpack.c.b16 %v4760, %v4759
    %v4852 = vpack.c.b16 %v4762, %v4761
    %v4853 = vpack.c.b16 %v4764, %v4763
    %v4854 = vpack.c.b16 %v4766, %v4765
    %v4855 = vpack.c.b16 %v4768, %v4767
    %v4856 = vpack.c.b16 %v4770, %v4769
    %v4857 = vpack.c.b16 %v4772, %v4771
    %v4858 = vpack.c.b16 %v4774, %v4773
    %v4859 = vpack.c.b16 %v4776, %v4775
    %v4860 = vpack.c.b16 %v4778, %v4777
    %v4861 = vpack.c.b16 %v4780, %v4779
    %v4862 = vpack.c.b16 %v4782, %v4781
    %v4863 = vpack.c.b16 %v4784, %v4783
    %v4864 = vpack.c.b16 %v4786, %v4785
    %v4865 = vpack.c.b16 %v4788, %v4787
    %v4866 = vpack.c.b16 %v4790, %v4789
    %v4867 = vpack.c.b16 %v4792, %v4791
    %v4868 = vpack.c.b16 %v4794, %v4793
    %v4869 = vpack.c.b16 %v4796, %v4795
    %v4870 = vpack.c.b16 %v4798, %v4797
    %v4871 = vpack.c.b16 %v4800, %v4799
    %v4872 = vpack.c.b16 %v4802, %v4801
    %v4873 = vpack.c.b16 %v4804, %v4803
    %v4874 = vpack.c.b16 %v4806, %v4805
    %v4875 = vpack.c.b16 %v4808, %v4807
    %v4876 = vpack.c.b16 %v4810, %v4809
    %v4877 = vpack.c.b16 %v4812, %v4811
    %v4878 = vpack.c.b16 %v4814, %v4813
    %4943 = vmatprep.subr.bf16.mxu0 0
    %4944 = vmatpush1.bf16.msra.mxu0 %v4822
    %4945 = vmatprep.subr.bf16.mxu0 0
    %4946 = vmatpush1.bf16.msra.mxu0 %v4821
    %4947 = vmatprep.subr.bf16.mxu0 0
    %4948 = vmatpush1.bf16.msra.mxu0 %v4820
    %4949 = vmatprep.subr.bf16.mxu0 0
    %4950 = vmatpush1.bf16.msra.mxu0 %v4819
    %4951 = vmatprep.subr.bf16.mxu0 0
    %4952 = vmatpush1.bf16.msra.mxu0 %v4818
    %4953 = vmatprep.subr.bf16.mxu0 0
    %4954 = vmatpush1.bf16.msra.mxu0 %v4817
    %4955 = vmatprep.subr.bf16.mxu0 0
    %4956 = vmatpush1.bf16.msra.mxu0 %v4816
    %4957 = vmatprep.subr.bf16.mxu0 0
    %4958 = vmatpush1.bf16.msra.mxu0 %v4815
    %4959 = vmatprep.subr.bf16.mxu0 0
    %4960 = vmatpush2.bf16.msra.mxu0 %v4830
    %4961 = vmatprep.subr.bf16.mxu0 0
    %4962 = vmatpush2.bf16.msra.mxu0 %v4829
    %4963 = vmatprep.subr.bf16.mxu0 0
    %4964 = vmatpush2.bf16.msra.mxu0 %v4828
    %4965 = vmatprep.subr.bf16.mxu0 0
    %4966 = vmatpush2.bf16.msra.mxu0 %v4827
    %4967 = vmatprep.subr.bf16.mxu0 0
    %4968 = vmatpush2.bf16.msra.mxu0 %v4826
    %4969 = vmatprep.subr.bf16.mxu0 0
    %4970 = vmatpush2.bf16.msra.mxu0 %v4825
    %4971 = vmatprep.subr.bf16.mxu0 0
    %4972 = vmatpush2.bf16.msra.mxu0 %v4824
    %4973 = vmatprep.subr.bf16.mxu0 0
    %4974 = vmatpush2.bf16.msra.mxu0 %v4823
    %4975 = vmatprep.mubr.bf16.mxu0 %v4417
    %4976 = vmatmul.mubr.bf16.gmra.mxu0 %v4416
    %v4977 = vpop.f32.mrf.mxu0
    %v4978 = vadd.f32 %v4557, %v4977
    %v4979 = vpop.f32.mrf.mxu0
    %v4980 = vpop.f32.mrf.mxu0
    %v4981 = vpop.f32.mrf.mxu0
    %4982 = vdwg.mxu0
    %4983 = vmatprep.subr.bf16.mxu0 0
    %4984 = vmatpush1.bf16.msra.mxu0 %v4838
    %4985 = vmatprep.subr.bf16.mxu0 0
    %4986 = vmatpush1.bf16.msra.mxu0 %v4837
    %4987 = vmatprep.subr.bf16.mxu0 0
    %4988 = vmatpush1.bf16.msra.mxu0 %v4836
    %4989 = vmatprep.subr.bf16.mxu0 0
    %4990 = vmatpush1.bf16.msra.mxu0 %v4835
    %4991 = vmatprep.subr.bf16.mxu0 0
    %4992 = vmatpush1.bf16.msra.mxu0 %v4834
    %4993 = vmatprep.subr.bf16.mxu0 0
    %4994 = vmatpush1.bf16.msra.mxu0 %v4833
    %4995 = vmatprep.subr.bf16.mxu0 0
    %4996 = vmatpush1.bf16.msra.mxu0 %v4832
    %4997 = vmatprep.subr.bf16.mxu0 0
    %4998 = vmatpush1.bf16.msra.mxu0 %v4831
    %4999 = vmatprep.subr.bf16.mxu0 0
    %5000 = vmatpush2.bf16.msra.mxu0 %v4846
    %5001 = vmatprep.subr.bf16.mxu0 0
    %5002 = vmatpush2.bf16.msra.mxu0 %v4845
    %5003 = vmatprep.subr.bf16.mxu0 0
    %5004 = vmatpush2.bf16.msra.mxu0 %v4844
    %5005 = vmatprep.subr.bf16.mxu0 0
    %5006 = vmatpush2.bf16.msra.mxu0 %v4843
    %5007 = vmatprep.subr.bf16.mxu0 0
    %5008 = vmatpush2.bf16.msra.mxu0 %v4842
    %5009 = vmatprep.subr.bf16.mxu0 0
    %5010 = vmatpush2.bf16.msra.mxu0 %v4841
    %5011 = vmatprep.subr.bf16.mxu0 0
    %5012 = vmatpush2.bf16.msra.mxu0 %v4840
    %5013 = vmatprep.subr.bf16.mxu0 0
    %5014 = vmatpush2.bf16.msra.mxu0 %v4839
    %5015 = vmatprep.mubr.bf16.mxu0 %v4419
    %5016 = vmatmul.mubr.bf16.gmra.mxu0 %v4418
    %v5017 = vpop.f32.mrf.mxu0
    %v5018 = vadd.f32 %v4978, %v5017
    %v5019 = vpop.f32.mrf.mxu0
    %v5020 = vpop.f32.mrf.mxu0
    %v5021 = vpop.f32.mrf.mxu0
    %5022 = vdwg.mxu0
    %5023 = vmatprep.subr.bf16.mxu0 0
    %5024 = vmatpush1.bf16.msra.mxu0 %v4854
    %5025 = vmatprep.subr.bf16.mxu0 0
    %5026 = vmatpush1.bf16.msra.mxu0 %v4853
    %5027 = vmatprep.subr.bf16.mxu0 0
    %5028 = vmatpush1.bf16.msra.mxu0 %v4852
    %5029 = vmatprep.subr.bf16.mxu0 0
    %5030 = vmatpush1.bf16.msra.mxu0 %v4851
    %5031 = vmatprep.subr.bf16.mxu0 0
    %5032 = vmatpush1.bf16.msra.mxu0 %v4850
    %5033 = vmatprep.subr.bf16.mxu0 0
    %5034 = vmatpush1.bf16.msra.mxu0 %v4849
    %5035 = vmatprep.subr.bf16.mxu0 0
    %5036 = vmatpush1.bf16.msra.mxu0 %v4848
    %5037 = vmatprep.subr.bf16.mxu0 0
    %5038 = vmatpush1.bf16.msra.mxu0 %v4847
    %5039 = vmatprep.subr.bf16.mxu0 0
    %5040 = vmatpush2.bf16.msra.mxu0 %v4862
    %5041 = vmatprep.subr.bf16.mxu0 0
    %5042 = vmatpush2.bf16.msra.mxu0 %v4861
    %5043 = vmatprep.subr.bf16.mxu0 0
    %5044 = vmatpush2.bf16.msra.mxu0 %v4860
    %5045 = vmatprep.subr.bf16.mxu0 0
    %5046 = vmatpush2.bf16.msra.mxu0 %v4859
    %5047 = vmatprep.subr.bf16.mxu0 0
    %5048 = vmatpush2.bf16.msra.mxu0 %v4858
    %5049 = vmatprep.subr.bf16.mxu0 0
    %5050 = vmatpush2.bf16.msra.mxu0 %v4857
    %5051 = vmatprep.subr.bf16.mxu0 0
    %5052 = vmatpush2.bf16.msra.mxu0 %v4856
    %5053 = vmatprep.subr.bf16.mxu0 0
    %5054 = vmatpush2.bf16.msra.mxu0 %v4855
    %5055 = vmatprep.mubr.bf16.mxu0 %v4421
    %5056 = vmatmul.mubr.bf16.gmra.mxu0 %v4420
    %v5057 = vpop.f32.mrf.mxu0
    %v5058 = vadd.f32 %v5018, %v5057
    %v5059 = vpop.f32.mrf.mxu0
    %v5060 = vpop.f32.mrf.mxu0
    %v5061 = vpop.f32.mrf.mxu0
    %5062 = vdwg.mxu0
    %5063 = vmatprep.subr.bf16.mxu0 0
    %5064 = vmatpush1.bf16.msra.mxu0 %v4870
    %5065 = vmatprep.subr.bf16.mxu0 0
    %5066 = vmatpush1.bf16.msra.mxu0 %v4869
    %5067 = vmatprep.subr.bf16.mxu0 0
    %5068 = vmatpush1.bf16.msra.mxu0 %v4868
    %5069 = vmatprep.subr.bf16.mxu0 0
    %5070 = vmatpush1.bf16.msra.mxu0 %v4867
    %5071 = vmatprep.subr.bf16.mxu0 0
    %5072 = vmatpush1.bf16.msra.mxu0 %v4866
    %5073 = vmatprep.subr.bf16.mxu0 0
    %5074 = vmatpush1.bf16.msra.mxu0 %v4865
    %5075 = vmatprep.subr.bf16.mxu0 0
    %5076 = vmatpush1.bf16.msra.mxu0 %v4864
    %5077 = vmatprep.subr.bf16.mxu0 0
    %5078 = vmatpush1.bf16.msra.mxu0 %v4863
    %5079 = vmatprep.subr.bf16.mxu0 0
    %5080 = vmatpush2.bf16.msra.mxu0 %v4878
    %5081 = vmatprep.subr.bf16.mxu0 0
    %5082 = vmatpush2.bf16.msra.mxu0 %v4877
    %5083 = vmatprep.subr.bf16.mxu0 0
    %5084 = vmatpush2.bf16.msra.mxu0 %v4876
    %5085 = vmatprep.subr.bf16.mxu0 0
    %5086 = vmatpush2.bf16.msra.mxu0 %v4875
    %5087 = vmatprep.subr.bf16.mxu0 0
    %5088 = vmatpush2.bf16.msra.mxu0 %v4874
    %5089 = vmatprep.subr.bf16.mxu0 0
    %5090 = vmatpush2.bf16.msra.mxu0 %v4873
    %5091 = vmatprep.subr.bf16.mxu0 0
    %5092 = vmatpush2.bf16.msra.mxu0 %v4872
    %5093 = vmatprep.subr.bf16.mxu0 0
    %5094 = vmatpush2.bf16.msra.mxu0 %v4871
    %5095 = vmatprep.mubr.bf16.mxu0 %v4423
    %5096 = vmatmul.mubr.bf16.gmra.mxu0 %v4422
    %v5097 = vpop.f32.mrf.mxu0
    %v5098 = vadd.f32 %v5058, %v5097
    %v5099 = vpop.f32.mrf.mxu0
    %v5100 = vpop.f32.mrf.mxu0
    %v5101 = vpop.f32.mrf.mxu0
    %5102 = vdwg.mxu0
    %vm5103 = vcmask 1041408
    %v5104 = vsel %vm5103, %v5098, -inf
    %5105 = vmax.xlane.f32.xlu0 %v5104
    %v5106 = vpop.xlane.xlu0 %5105
    %v5107 = vsub.f32 %v5098, %v5106
    %v5108 = vmul.f32 %v5107, 1.442695
    %v5109 = vpow.pop %v5108
    %v5110 = vsel %vm5103, %v5109, 0.0
    %5111 = vadd.xlane.f32.xlu0 %v5110
    %v5112 = vpop.xlane.xlu0 %5111
    %v5113 = vrcp.pop %v5112
    %v5114 = vmul.f32 %v5109, %v5113
    %5116 = vrot.lane.b32.xlu0 %v5114, 123
    %v5117 = vpop.permute.xlu0 %5116
    %v5119 = vadd.f32 %v5114, %v5117
    %vm5120 = vcmask 33792
    %5121 = vst.msk [vmem:[#allocation2] sm:$0x3] %vm5120, %v5119
    %v5122 = vsel %vm5120, %v5114, 0.0
    %5123 = vadd.xlane.f32.xlu0 %v5122
    %v5124 = vpop.xlane.xlu0 %5123
    %vm5125 = vcmask 1024
    %5126 = vst.msk [vmem:[#allocation4] sm:$0x3] %vm5125, %v5124
    %v5127 = vsel %vm5120, %v5117, 0.0
    %5128 = vadd.xlane.f32.xlu0 %v5127
    %v5129 = vpop.xlane.xlu0 %5128
    %vm5130 = vcmask 9224
    %5131 = vst.msk [vmem:[#allocation4] sm:$0x3] %vm5130, %v5129
    // Predicated region
    $region30: #{net_forward.3} parent=1 // pred_check
      _
    $region31: #{net_forward.3} parent=1 // pred_check_branch
      %5133 = sbr.rel (0) target = $region33
    $region32: #{net_forward.3} parent=1 // pred_region
      %s5135 = ssub.s32 32, 32
      %5136 = vsyncadd [#allocation3], %s5135
      %s5138 = sshll.u32 [#allocation2], 4
      %s5139 = int_to_ptr.vmem [resolvable:$true] %s5138
      %5141 = dma.vmem_to_hbm [thread:$0]  %s5139, 32, %s7, [#allocation3]
    $region33: #{net_forward.3} parent=1 // pred_fallthru
      _
    // Predicated region
    $region34: #{net_forward.3} parent=1 // pred_check
      _
    $region35: #{net_forward.3} parent=1 // pred_check_branch
      %5143 = sbr.rel (0) target = $region37
    $region36: #{net_forward.3} parent=1 // pred_region
      %s5145 = ssub.s32 32, 32
      %5146 = vsyncadd [#allocation5], %s5145
      %s5148 = sshll.u32 [#allocation4], 4
      %s5149 = int_to_ptr.vmem [resolvable:$true] %s5148
      %5151 = dma.vmem_to_hbm [thread:$0]  %s5149, 32, %s8, [#allocation5]
    $region37: #{net_forward.3} parent=1 // pred_fallthru
      _
    // Predicated region
    $region38: #{net_forward.3} parent=1 // pred_check
      _
    $region39: #{net_forward.3} parent=1 // pred_check_branch
      %5153 = sbr.rel (0) target = $region41
    $region40: #{net_forward.3} parent=1 // pred_region
      %5154 = dma.done [#allocation3], 32
    $region41: #{net_forward.3} parent=1 // pred_fallthru
      _
    // Predicated region
    $region42: #{net_forward.3} parent=1 // pred_check
      _
    $region43: #{net_forward.3} parent=1 // pred_check_branch
      %5156 = sbr.rel (0) target = $region45
    $region44: #{net_forward.3} parent=1 // pred_region
      %5157 = dma.done [#allocation5], 32
    $region45: #{net_forward.3} parent=1 // pred_fallthru
      _
    %5158 = vsyncpa [#allocation3], 1
    %5159 = vsyncpa [#allocation5], 1

</llo_original>
